<compile_context>
chip_gen: v6e
topology: v6e:2x2x1
jax: 0.10.0
libtpu: 0.0.40
codegen_flags: <defaults>
</compile_context>

<pallas_src>
import math

import jax
import jax.numpy as jnp
import numpy as np
from jax.experimental import pallas as pl
from jax.experimental.pallas import tpu as pltpu

MAXPAD = 3                 # halo of the merged 7x7 depthwise conv
KEFF = 2 * MAXPAD + 1      # 7


def _round_up(x, m):
    return (x + m - 1) // m * m


def _mona_kernel(xp_hbm, w_ref, b_ref, wp_ref, bp_ref, out_ref, xbuf, sem):
    # xp_hbm : (B, H8+6, WP8, CP) zero-padded NHWC input, left in HBM (pl.ANY)
    # w_ref  : (7, 7, CP) merged depthwise weights (identity folded into center)
    # b_ref  : (1, CP)    merged depthwise bias
    # wp_ref : (CP, CP)   projector weights (bf16);  bp_ref: (1, CP) proj bias
    # out_ref: (TH, W8, CP) output block (batch dim squeezed)
    # xbuf   : (2, TH+6, WP8, CP) VMEM double buffer;  sem: DMA semaphores (2,)
    TH, W8, CP = out_ref.shape
    _, THP, WP8, _ = xbuf.shape
    SR = math.gcd(TH, 8)             # strip rows (8 when TH is 8-aligned)
    n_strips = TH // SR

    b = pl.program_id(0)
    t = pl.program_id(1)
    nt = pl.num_programs(1)
    slot = t % 2

    def slab_copy(row_start, buf_slot):
        return pltpu.make_async_copy(
            xp_hbm.at[b, pl.ds(row_start, THP)],
            xbuf.at[buf_slot],
            sem.at[buf_slot])

    # Prime the double-buffer at the first H-tile of each batch element.
    # TODO(synk): cross-batch prefetch (hiding this prime behind the previous
    # batch's last tile) needs per-core first-step detection and is unsafe
    # with megacore batch sharding ("parallel" on axis 0), so it is omitted.
    @pl.when(t == 0)
    def _():
        slab_copy(0, 0).start()

    # Wait for the current tile's halo'd slab.
    slab_copy(t * TH, slot).wait()

    # Prefetch the next tile of the same batch element behind this compute.
    @pl.when(t + 1 < nt)
    def _():
        slab_copy((t + 1) * TH, 1 - slot).start()

    b_vec = b_ref[0, :].astype(jnp.float32)        # merged depthwise bias
    bp_vec = bp_ref[0, :]                          # projector bias (f32)

    # Strip-blocked conv + projector + residuals + store.  The f32 accumulator
    # only ever covers (SR, W8, CP) so it lives in vregs, and the projector
    # matmul / final store reuse it before the next strip starts.
    @pl.loop(0, n_strips)
    def _(s):
        r0 = pl.multiple_of(s * SR, SR)
        acc = jnp.zeros((SR, W8, CP), jnp.float32)
        for dy in range(KEFF):
            # One aligned row-slab load per dy; the 7 dx taps come from XLU
            # sublane rolls + an offset-0 slice (zero halo => the wrapped tail
            # never lands inside [:, :W8, :]).
            row = xbuf[slot, pl.ds(r0 + dy, SR), :, :].astype(jnp.float32)
            for dx in range(KEFF):
                if dx == 0:
                    tap = row[:, :W8, :]
                else:
                    tap = pltpu.roll(row, WP8 - dx, axis=1)[:, :W8, :]
                acc = acc + tap * w_ref[dy, dx, :].astype(jnp.float32)

        # x2 == (conv1 + conv2 + conv3)/3 + x   (identity + /3 folded in w_eff)
        x2 = acc + b_vec

        # Projector (1x1 conv) = channel matmul on the MXU, fused per strip:
        # bf16 x bf16 -> f32 accumulate (small, documented drift vs the f32
        # Precision.HIGHEST reference).
        p = jnp.dot(x2.reshape(SR * W8, CP).astype(jnp.bfloat16),
                    wp_ref[...],
                    preferred_element_type=jnp.float32)
        y = x2 + p.reshape(SR, W8, CP) + bp_vec
        out_ref[pl.ds(r0, SR), :, :] = y.astype(out_ref.dtype)


def _vmem_capacity_bytes():
    """Per-core VMEM capacity, with a conservative fallback."""
    try:
        cap = getattr(pltpu.get_tpu_info(), "vmem_capacity_bytes", None)
        if cap:
            return int(cap)
    except Exception:
        pass
    return 128 * 2 ** 20


def _choose_tile_h(H8, WP8, CP, itemsize, slab_budget_bytes):
    """Largest divisor of H8 whose halo'd slab fits the budget (prefer 8-aligned)."""
    best = None
    for th in range(H8, 0, -1):
        if H8 % th:
            continue
        slab = (th + 2 * MAXPAD) * WP8 * CP * itemsize
        if slab <= slab_budget_bytes:
            if th % 8 == 0:
                return th            # 8-row-aligned strips preferred
            if best is None:
                best = th
    return best if best is not None else 1


def mona_op(x_nchw, params, *, tile_h=None):
    """MonaOp forward. x_nchw: (B, C, H, W) float32 (PyTorch layout)."""
    w3, b3, w5, b5, w7, b7, wp, bp = params
    B, C, H, W = x_nchw.shape

    # ---- host-side layout + parameter folding (tiny, one-time per call) ----
    CP = _round_up(C, 128)                       # full-lane channels
    W8 = _round_up(W, 8)                         # sublane-aligned output width
    H8 = _round_up(H, 8)                         # divisor-friendly height
    WP8 = _round_up(W8 + 2 * MAXPAD, 8)          # slab width, 8-aligned for rolls
    HP = H8 + 2 * MAXPAD

    # TODO(synk): in an NHWC, channel-padded end-to-end model these transpose/
    # pad HBM passes disappear entirely.
    x = jnp.transpose(x_nchw, (0, 2, 3, 1))
    xp = jnp.pad(x, ((0, 0),
                     (MAXPAD, HP - H - MAXPAD),
                     (MAXPAD, WP8 - W - MAXPAD),
                     (0, CP - C)))

    w3k = jnp.transpose(w3[:, 0], (1, 2, 0))                 # (3,3,C)
    w5k = jnp.transpose(w5[:, 0], (1, 2, 0))                 # (5,5,C)
    w7k = jnp.transpose(w7[:, 0], (1, 2, 0))                 # (7,7,C)
    # Merge the three depthwise convs, the /3 and the identity residual into
    # one effective 7x7 kernel + one effective bias; pad channels to CP.
    w_eff = (jnp.pad(w3k, ((2, 2), (2, 2), (0, 0)))
             + jnp.pad(w5k, ((1, 1), (1, 1), (0, 0)))
             + w7k) / 3.0
    w_eff = w_eff.at[MAXPAD, MAXPAD, :].add(1.0)             # identity residual
    w_eff = jnp.pad(w_eff, ((0, 0), (0, 0), (0, CP - C)))
    b_eff = jnp.pad((b3 + b5 + b7) / 3.0, (0, CP - C)).reshape(1, CP)

    wpk = jnp.pad(jnp.transpose(wp[:, :, 0, 0], (1, 0)),
                  ((0, CP - C), (0, CP - C))).astype(jnp.bfloat16)   # (Cin,Cout)
    bpk = jnp.pad(bp, (0, CP - C)).reshape(1, CP)

    itemsize = x.dtype.itemsize
    vmem_cap = _vmem_capacity_bytes()
    slab_budget = max(vmem_cap // 12, 1 << 20)   # ~10.7 MiB on 128 MiB, ~5.3 on 64
    TH = tile_h if tile_h is not None else _choose_tile_h(
        H8, WP8, CP, itemsize, slab_budget)
    assert H8 % TH == 0, "tile_h must divide the (padded) height"
    n_tiles = H8 // TH
    THP = TH + 2 * MAXPAD
    SR = math.gcd(TH, 8)

    # Tight, generation-aware VMEM budget (capped well below physical VMEM).
    param_bytes = (KEFF * KEFF * CP + CP) * 4 + CP * CP * 2 + CP * 4
    vmem_est = (2 * THP * WP8 * CP * itemsize        # manual double-buffered slabs
                + 2 * TH * W8 * CP * itemsize        # pipelined output blocks
                + 2 * param_bytes                    # weight / bias blocks
                + 4 * SR * WP8 * CP * 4)             # strip f32 intermediates
    vmem_limit = int(min(max(2 * vmem_est, 16 << 20), (3 * vmem_cap) // 4))

    # TODO(synk): when B per chip is 1 on v7x, a second parallel axis (W tiles)
    # would be needed to feed both TensorCores; omitted to keep the manual
    # H-slab prefetch chain simple.
    out_nhwc = pl.pallas_call(
        _mona_kernel,
        out_shape=jax.ShapeDtypeStruct((B, H8, W8, CP), x.dtype),
        grid_spec=pltpu.PrefetchScalarGridSpec(
            num_scalar_prefetch=0,
            grid=(B, n_tiles),
            in_specs=[
                pl.BlockSpec(memory_space=pl.ANY),                   # padded input (HBM)
                pl.BlockSpec((KEFF, KEFF, CP), lambda b, t: (0, 0, 0)),
                pl.BlockSpec((1, CP), lambda b, t: (0, 0)),
                pl.BlockSpec((CP, CP), lambda b, t: (0, 0)),
                pl.BlockSpec((1, CP), lambda b, t: (0, 0)),
            ],
            out_specs=pl.BlockSpec((None, TH, W8, CP), lambda b, t: (b, t, 0, 0)),
            scratch_shapes=[
                pltpu.VMEM((2, THP, WP8, CP), x.dtype),
                pltpu.SemaphoreType.DMA((2,)),
            ],
        ),
        compiler_params=pltpu.CompilerParams(
            dimension_semantics=("parallel", "arbitrary"),
            vmem_limit_bytes=vmem_limit),
    )(xp, w_eff, b_eff, wpk, bpk)

    out = out_nhwc[:, :H, :W, :C]
    return jnp.transpose(out, (0, 3, 1, 2))                          # back to NCHW


def mona_ref(x_nchw, params):
    """Pure-JAX reference in NCHW, mirroring the PyTorch forward exactly."""
    w3, b3, w5, b5, w7, b7, wp, bp = params
    B, C, H, W = x_nchw.shape

    def dw(x, w, b, k):
        p = k // 2
        xp = jnp.pad(x, ((0, 0), (0, 0), (p, p), (p, p)))
        acc = jnp.zeros_like(x)
        for dy in range(k):
            for dx in range(k):
                acc = acc + xp[:, :, dy:dy + H, dx:dx + W] * \
                    w[None, :, 0, dy, dx][..., None, None]
        return acc + b[None, :, None, None]

    identity = x_nchw
    c1 = dw(x_nchw, w3, b3, 3)
    c2 = dw(x_nchw, w5, b5, 5)
    c3 = dw(x_nchw, w7, b7, 7)
    x2 = (c1 + c2 + c3) / 3.0 + identity
    proj = jnp.einsum('bchw,oc->bohw', x2, wp[:, :, 0, 0],
                      precision=jax.lax.Precision.HIGHEST) \
        + bp[None, :, None, None]
    return x2 + proj


if __name__ == "__main__":
    key = jax.random.PRNGKey(0)
    B, C, H, W = 2, 4, 16, 16
    ks = jax.random.split(key, 9)

    x = jax.random.normal(ks[0], (B, C, H, W), jnp.float32)

    def init(k, shape, fan_in):
        return jax.random.normal(k, shape, jnp.float32) / np.sqrt(fan_in)

    # Parameter shapes mirror MonaOp.__init__ (nn.Conv2d weight/bias layouts).
    w3 = init(ks[1], (C, 1, 3, 3), 9);  b3 = init(ks[2], (C,), 9)
    w5 = init(ks[3], (C, 1, 5, 5), 25); b5 = init(ks[4], (C,), 25)
    w7 = init(ks[5], (C, 1, 7, 7), 49); b7 = init(ks[6], (C,), 49)
    wp = init(ks[7], (C, C, 1, 1), C);  bp = init(ks[8], (C,), C)
    params = (w3, b3, w5, b5, w7, b7, wp, bp)

    ref = mona_ref(x, params)

    # Auto-selected H tile (single tile, 2 strips at this size).
    out_auto = jax.block_until_ready(mona_op(x, params))
    # Forced multi-tile path (exercises the halo'd H-tiling + prefetch chain).
    out_tiled = jax.block_until_ready(mona_op(x, params, tile_h=8))

    for out in (out_auto, out_tiled):
        assert out.shape == x.shape and out.dtype == x.dtype
        np.testing.assert_allclose(np.asarray(out), np.asarray(ref),
                                   rtol=1e-2, atol=1e-2)
    print("KERNEL_OK")
</pallas_src>

<mosaic_0001>
module attributes {stable_mosaic.version = 11 : i64} {
  func.func @_mona_kernel(%arg0: i32, %arg1: i32, %arg2: memref<2x22x24x128xf32, #tpu.memory_space<any>>, %arg3: memref<7x7x128xf32, #tpu.memory_space<vmem>>, %arg4: memref<1x128xf32, #tpu.memory_space<vmem>>, %arg5: memref<128x128xbf16, #tpu.memory_space<vmem>>, %arg6: memref<1x128xf32, #tpu.memory_space<vmem>>, %arg7: memref<1x16x16x128xf32, #tpu.memory_space<vmem>>, %arg8: memref<2x22x24x128xf32, #tpu.memory_space<vmem>>, %arg9: memref<2x!tpu.dma_semaphore, #tpu.memory_space<semaphore_mem>>) attributes {dimension_semantics = [#tpu.dimension_semantics<parallel>, #tpu.dimension_semantics<arbitrary>], iteration_bounds = array<i64: 2, 1>, scalar_prefetch = 0 : i64, scratch_operands = 2 : i64, tpu.core_type = #tpu.core_type<tc>, window_params = [{}, {pipeline_mode = #tpu.pipeline_mode<synchronous>, transform_indices = @transform_1, window_bounds = array<i64: 7, 7, 128>}, {pipeline_mode = #tpu.pipeline_mode<synchronous>, transform_indices = @transform_2, window_bounds = array<i64: 1, 128>}, {pipeline_mode = #tpu.pipeline_mode<synchronous>, transform_indices = @transform_3, window_bounds = array<i64: 128, 128>}, {pipeline_mode = #tpu.pipeline_mode<synchronous>, transform_indices = @transform_4, window_bounds = array<i64: 1, 128>}, {transform_indices = @transform_5, window_bounds = array<i64: 1, 16, 16, 128>}]} {
    %c2_i32 = arith.constant 2 : i32
    %c0_i32 = arith.constant 0 : i32
    %0 = arith.cmpi eq, %c2_i32, %c0_i32 : i32
    %c1_i32 = arith.constant 1 : i32
    %1 = arith.select %0, %c1_i32, %c2_i32 : i32
    %2 = arith.remsi %arg1, %1 : i32
    %c0_i32_0 = arith.constant 0 : i32
    %3 = arith.cmpi ne, %2, %c0_i32_0 : i32
    %c0_i32_1 = arith.constant 0 : i32
    %4 = arith.cmpi slt, %2, %c0_i32_1 : i32
    %c0_i32_2 = arith.constant 0 : i32
    %5 = arith.cmpi slt, %1, %c0_i32_2 : i32
    %6 = arith.xori %4, %5 : i1
    %7 = arith.andi %6, %3 : i1
    %8 = arith.addi %2, %1 : i32
    %9 = arith.select %7, %8, %2 : i32
    %c0_i32_3 = arith.constant 0 : i32
    %10 = arith.cmpi eq, %arg1, %c0_i32_3 : i32
    %11 = arith.extui %10 : i1 to i32
    %c0_i32_4 = arith.constant 0 : i32
    %12 = arith.cmpi ne, %11, %c0_i32_4 : i32
    scf.if %12 {
      %c0_i32_20 = arith.constant 0 : i32
      %c0_i32_21 = arith.constant 0 : i32
      %c0_i32_22 = arith.constant 0 : i32
      %c0_i32_23 = arith.constant 0 : i32
      %c0_i32_24 = arith.constant 0 : i32
      %29 = tpu.memref_slice %arg2[%arg0, %c0_i32_22, %c0_i32_23, %c0_i32_24] : memref<2x22x24x128xf32, #tpu.memory_space<any>> -> memref<1x22x24x128xf32, #tpu.memory_space<any>>
      %30 = tpu.memref_squeeze %29 : memref<1x22x24x128xf32, #tpu.memory_space<any>> -> memref<22x24x128xf32, #tpu.memory_space<any>>
      %c0_i32_25 = arith.constant 0 : i32
      %c0_i32_26 = arith.constant 0 : i32
      %c0_i32_27 = arith.constant 0 : i32
      %31 = tpu.memref_slice %arg8[%c0_i32_20, %c0_i32_25, %c0_i32_26, %c0_i32_27] : memref<2x22x24x128xf32, #tpu.memory_space<vmem>> -> memref<1x22x24x128xf32, #tpu.memory_space<vmem>>
      %32 = tpu.memref_squeeze %31 : memref<1x22x24x128xf32, #tpu.memory_space<vmem>> -> memref<22x24x128xf32, #tpu.memory_space<vmem>>
      %33 = tpu.memref_slice %arg9[%c0_i32_21] : memref<2x!tpu.dma_semaphore, #tpu.memory_space<semaphore_mem>> -> memref<1x!tpu.dma_semaphore, #tpu.memory_space<semaphore_mem>>
      %34 = tpu.memref_squeeze %33 : memref<1x!tpu.dma_semaphore, #tpu.memory_space<semaphore_mem>> -> memref<!tpu.dma_semaphore, #tpu.memory_space<semaphore_mem>>
      tpu.enqueue_dma source(%30 : memref<22x24x128xf32, #tpu.memory_space<any>>) target(%32 : memref<22x24x128xf32, #tpu.memory_space<vmem>>) target_semaphore(%34 : memref<!tpu.dma_semaphore, #tpu.memory_space<semaphore_mem>>)
    } else {
    }
    %c16_i32 = arith.constant 16 : i32
    %13 = arith.muli %arg1, %c16_i32 : i32
    %c0_i32_5 = arith.constant 0 : i32
    %c0_i32_6 = arith.constant 0 : i32
    %14 = tpu.memref_slice %arg2[%arg0, %13, %c0_i32_5, %c0_i32_6] : memref<2x22x24x128xf32, #tpu.memory_space<any>> -> memref<1x22x24x128xf32, #tpu.memory_space<any>>
    %15 = tpu.memref_squeeze %14 : memref<1x22x24x128xf32, #tpu.memory_space<any>> -> memref<22x24x128xf32, #tpu.memory_space<any>>
    %c0_i32_7 = arith.constant 0 : i32
    %c0_i32_8 = arith.constant 0 : i32
    %c0_i32_9 = arith.constant 0 : i32
    %16 = tpu.memref_slice %arg8[%9, %c0_i32_7, %c0_i32_8, %c0_i32_9] : memref<2x22x24x128xf32, #tpu.memory_space<vmem>> -> memref<1x22x24x128xf32, #tpu.memory_space<vmem>>
    %17 = tpu.memref_squeeze %16 : memref<1x22x24x128xf32, #tpu.memory_space<vmem>> -> memref<22x24x128xf32, #tpu.memory_space<vmem>>
    %18 = tpu.memref_slice %arg9[%9] : memref<2x!tpu.dma_semaphore, #tpu.memory_space<semaphore_mem>> -> memref<1x!tpu.dma_semaphore, #tpu.memory_space<semaphore_mem>>
    %19 = tpu.memref_squeeze %18 : memref<1x!tpu.dma_semaphore, #tpu.memory_space<semaphore_mem>> -> memref<!tpu.dma_semaphore, #tpu.memory_space<semaphore_mem>>
    tpu.wait_dma2 semaphore(%19 : memref<!tpu.dma_semaphore, #tpu.memory_space<semaphore_mem>>) src(%15 : memref<22x24x128xf32, #tpu.memory_space<any>>) dst(%17 : memref<22x24x128xf32, #tpu.memory_space<vmem>>)
    %c1_i32_10 = arith.constant 1 : i32
    %20 = arith.addi %arg1, %c1_i32_10 : i32
    %c1_i32_11 = arith.constant 1 : i32
    %21 = arith.cmpi slt, %20, %c1_i32_11 : i32
    %22 = arith.extui %21 : i1 to i32
    %c0_i32_12 = arith.constant 0 : i32
    %23 = arith.cmpi ne, %22, %c0_i32_12 : i32
    scf.if %23 {
      %c1_i32_20 = arith.constant 1 : i32
      %29 = arith.addi %arg1, %c1_i32_20 : i32
      %c16_i32_21 = arith.constant 16 : i32
      %30 = arith.muli %29, %c16_i32_21 : i32
      %c1_i32_22 = arith.constant 1 : i32
      %31 = arith.subi %c1_i32_22, %9 : i32
      %c0_i32_23 = arith.constant 0 : i32
      %c0_i32_24 = arith.constant 0 : i32
      %32 = tpu.memref_slice %arg2[%arg0, %30, %c0_i32_23, %c0_i32_24] : memref<2x22x24x128xf32, #tpu.memory_space<any>> -> memref<1x22x24x128xf32, #tpu.memory_space<any>>
      %33 = tpu.memref_squeeze %32 : memref<1x22x24x128xf32, #tpu.memory_space<any>> -> memref<22x24x128xf32, #tpu.memory_space<any>>
      %c0_i32_25 = arith.constant 0 : i32
      %c0_i32_26 = arith.constant 0 : i32
      %c0_i32_27 = arith.constant 0 : i32
      %34 = tpu.memref_slice %arg8[%31, %c0_i32_25, %c0_i32_26, %c0_i32_27] : memref<2x22x24x128xf32, #tpu.memory_space<vmem>> -> memref<1x22x24x128xf32, #tpu.memory_space<vmem>>
      %35 = tpu.memref_squeeze %34 : memref<1x22x24x128xf32, #tpu.memory_space<vmem>> -> memref<22x24x128xf32, #tpu.memory_space<vmem>>
      %36 = tpu.memref_slice %arg9[%31] : memref<2x!tpu.dma_semaphore, #tpu.memory_space<semaphore_mem>> -> memref<1x!tpu.dma_semaphore, #tpu.memory_space<semaphore_mem>>
      %37 = tpu.memref_squeeze %36 : memref<1x!tpu.dma_semaphore, #tpu.memory_space<semaphore_mem>> -> memref<!tpu.dma_semaphore, #tpu.memory_space<semaphore_mem>>
      tpu.enqueue_dma source(%33 : memref<22x24x128xf32, #tpu.memory_space<any>>) target(%35 : memref<22x24x128xf32, #tpu.memory_space<vmem>>) target_semaphore(%37 : memref<!tpu.dma_semaphore, #tpu.memory_space<semaphore_mem>>)
    } else {
    }
    %c0 = arith.constant 0 : index
    %c0_13 = arith.constant 0 : index
    %24 = vector.load %arg4[%c0, %c0_13] : memref<1x128xf32, #tpu.memory_space<vmem>>, vector<1x128xf32>
    %25 = vector.shape_cast %24 : vector<1x128xf32> to vector<128xf32>
    %c0_14 = arith.constant 0 : index
    %c0_15 = arith.constant 0 : index
    %26 = vector.load %arg6[%c0_14, %c0_15] : memref<1x128xf32, #tpu.memory_space<vmem>>, vector<1x128xf32>
    %27 = vector.shape_cast %26 : vector<1x128xf32> to vector<128xf32>
    %c0_i32_16 = arith.constant 0 : i32
    %c2_i32_17 = arith.constant 2 : i32
    %28 = arith.addi %c0_i32_16, %c2_i32_17 : i32
    %c1_i32_18 = arith.constant 1 : i32
    scf.for %arg10 = %c0_i32_16 to %28 step %c1_i32_18  : i32 {
      %c1_i32_20 = arith.constant 1 : i32
      %29 = arith.muli %arg10, %c1_i32_20 : i32
      %c0_i32_21 = arith.constant 0 : i32
      %30 = arith.addi %c0_i32_21, %29 : i32
      %c8_i32 = arith.constant 8 : i32
      %31 = arith.muli %30, %c8_i32 : i32
      %32 = tpu.assume_multiple %31, 8 : i32
      %cst = arith.constant 0.000000e+00 : f32
      %33 = vector.broadcast %cst : f32 to vector<8x16x128xf32>
      %c0_i32_22 = arith.constant 0 : i32
      %34 = arith.addi %32, %c0_i32_22 : i32
      %35 = arith.index_cast %9 : i32 to index
      %36 = arith.index_cast %34 : i32 to index
      %c0_23 = arith.constant 0 : index
      %c0_24 = arith.constant 0 : index
      %37 = vector.load %arg8[%35, %36, %c0_23, %c0_24] : memref<2x22x24x128xf32, #tpu.memory_space<vmem>>, vector<1x8x24x128xf32>
      %38 = vector.shape_cast %37 : vector<1x8x24x128xf32> to vector<8x24x128xf32>
      %39 = vector.extract_strided_slice %38 {offsets = [0, 0, 0], sizes = [8, 16, 128], strides = [1, 1, 1]} : vector<8x24x128xf32> to vector<8x16x128xf32>
      %c0_25 = arith.constant 0 : index
      %c0_26 = arith.constant 0 : index
      %c0_27 = arith.constant 0 : index
      %40 = vector.load %arg3[%c0_25, %c0_26, %c0_27] : memref<7x7x128xf32, #tpu.memory_space<vmem>>, vector<1x1x128xf32>
      %41 = vector.shape_cast %40 : vector<1x1x128xf32> to vector<128xf32>
      %42 = vector.shape_cast %41 : vector<128xf32> to vector<1x1x128xf32>
      %43 = vector.broadcast %42 : vector<1x1x128xf32> to vector<8x16x128xf32>
      %44 = arith.mulf %39, %43 : vector<8x16x128xf32>
      %45 = arith.addf %33, %44 : vector<8x16x128xf32>
      %c23_i32 = arith.constant 23 : i32
      %46 = tpu.dynamic_rotate %38 by %c23_i32 dim 1 : vector<8x24x128xf32>, i32 -> vector<8x24x128xf32>
      %47 = vector.extract_strided_slice %46 {offsets = [0, 0, 0], sizes = [8, 16, 128], strides = [1, 1, 1]} : vector<8x24x128xf32> to vector<8x16x128xf32>
      %c0_28 = arith.constant 0 : index
      %c1 = arith.constant 1 : index
      %c0_29 = arith.constant 0 : index
      %48 = vector.load %arg3[%c0_28, %c1, %c0_29] : memref<7x7x128xf32, #tpu.memory_space<vmem>>, vector<1x1x128xf32>
      %49 = vector.shape_cast %48 : vector<1x1x128xf32> to vector<128xf32>
      %50 = vector.shape_cast %49 : vector<128xf32> to vector<1x1x128xf32>
      %51 = vector.broadcast %50 : vector<1x1x128xf32> to vector<8x16x128xf32>
      %52 = arith.mulf %47, %51 : vector<8x16x128xf32>
      %53 = arith.addf %45, %52 : vector<8x16x128xf32>
      %c22_i32 = arith.constant 22 : i32
      %54 = tpu.dynamic_rotate %38 by %c22_i32 dim 1 : vector<8x24x128xf32>, i32 -> vector<8x24x128xf32>
      %55 = vector.extract_strided_slice %54 {offsets = [0, 0, 0], sizes = [8, 16, 128], strides = [1, 1, 1]} : vector<8x24x128xf32> to vector<8x16x128xf32>
      %c0_30 = arith.constant 0 : index
      %c2 = arith.constant 2 : index
      %c0_31 = arith.constant 0 : index
      %56 = vector.load %arg3[%c0_30, %c2, %c0_31] : memref<7x7x128xf32, #tpu.memory_space<vmem>>, vector<1x1x128xf32>
      %57 = vector.shape_cast %56 : vector<1x1x128xf32> to vector<128xf32>
      %58 = vector.shape_cast %57 : vector<128xf32> to vector<1x1x128xf32>
      %59 = vector.broadcast %58 : vector<1x1x128xf32> to vector<8x16x128xf32>
      %60 = arith.mulf %55, %59 : vector<8x16x128xf32>
      %61 = arith.addf %53, %60 : vector<8x16x128xf32>
      %c21_i32 = arith.constant 21 : i32
      %62 = tpu.dynamic_rotate %38 by %c21_i32 dim 1 : vector<8x24x128xf32>, i32 -> vector<8x24x128xf32>
      %63 = vector.extract_strided_slice %62 {offsets = [0, 0, 0], sizes = [8, 16, 128], strides = [1, 1, 1]} : vector<8x24x128xf32> to vector<8x16x128xf32>
      %c0_32 = arith.constant 0 : index
      %c3 = arith.constant 3 : index
      %c0_33 = arith.constant 0 : index
      %64 = vector.load %arg3[%c0_32, %c3, %c0_33] : memref<7x7x128xf32, #tpu.memory_space<vmem>>, vector<1x1x128xf32>
      %65 = vector.shape_cast %64 : vector<1x1x128xf32> to vector<128xf32>
      %66 = vector.shape_cast %65 : vector<128xf32> to vector<1x1x128xf32>
      %67 = vector.broadcast %66 : vector<1x1x128xf32> to vector<8x16x128xf32>
      %68 = arith.mulf %63, %67 : vector<8x16x128xf32>
      %69 = arith.addf %61, %68 : vector<8x16x128xf32>
      %c20_i32 = arith.constant 20 : i32
      %70 = tpu.dynamic_rotate %38 by %c20_i32 dim 1 : vector<8x24x128xf32>, i32 -> vector<8x24x128xf32>
      %71 = vector.extract_strided_slice %70 {offsets = [0, 0, 0], sizes = [8, 16, 128], strides = [1, 1, 1]} : vector<8x24x128xf32> to vector<8x16x128xf32>
      %c0_34 = arith.constant 0 : index
      %c4 = arith.constant 4 : index
      %c0_35 = arith.constant 0 : index
      %72 = vector.load %arg3[%c0_34, %c4, %c0_35] : memref<7x7x128xf32, #tpu.memory_space<vmem>>, vector<1x1x128xf32>
      %73 = vector.shape_cast %72 : vector<1x1x128xf32> to vector<128xf32>
      %74 = vector.shape_cast %73 : vector<128xf32> to vector<1x1x128xf32>
      %75 = vector.broadcast %74 : vector<1x1x128xf32> to vector<8x16x128xf32>
      %76 = arith.mulf %71, %75 : vector<8x16x128xf32>
      %77 = arith.addf %69, %76 : vector<8x16x128xf32>
      %c19_i32 = arith.constant 19 : i32
      %78 = tpu.dynamic_rotate %38 by %c19_i32 dim 1 : vector<8x24x128xf32>, i32 -> vector<8x24x128xf32>
      %79 = vector.extract_strided_slice %78 {offsets = [0, 0, 0], sizes = [8, 16, 128], strides = [1, 1, 1]} : vector<8x24x128xf32> to vector<8x16x128xf32>
      %c0_36 = arith.constant 0 : index
      %c5 = arith.constant 5 : index
      %c0_37 = arith.constant 0 : index
      %80 = vector.load %arg3[%c0_36, %c5, %c0_37] : memref<7x7x128xf32, #tpu.memory_space<vmem>>, vector<1x1x128xf32>
      %81 = vector.shape_cast %80 : vector<1x1x128xf32> to vector<128xf32>
      %82 = vector.shape_cast %81 : vector<128xf32> to vector<1x1x128xf32>
      %83 = vector.broadcast %82 : vector<1x1x128xf32> to vector<8x16x128xf32>
      %84 = arith.mulf %79, %83 : vector<8x16x128xf32>
      %85 = arith.addf %77, %84 : vector<8x16x128xf32>
      %c18_i32 = arith.constant 18 : i32
      %86 = tpu.dynamic_rotate %38 by %c18_i32 dim 1 : vector<8x24x128xf32>, i32 -> vector<8x24x128xf32>
      %87 = vector.extract_strided_slice %86 {offsets = [0, 0, 0], sizes = [8, 16, 128], strides = [1, 1, 1]} : vector<8x24x128xf32> to vector<8x16x128xf32>
      %c0_38 = arith.constant 0 : index
      %c6 = arith.constant 6 : index
      %c0_39 = arith.constant 0 : index
      %88 = vector.load %arg3[%c0_38, %c6, %c0_39] : memref<7x7x128xf32, #tpu.memory_space<vmem>>, vector<1x1x128xf32>
      %89 = vector.shape_cast %88 : vector<1x1x128xf32> to vector<128xf32>
      %90 = vector.shape_cast %89 : vector<128xf32> to vector<1x1x128xf32>
      %91 = vector.broadcast %90 : vector<1x1x128xf32> to vector<8x16x128xf32>
      %92 = arith.mulf %87, %91 : vector<8x16x128xf32>
      %93 = arith.addf %85, %92 : vector<8x16x128xf32>
      %c1_i32_40 = arith.constant 1 : i32
      %94 = arith.addi %32, %c1_i32_40 : i32
      %95 = arith.index_cast %9 : i32 to index
      %96 = arith.index_cast %94 : i32 to index
      %c0_41 = arith.constant 0 : index
      %c0_42 = arith.constant 0 : index
      %97 = vector.load %arg8[%95, %96, %c0_41, %c0_42] : memref<2x22x24x128xf32, #tpu.memory_space<vmem>>, vector<1x8x24x128xf32>
      %98 = vector.shape_cast %97 : vector<1x8x24x128xf32> to vector<8x24x128xf32>
      %99 = vector.extract_strided_slice %98 {offsets = [0, 0, 0], sizes = [8, 16, 128], strides = [1, 1, 1]} : vector<8x24x128xf32> to vector<8x16x128xf32>
      %c1_43 = arith.constant 1 : index
      %c0_44 = arith.constant 0 : index
      %c0_45 = arith.constant 0 : index
      %100 = vector.load %arg3[%c1_43, %c0_44, %c0_45] : memref<7x7x128xf32, #tpu.memory_space<vmem>>, vector<1x1x128xf32>
      %101 = vector.shape_cast %100 : vector<1x1x128xf32> to vector<128xf32>
      %102 = vector.shape_cast %101 : vector<128xf32> to vector<1x1x128xf32>
      %103 = vector.broadcast %102 : vector<1x1x128xf32> to vector<8x16x128xf32>
      %104 = arith.mulf %99, %103 : vector<8x16x128xf32>
      %105 = arith.addf %93, %104 : vector<8x16x128xf32>
      %c23_i32_46 = arith.constant 23 : i32
      %106 = tpu.dynamic_rotate %98 by %c23_i32_46 dim 1 : vector<8x24x128xf32>, i32 -> vector<8x24x128xf32>
      %107 = vector.extract_strided_slice %106 {offsets = [0, 0, 0], sizes = [8, 16, 128], strides = [1, 1, 1]} : vector<8x24x128xf32> to vector<8x16x128xf32>
      %c1_47 = arith.constant 1 : index
      %c1_48 = arith.constant 1 : index
      %c0_49 = arith.constant 0 : index
      %108 = vector.load %arg3[%c1_47, %c1_48, %c0_49] : memref<7x7x128xf32, #tpu.memory_space<vmem>>, vector<1x1x128xf32>
      %109 = vector.shape_cast %108 : vector<1x1x128xf32> to vector<128xf32>
      %110 = vector.shape_cast %109 : vector<128xf32> to vector<1x1x128xf32>
      %111 = vector.broadcast %110 : vector<1x1x128xf32> to vector<8x16x128xf32>
      %112 = arith.mulf %107, %111 : vector<8x16x128xf32>
      %113 = arith.addf %105, %112 : vector<8x16x128xf32>
      %c22_i32_50 = arith.constant 22 : i32
      %114 = tpu.dynamic_rotate %98 by %c22_i32_50 dim 1 : vector<8x24x128xf32>, i32 -> vector<8x24x128xf32>
      %115 = vector.extract_strided_slice %114 {offsets = [0, 0, 0], sizes = [8, 16, 128], strides = [1, 1, 1]} : vector<8x24x128xf32> to vector<8x16x128xf32>
      %c1_51 = arith.constant 1 : index
      %c2_52 = arith.constant 2 : index
      %c0_53 = arith.constant 0 : index
      %116 = vector.load %arg3[%c1_51, %c2_52, %c0_53] : memref<7x7x128xf32, #tpu.memory_space<vmem>>, vector<1x1x128xf32>
      %117 = vector.shape_cast %116 : vector<1x1x128xf32> to vector<128xf32>
      %118 = vector.shape_cast %117 : vector<128xf32> to vector<1x1x128xf32>
      %119 = vector.broadcast %118 : vector<1x1x128xf32> to vector<8x16x128xf32>
      %120 = arith.mulf %115, %119 : vector<8x16x128xf32>
      %121 = arith.addf %113, %120 : vector<8x16x128xf32>
      %c21_i32_54 = arith.constant 21 : i32
      %122 = tpu.dynamic_rotate %98 by %c21_i32_54 dim 1 : vector<8x24x128xf32>, i32 -> vector<8x24x128xf32>
      %123 = vector.extract_strided_slice %122 {offsets = [0, 0, 0], sizes = [8, 16, 128], strides = [1, 1, 1]} : vector<8x24x128xf32> to vector<8x16x128xf32>
      %c1_55 = arith.constant 1 : index
      %c3_56 = arith.constant 3 : index
      %c0_57 = arith.constant 0 : index
      %124 = vector.load %arg3[%c1_55, %c3_56, %c0_57] : memref<7x7x128xf32, #tpu.memory_space<vmem>>, vector<1x1x128xf32>
      %125 = vector.shape_cast %124 : vector<1x1x128xf32> to vector<128xf32>
      %126 = vector.shape_cast %125 : vector<128xf32> to vector<1x1x128xf32>
      %127 = vector.broadcast %126 : vector<1x1x128xf32> to vector<8x16x128xf32>
      %128 = arith.mulf %123, %127 : vector<8x16x128xf32>
      %129 = arith.addf %121, %128 : vector<8x16x128xf32>
      %c20_i32_58 = arith.constant 20 : i32
      %130 = tpu.dynamic_rotate %98 by %c20_i32_58 dim 1 : vector<8x24x128xf32>, i32 -> vector<8x24x128xf32>
      %131 = vector.extract_strided_slice %130 {offsets = [0, 0, 0], sizes = [8, 16, 128], strides = [1, 1, 1]} : vector<8x24x128xf32> to vector<8x16x128xf32>
      %c1_59 = arith.constant 1 : index
      %c4_60 = arith.constant 4 : index
      %c0_61 = arith.constant 0 : index
      %132 = vector.load %arg3[%c1_59, %c4_60, %c0_61] : memref<7x7x128xf32, #tpu.memory_space<vmem>>, vector<1x1x128xf32>
      %133 = vector.shape_cast %132 : vector<1x1x128xf32> to vector<128xf32>
      %134 = vector.shape_cast %133 : vector<128xf32> to vector<1x1x128xf32>
      %135 = vector.broadcast %134 : vector<1x1x128xf32> to vector<8x16x128xf32>
      %136 = arith.mulf %131, %135 : vector<8x16x128xf32>
      %137 = arith.addf %129, %136 : vector<8x16x128xf32>
      %c19_i32_62 = arith.constant 19 : i32
      %138 = tpu.dynamic_rotate %98 by %c19_i32_62 dim 1 : vector<8x24x128xf32>, i32 -> vector<8x24x128xf32>
      %139 = vector.extract_strided_slice %138 {offsets = [0, 0, 0], sizes = [8, 16, 128], strides = [1, 1, 1]} : vector<8x24x128xf32> to vector<8x16x128xf32>
      %c1_63 = arith.constant 1 : index
      %c5_64 = arith.constant 5 : index
      %c0_65 = arith.constant 0 : index
      %140 = vector.load %arg3[%c1_63, %c5_64, %c0_65] : memref<7x7x128xf32, #tpu.memory_space<vmem>>, vector<1x1x128xf32>
      %141 = vector.shape_cast %140 : vector<1x1x128xf32> to vector<128xf32>
      %142 = vector.shape_cast %141 : vector<128xf32> to vector<1x1x128xf32>
      %143 = vector.broadcast %142 : vector<1x1x128xf32> to vector<8x16x128xf32>
      %144 = arith.mulf %139, %143 : vector<8x16x128xf32>
      %145 = arith.addf %137, %144 : vector<8x16x128xf32>
      %c18_i32_66 = arith.constant 18 : i32
      %146 = tpu.dynamic_rotate %98 by %c18_i32_66 dim 1 : vector<8x24x128xf32>, i32 -> vector<8x24x128xf32>
      %147 = vector.extract_strided_slice %146 {offsets = [0, 0, 0], sizes = [8, 16, 128], strides = [1, 1, 1]} : vector<8x24x128xf32> to vector<8x16x128xf32>
      %c1_67 = arith.constant 1 : index
      %c6_68 = arith.constant 6 : index
      %c0_69 = arith.constant 0 : index
      %148 = vector.load %arg3[%c1_67, %c6_68, %c0_69] : memref<7x7x128xf32, #tpu.memory_space<vmem>>, vector<1x1x128xf32>
      %149 = vector.shape_cast %148 : vector<1x1x128xf32> to vector<128xf32>
      %150 = vector.shape_cast %149 : vector<128xf32> to vector<1x1x128xf32>
      %151 = vector.broadcast %150 : vector<1x1x128xf32> to vector<8x16x128xf32>
      %152 = arith.mulf %147, %151 : vector<8x16x128xf32>
      %153 = arith.addf %145, %152 : vector<8x16x128xf32>
      %c2_i32_70 = arith.constant 2 : i32
      %154 = arith.addi %32, %c2_i32_70 : i32
      %155 = arith.index_cast %9 : i32 to index
      %156 = arith.index_cast %154 : i32 to index
      %c0_71 = arith.constant 0 : index
      %c0_72 = arith.constant 0 : index
      %157 = vector.load %arg8[%155, %156, %c0_71, %c0_72] : memref<2x22x24x128xf32, #tpu.memory_space<vmem>>, vector<1x8x24x128xf32>
      %158 = vector.shape_cast %157 : vector<1x8x24x128xf32> to vector<8x24x128xf32>
      %159 = vector.extract_strided_slice %158 {offsets = [0, 0, 0], sizes = [8, 16, 128], strides = [1, 1, 1]} : vector<8x24x128xf32> to vector<8x16x128xf32>
      %c2_73 = arith.constant 2 : index
      %c0_74 = arith.constant 0 : index
      %c0_75 = arith.constant 0 : index
      %160 = vector.load %arg3[%c2_73, %c0_74, %c0_75] : memref<7x7x128xf32, #tpu.memory_space<vmem>>, vector<1x1x128xf32>
      %161 = vector.shape_cast %160 : vector<1x1x128xf32> to vector<128xf32>
      %162 = vector.shape_cast %161 : vector<128xf32> to vector<1x1x128xf32>
      %163 = vector.broadcast %162 : vector<1x1x128xf32> to vector<8x16x128xf32>
      %164 = arith.mulf %159, %163 : vector<8x16x128xf32>
      %165 = arith.addf %153, %164 : vector<8x16x128xf32>
      %c23_i32_76 = arith.constant 23 : i32
      %166 = tpu.dynamic_rotate %158 by %c23_i32_76 dim 1 : vector<8x24x128xf32>, i32 -> vector<8x24x128xf32>
      %167 = vector.extract_strided_slice %166 {offsets = [0, 0, 0], sizes = [8, 16, 128], strides = [1, 1, 1]} : vector<8x24x128xf32> to vector<8x16x128xf32>
      %c2_77 = arith.constant 2 : index
      %c1_78 = arith.constant 1 : index
      %c0_79 = arith.constant 0 : index
      %168 = vector.load %arg3[%c2_77, %c1_78, %c0_79] : memref<7x7x128xf32, #tpu.memory_space<vmem>>, vector<1x1x128xf32>
      %169 = vector.shape_cast %168 : vector<1x1x128xf32> to vector<128xf32>
      %170 = vector.shape_cast %169 : vector<128xf32> to vector<1x1x128xf32>
      %171 = vector.broadcast %170 : vector<1x1x128xf32> to vector<8x16x128xf32>
      %172 = arith.mulf %167, %171 : vector<8x16x128xf32>
      %173 = arith.addf %165, %172 : vector<8x16x128xf32>
      %c22_i32_80 = arith.constant 22 : i32
      %174 = tpu.dynamic_rotate %158 by %c22_i32_80 dim 1 : vector<8x24x128xf32>, i32 -> vector<8x24x128xf32>
      %175 = vector.extract_strided_slice %174 {offsets = [0, 0, 0], sizes = [8, 16, 128], strides = [1, 1, 1]} : vector<8x24x128xf32> to vector<8x16x128xf32>
      %c2_81 = arith.constant 2 : index
      %c2_82 = arith.constant 2 : index
      %c0_83 = arith.constant 0 : index
      %176 = vector.load %arg3[%c2_81, %c2_82, %c0_83] : memref<7x7x128xf32, #tpu.memory_space<vmem>>, vector<1x1x128xf32>
      %177 = vector.shape_cast %176 : vector<1x1x128xf32> to vector<128xf32>
      %178 = vector.shape_cast %177 : vector<128xf32> to vector<1x1x128xf32>
      %179 = vector.broadcast %178 : vector<1x1x128xf32> to vector<8x16x128xf32>
      %180 = arith.mulf %175, %179 : vector<8x16x128xf32>
      %181 = arith.addf %173, %180 : vector<8x16x128xf32>
      %c21_i32_84 = arith.constant 21 : i32
      %182 = tpu.dynamic_rotate %158 by %c21_i32_84 dim 1 : vector<8x24x128xf32>, i32 -> vector<8x24x128xf32>
      %183 = vector.extract_strided_slice %182 {offsets = [0, 0, 0], sizes = [8, 16, 128], strides = [1, 1, 1]} : vector<8x24x128xf32> to vector<8x16x128xf32>
      %c2_85 = arith.constant 2 : index
      %c3_86 = arith.constant 3 : index
      %c0_87 = arith.constant 0 : index
      %184 = vector.load %arg3[%c2_85, %c3_86, %c0_87] : memref<7x7x128xf32, #tpu.memory_space<vmem>>, vector<1x1x128xf32>
      %185 = vector.shape_cast %184 : vector<1x1x128xf32> to vector<128xf32>
      %186 = vector.shape_cast %185 : vector<128xf32> to vector<1x1x128xf32>
      %187 = vector.broadcast %186 : vector<1x1x128xf32> to vector<8x16x128xf32>
      %188 = arith.mulf %183, %187 : vector<8x16x128xf32>
      %189 = arith.addf %181, %188 : vector<8x16x128xf32>
      %c20_i32_88 = arith.constant 20 : i32
      %190 = tpu.dynamic_rotate %158 by %c20_i32_88 dim 1 : vector<8x24x128xf32>, i32 -> vector<8x24x128xf32>
      %191 = vector.extract_strided_slice %190 {offsets = [0, 0, 0], sizes = [8, 16, 128], strides = [1, 1, 1]} : vector<8x24x128xf32> to vector<8x16x128xf32>
      %c2_89 = arith.constant 2 : index
      %c4_90 = arith.constant 4 : index
      %c0_91 = arith.constant 0 : index
      %192 = vector.load %arg3[%c2_89, %c4_90, %c0_91] : memref<7x7x128xf32, #tpu.memory_space<vmem>>, vector<1x1x128xf32>
      %193 = vector.shape_cast %192 : vector<1x1x128xf32> to vector<128xf32>
      %194 = vector.shape_cast %193 : vector<128xf32> to vector<1x1x128xf32>
      %195 = vector.broadcast %194 : vector<1x1x128xf32> to vector<8x16x128xf32>
      %196 = arith.mulf %191, %195 : vector<8x16x128xf32>
      %197 = arith.addf %189, %196 : vector<8x16x128xf32>
      %c19_i32_92 = arith.constant 19 : i32
      %198 = tpu.dynamic_rotate %158 by %c19_i32_92 dim 1 : vector<8x24x128xf32>, i32 -> vector<8x24x128xf32>
      %199 = vector.extract_strided_slice %198 {offsets = [0, 0, 0], sizes = [8, 16, 128], strides = [1, 1, 1]} : vector<8x24x128xf32> to vector<8x16x128xf32>
      %c2_93 = arith.constant 2 : index
      %c5_94 = arith.constant 5 : index
      %c0_95 = arith.constant 0 : index
      %200 = vector.load %arg3[%c2_93, %c5_94, %c0_95] : memref<7x7x128xf32, #tpu.memory_space<vmem>>, vector<1x1x128xf32>
      %201 = vector.shape_cast %200 : vector<1x1x128xf32> to vector<128xf32>
      %202 = vector.shape_cast %201 : vector<128xf32> to vector<1x1x128xf32>
      %203 = vector.broadcast %202 : vector<1x1x128xf32> to vector<8x16x128xf32>
      %204 = arith.mulf %199, %203 : vector<8x16x128xf32>
      %205 = arith.addf %197, %204 : vector<8x16x128xf32>
      %c18_i32_96 = arith.constant 18 : i32
      %206 = tpu.dynamic_rotate %158 by %c18_i32_96 dim 1 : vector<8x24x128xf32>, i32 -> vector<8x24x128xf32>
      %207 = vector.extract_strided_slice %206 {offsets = [0, 0, 0], sizes = [8, 16, 128], strides = [1, 1, 1]} : vector<8x24x128xf32> to vector<8x16x128xf32>
      %c2_97 = arith.constant 2 : index
      %c6_98 = arith.constant 6 : index
      %c0_99 = arith.constant 0 : index
      %208 = vector.load %arg3[%c2_97, %c6_98, %c0_99] : memref<7x7x128xf32, #tpu.memory_space<vmem>>, vector<1x1x128xf32>
      %209 = vector.shape_cast %208 : vector<1x1x128xf32> to vector<128xf32>
      %210 = vector.shape_cast %209 : vector<128xf32> to vector<1x1x128xf32>
      %211 = vector.broadcast %210 : vector<1x1x128xf32> to vector<8x16x128xf32>
      %212 = arith.mulf %207, %211 : vector<8x16x128xf32>
      %213 = arith.addf %205, %212 : vector<8x16x128xf32>
      %c3_i32 = arith.constant 3 : i32
      %214 = arith.addi %32, %c3_i32 : i32
      %215 = arith.index_cast %9 : i32 to index
      %216 = arith.index_cast %214 : i32 to index
      %c0_100 = arith.constant 0 : index
      %c0_101 = arith.constant 0 : index
      %217 = vector.load %arg8[%215, %216, %c0_100, %c0_101] : memref<2x22x24x128xf32, #tpu.memory_space<vmem>>, vector<1x8x24x128xf32>
      %218 = vector.shape_cast %217 : vector<1x8x24x128xf32> to vector<8x24x128xf32>
      %219 = vector.extract_strided_slice %218 {offsets = [0, 0, 0], sizes = [8, 16, 128], strides = [1, 1, 1]} : vector<8x24x128xf32> to vector<8x16x128xf32>
      %c3_102 = arith.constant 3 : index
      %c0_103 = arith.constant 0 : index
      %c0_104 = arith.constant 0 : index
      %220 = vector.load %arg3[%c3_102, %c0_103, %c0_104] : memref<7x7x128xf32, #tpu.memory_space<vmem>>, vector<1x1x128xf32>
      %221 = vector.shape_cast %220 : vector<1x1x128xf32> to vector<128xf32>
      %222 = vector.shape_cast %221 : vector<128xf32> to vector<1x1x128xf32>
      %223 = vector.broadcast %222 : vector<1x1x128xf32> to vector<8x16x128xf32>
      %224 = arith.mulf %219, %223 : vector<8x16x128xf32>
      %225 = arith.addf %213, %224 : vector<8x16x128xf32>
      %c23_i32_105 = arith.constant 23 : i32
      %226 = tpu.dynamic_rotate %218 by %c23_i32_105 dim 1 : vector<8x24x128xf32>, i32 -> vector<8x24x128xf32>
      %227 = vector.extract_strided_slice %226 {offsets = [0, 0, 0], sizes = [8, 16, 128], strides = [1, 1, 1]} : vector<8x24x128xf32> to vector<8x16x128xf32>
      %c3_106 = arith.constant 3 : index
      %c1_107 = arith.constant 1 : index
      %c0_108 = arith.constant 0 : index
      %228 = vector.load %arg3[%c3_106, %c1_107, %c0_108] : memref<7x7x128xf32, #tpu.memory_space<vmem>>, vector<1x1x128xf32>
      %229 = vector.shape_cast %228 : vector<1x1x128xf32> to vector<128xf32>
      %230 = vector.shape_cast %229 : vector<128xf32> to vector<1x1x128xf32>
      %231 = vector.broadcast %230 : vector<1x1x128xf32> to vector<8x16x128xf32>
      %232 = arith.mulf %227, %231 : vector<8x16x128xf32>
      %233 = arith.addf %225, %232 : vector<8x16x128xf32>
      %c22_i32_109 = arith.constant 22 : i32
      %234 = tpu.dynamic_rotate %218 by %c22_i32_109 dim 1 : vector<8x24x128xf32>, i32 -> vector<8x24x128xf32>
      %235 = vector.extract_strided_slice %234 {offsets = [0, 0, 0], sizes = [8, 16, 128], strides = [1, 1, 1]} : vector<8x24x128xf32> to vector<8x16x128xf32>
      %c3_110 = arith.constant 3 : index
      %c2_111 = arith.constant 2 : index
      %c0_112 = arith.constant 0 : index
      %236 = vector.load %arg3[%c3_110, %c2_111, %c0_112] : memref<7x7x128xf32, #tpu.memory_space<vmem>>, vector<1x1x128xf32>
      %237 = vector.shape_cast %236 : vector<1x1x128xf32> to vector<128xf32>
      %238 = vector.shape_cast %237 : vector<128xf32> to vector<1x1x128xf32>
      %239 = vector.broadcast %238 : vector<1x1x128xf32> to vector<8x16x128xf32>
      %240 = arith.mulf %235, %239 : vector<8x16x128xf32>
      %241 = arith.addf %233, %240 : vector<8x16x128xf32>
      %c21_i32_113 = arith.constant 21 : i32
      %242 = tpu.dynamic_rotate %218 by %c21_i32_113 dim 1 : vector<8x24x128xf32>, i32 -> vector<8x24x128xf32>
      %243 = vector.extract_strided_slice %242 {offsets = [0, 0, 0], sizes = [8, 16, 128], strides = [1, 1, 1]} : vector<8x24x128xf32> to vector<8x16x128xf32>
      %c3_114 = arith.constant 3 : index
      %c3_115 = arith.constant 3 : index
      %c0_116 = arith.constant 0 : index
      %244 = vector.load %arg3[%c3_114, %c3_115, %c0_116] : memref<7x7x128xf32, #tpu.memory_space<vmem>>, vector<1x1x128xf32>
      %245 = vector.shape_cast %244 : vector<1x1x128xf32> to vector<128xf32>
      %246 = vector.shape_cast %245 : vector<128xf32> to vector<1x1x128xf32>
      %247 = vector.broadcast %246 : vector<1x1x128xf32> to vector<8x16x128xf32>
      %248 = arith.mulf %243, %247 : vector<8x16x128xf32>
      %249 = arith.addf %241, %248 : vector<8x16x128xf32>
      %c20_i32_117 = arith.constant 20 : i32
      %250 = tpu.dynamic_rotate %218 by %c20_i32_117 dim 1 : vector<8x24x128xf32>, i32 -> vector<8x24x128xf32>
      %251 = vector.extract_strided_slice %250 {offsets = [0, 0, 0], sizes = [8, 16, 128], strides = [1, 1, 1]} : vector<8x24x128xf32> to vector<8x16x128xf32>
      %c3_118 = arith.constant 3 : index
      %c4_119 = arith.constant 4 : index
      %c0_120 = arith.constant 0 : index
      %252 = vector.load %arg3[%c3_118, %c4_119, %c0_120] : memref<7x7x128xf32, #tpu.memory_space<vmem>>, vector<1x1x128xf32>
      %253 = vector.shape_cast %252 : vector<1x1x128xf32> to vector<128xf32>
      %254 = vector.shape_cast %253 : vector<128xf32> to vector<1x1x128xf32>
      %255 = vector.broadcast %254 : vector<1x1x128xf32> to vector<8x16x128xf32>
      %256 = arith.mulf %251, %255 : vector<8x16x128xf32>
      %257 = arith.addf %249, %256 : vector<8x16x128xf32>
      %c19_i32_121 = arith.constant 19 : i32
      %258 = tpu.dynamic_rotate %218 by %c19_i32_121 dim 1 : vector<8x24x128xf32>, i32 -> vector<8x24x128xf32>
      %259 = vector.extract_strided_slice %258 {offsets = [0, 0, 0], sizes = [8, 16, 128], strides = [1, 1, 1]} : vector<8x24x128xf32> to vector<8x16x128xf32>
      %c3_122 = arith.constant 3 : index
      %c5_123 = arith.constant 5 : index
      %c0_124 = arith.constant 0 : index
      %260 = vector.load %arg3[%c3_122, %c5_123, %c0_124] : memref<7x7x128xf32, #tpu.memory_space<vmem>>, vector<1x1x128xf32>
      %261 = vector.shape_cast %260 : vector<1x1x128xf32> to vector<128xf32>
      %262 = vector.shape_cast %261 : vector<128xf32> to vector<1x1x128xf32>
      %263 = vector.broadcast %262 : vector<1x1x128xf32> to vector<8x16x128xf32>
      %264 = arith.mulf %259, %263 : vector<8x16x128xf32>
      %265 = arith.addf %257, %264 : vector<8x16x128xf32>
      %c18_i32_125 = arith.constant 18 : i32
      %266 = tpu.dynamic_rotate %218 by %c18_i32_125 dim 1 : vector<8x24x128xf32>, i32 -> vector<8x24x128xf32>
      %267 = vector.extract_strided_slice %266 {offsets = [0, 0, 0], sizes = [8, 16, 128], strides = [1, 1, 1]} : vector<8x24x128xf32> to vector<8x16x128xf32>
      %c3_126 = arith.constant 3 : index
      %c6_127 = arith.constant 6 : index
      %c0_128 = arith.constant 0 : index
      %268 = vector.load %arg3[%c3_126, %c6_127, %c0_128] : memref<7x7x128xf32, #tpu.memory_space<vmem>>, vector<1x1x128xf32>
      %269 = vector.shape_cast %268 : vector<1x1x128xf32> to vector<128xf32>
      %270 = vector.shape_cast %269 : vector<128xf32> to vector<1x1x128xf32>
      %271 = vector.broadcast %270 : vector<1x1x128xf32> to vector<8x16x128xf32>
      %272 = arith.mulf %267, %271 : vector<8x16x128xf32>
      %273 = arith.addf %265, %272 : vector<8x16x128xf32>
      %c4_i32 = arith.constant 4 : i32
      %274 = arith.addi %32, %c4_i32 : i32
      %275 = arith.index_cast %9 : i32 to index
      %276 = arith.index_cast %274 : i32 to index
      %c0_129 = arith.constant 0 : index
      %c0_130 = arith.constant 0 : index
      %277 = vector.load %arg8[%275, %276, %c0_129, %c0_130] : memref<2x22x24x128xf32, #tpu.memory_space<vmem>>, vector<1x8x24x128xf32>
      %278 = vector.shape_cast %277 : vector<1x8x24x128xf32> to vector<8x24x128xf32>
      %279 = vector.extract_strided_slice %278 {offsets = [0, 0, 0], sizes = [8, 16, 128], strides = [1, 1, 1]} : vector<8x24x128xf32> to vector<8x16x128xf32>
      %c4_131 = arith.constant 4 : index
      %c0_132 = arith.constant 0 : index
      %c0_133 = arith.constant 0 : index
      %280 = vector.load %arg3[%c4_131, %c0_132, %c0_133] : memref<7x7x128xf32, #tpu.memory_space<vmem>>, vector<1x1x128xf32>
      %281 = vector.shape_cast %280 : vector<1x1x128xf32> to vector<128xf32>
      %282 = vector.shape_cast %281 : vector<128xf32> to vector<1x1x128xf32>
      %283 = vector.broadcast %282 : vector<1x1x128xf32> to vector<8x16x128xf32>
      %284 = arith.mulf %279, %283 : vector<8x16x128xf32>
      %285 = arith.addf %273, %284 : vector<8x16x128xf32>
      %c23_i32_134 = arith.constant 23 : i32
      %286 = tpu.dynamic_rotate %278 by %c23_i32_134 dim 1 : vector<8x24x128xf32>, i32 -> vector<8x24x128xf32>
      %287 = vector.extract_strided_slice %286 {offsets = [0, 0, 0], sizes = [8, 16, 128], strides = [1, 1, 1]} : vector<8x24x128xf32> to vector<8x16x128xf32>
      %c4_135 = arith.constant 4 : index
      %c1_136 = arith.constant 1 : index
      %c0_137 = arith.constant 0 : index
      %288 = vector.load %arg3[%c4_135, %c1_136, %c0_137] : memref<7x7x128xf32, #tpu.memory_space<vmem>>, vector<1x1x128xf32>
      %289 = vector.shape_cast %288 : vector<1x1x128xf32> to vector<128xf32>
      %290 = vector.shape_cast %289 : vector<128xf32> to vector<1x1x128xf32>
      %291 = vector.broadcast %290 : vector<1x1x128xf32> to vector<8x16x128xf32>
      %292 = arith.mulf %287, %291 : vector<8x16x128xf32>
      %293 = arith.addf %285, %292 : vector<8x16x128xf32>
      %c22_i32_138 = arith.constant 22 : i32
      %294 = tpu.dynamic_rotate %278 by %c22_i32_138 dim 1 : vector<8x24x128xf32>, i32 -> vector<8x24x128xf32>
      %295 = vector.extract_strided_slice %294 {offsets = [0, 0, 0], sizes = [8, 16, 128], strides = [1, 1, 1]} : vector<8x24x128xf32> to vector<8x16x128xf32>
      %c4_139 = arith.constant 4 : index
      %c2_140 = arith.constant 2 : index
      %c0_141 = arith.constant 0 : index
      %296 = vector.load %arg3[%c4_139, %c2_140, %c0_141] : memref<7x7x128xf32, #tpu.memory_space<vmem>>, vector<1x1x128xf32>
      %297 = vector.shape_cast %296 : vector<1x1x128xf32> to vector<128xf32>
      %298 = vector.shape_cast %297 : vector<128xf32> to vector<1x1x128xf32>
      %299 = vector.broadcast %298 : vector<1x1x128xf32> to vector<8x16x128xf32>
      %300 = arith.mulf %295, %299 : vector<8x16x128xf32>
      %301 = arith.addf %293, %300 : vector<8x16x128xf32>
      %c21_i32_142 = arith.constant 21 : i32
      %302 = tpu.dynamic_rotate %278 by %c21_i32_142 dim 1 : vector<8x24x128xf32>, i32 -> vector<8x24x128xf32>
      %303 = vector.extract_strided_slice %302 {offsets = [0, 0, 0], sizes = [8, 16, 128], strides = [1, 1, 1]} : vector<8x24x128xf32> to vector<8x16x128xf32>
      %c4_143 = arith.constant 4 : index
      %c3_144 = arith.constant 3 : index
      %c0_145 = arith.constant 0 : index
      %304 = vector.load %arg3[%c4_143, %c3_144, %c0_145] : memref<7x7x128xf32, #tpu.memory_space<vmem>>, vector<1x1x128xf32>
      %305 = vector.shape_cast %304 : vector<1x1x128xf32> to vector<128xf32>
      %306 = vector.shape_cast %305 : vector<128xf32> to vector<1x1x128xf32>
      %307 = vector.broadcast %306 : vector<1x1x128xf32> to vector<8x16x128xf32>
      %308 = arith.mulf %303, %307 : vector<8x16x128xf32>
      %309 = arith.addf %301, %308 : vector<8x16x128xf32>
      %c20_i32_146 = arith.constant 20 : i32
      %310 = tpu.dynamic_rotate %278 by %c20_i32_146 dim 1 : vector<8x24x128xf32>, i32 -> vector<8x24x128xf32>
      %311 = vector.extract_strided_slice %310 {offsets = [0, 0, 0], sizes = [8, 16, 128], strides = [1, 1, 1]} : vector<8x24x128xf32> to vector<8x16x128xf32>
      %c4_147 = arith.constant 4 : index
      %c4_148 = arith.constant 4 : index
      %c0_149 = arith.constant 0 : index
      %312 = vector.load %arg3[%c4_147, %c4_148, %c0_149] : memref<7x7x128xf32, #tpu.memory_space<vmem>>, vector<1x1x128xf32>
      %313 = vector.shape_cast %312 : vector<1x1x128xf32> to vector<128xf32>
      %314 = vector.shape_cast %313 : vector<128xf32> to vector<1x1x128xf32>
      %315 = vector.broadcast %314 : vector<1x1x128xf32> to vector<8x16x128xf32>
      %316 = arith.mulf %311, %315 : vector<8x16x128xf32>
      %317 = arith.addf %309, %316 : vector<8x16x128xf32>
      %c19_i32_150 = arith.constant 19 : i32
      %318 = tpu.dynamic_rotate %278 by %c19_i32_150 dim 1 : vector<8x24x128xf32>, i32 -> vector<8x24x128xf32>
      %319 = vector.extract_strided_slice %318 {offsets = [0, 0, 0], sizes = [8, 16, 128], strides = [1, 1, 1]} : vector<8x24x128xf32> to vector<8x16x128xf32>
      %c4_151 = arith.constant 4 : index
      %c5_152 = arith.constant 5 : index
      %c0_153 = arith.constant 0 : index
      %320 = vector.load %arg3[%c4_151, %c5_152, %c0_153] : memref<7x7x128xf32, #tpu.memory_space<vmem>>, vector<1x1x128xf32>
      %321 = vector.shape_cast %320 : vector<1x1x128xf32> to vector<128xf32>
      %322 = vector.shape_cast %321 : vector<128xf32> to vector<1x1x128xf32>
      %323 = vector.broadcast %322 : vector<1x1x128xf32> to vector<8x16x128xf32>
      %324 = arith.mulf %319, %323 : vector<8x16x128xf32>
      %325 = arith.addf %317, %324 : vector<8x16x128xf32>
      %c18_i32_154 = arith.constant 18 : i32
      %326 = tpu.dynamic_rotate %278 by %c18_i32_154 dim 1 : vector<8x24x128xf32>, i32 -> vector<8x24x128xf32>
      %327 = vector.extract_strided_slice %326 {offsets = [0, 0, 0], sizes = [8, 16, 128], strides = [1, 1, 1]} : vector<8x24x128xf32> to vector<8x16x128xf32>
      %c4_155 = arith.constant 4 : index
      %c6_156 = arith.constant 6 : index
      %c0_157 = arith.constant 0 : index
      %328 = vector.load %arg3[%c4_155, %c6_156, %c0_157] : memref<7x7x128xf32, #tpu.memory_space<vmem>>, vector<1x1x128xf32>
      %329 = vector.shape_cast %328 : vector<1x1x128xf32> to vector<128xf32>
      %330 = vector.shape_cast %329 : vector<128xf32> to vector<1x1x128xf32>
      %331 = vector.broadcast %330 : vector<1x1x128xf32> to vector<8x16x128xf32>
      %332 = arith.mulf %327, %331 : vector<8x16x128xf32>
      %333 = arith.addf %325, %332 : vector<8x16x128xf32>
      %c5_i32 = arith.constant 5 : i32
      %334 = arith.addi %32, %c5_i32 : i32
      %335 = arith.index_cast %9 : i32 to index
      %336 = arith.index_cast %334 : i32 to index
      %c0_158 = arith.constant 0 : index
      %c0_159 = arith.constant 0 : index
      %337 = vector.load %arg8[%335, %336, %c0_158, %c0_159] : memref<2x22x24x128xf32, #tpu.memory_space<vmem>>, vector<1x8x24x128xf32>
      %338 = vector.shape_cast %337 : vector<1x8x24x128xf32> to vector<8x24x128xf32>
      %339 = vector.extract_strided_slice %338 {offsets = [0, 0, 0], sizes = [8, 16, 128], strides = [1, 1, 1]} : vector<8x24x128xf32> to vector<8x16x128xf32>
      %c5_160 = arith.constant 5 : index
      %c0_161 = arith.constant 0 : index
      %c0_162 = arith.constant 0 : index
      %340 = vector.load %arg3[%c5_160, %c0_161, %c0_162] : memref<7x7x128xf32, #tpu.memory_space<vmem>>, vector<1x1x128xf32>
      %341 = vector.shape_cast %340 : vector<1x1x128xf32> to vector<128xf32>
      %342 = vector.shape_cast %341 : vector<128xf32> to vector<1x1x128xf32>
      %343 = vector.broadcast %342 : vector<1x1x128xf32> to vector<8x16x128xf32>
      %344 = arith.mulf %339, %343 : vector<8x16x128xf32>
      %345 = arith.addf %333, %344 : vector<8x16x128xf32>
      %c23_i32_163 = arith.constant 23 : i32
      %346 = tpu.dynamic_rotate %338 by %c23_i32_163 dim 1 : vector<8x24x128xf32>, i32 -> vector<8x24x128xf32>
      %347 = vector.extract_strided_slice %346 {offsets = [0, 0, 0], sizes = [8, 16, 128], strides = [1, 1, 1]} : vector<8x24x128xf32> to vector<8x16x128xf32>
      %c5_164 = arith.constant 5 : index
      %c1_165 = arith.constant 1 : index
      %c0_166 = arith.constant 0 : index
      %348 = vector.load %arg3[%c5_164, %c1_165, %c0_166] : memref<7x7x128xf32, #tpu.memory_space<vmem>>, vector<1x1x128xf32>
      %349 = vector.shape_cast %348 : vector<1x1x128xf32> to vector<128xf32>
      %350 = vector.shape_cast %349 : vector<128xf32> to vector<1x1x128xf32>
      %351 = vector.broadcast %350 : vector<1x1x128xf32> to vector<8x16x128xf32>
      %352 = arith.mulf %347, %351 : vector<8x16x128xf32>
      %353 = arith.addf %345, %352 : vector<8x16x128xf32>
      %c22_i32_167 = arith.constant 22 : i32
      %354 = tpu.dynamic_rotate %338 by %c22_i32_167 dim 1 : vector<8x24x128xf32>, i32 -> vector<8x24x128xf32>
      %355 = vector.extract_strided_slice %354 {offsets = [0, 0, 0], sizes = [8, 16, 128], strides = [1, 1, 1]} : vector<8x24x128xf32> to vector<8x16x128xf32>
      %c5_168 = arith.constant 5 : index
      %c2_169 = arith.constant 2 : index
      %c0_170 = arith.constant 0 : index
      %356 = vector.load %arg3[%c5_168, %c2_169, %c0_170] : memref<7x7x128xf32, #tpu.memory_space<vmem>>, vector<1x1x128xf32>
      %357 = vector.shape_cast %356 : vector<1x1x128xf32> to vector<128xf32>
      %358 = vector.shape_cast %357 : vector<128xf32> to vector<1x1x128xf32>
      %359 = vector.broadcast %358 : vector<1x1x128xf32> to vector<8x16x128xf32>
      %360 = arith.mulf %355, %359 : vector<8x16x128xf32>
      %361 = arith.addf %353, %360 : vector<8x16x128xf32>
      %c21_i32_171 = arith.constant 21 : i32
      %362 = tpu.dynamic_rotate %338 by %c21_i32_171 dim 1 : vector<8x24x128xf32>, i32 -> vector<8x24x128xf32>
      %363 = vector.extract_strided_slice %362 {offsets = [0, 0, 0], sizes = [8, 16, 128], strides = [1, 1, 1]} : vector<8x24x128xf32> to vector<8x16x128xf32>
      %c5_172 = arith.constant 5 : index
      %c3_173 = arith.constant 3 : index
      %c0_174 = arith.constant 0 : index
      %364 = vector.load %arg3[%c5_172, %c3_173, %c0_174] : memref<7x7x128xf32, #tpu.memory_space<vmem>>, vector<1x1x128xf32>
      %365 = vector.shape_cast %364 : vector<1x1x128xf32> to vector<128xf32>
      %366 = vector.shape_cast %365 : vector<128xf32> to vector<1x1x128xf32>
      %367 = vector.broadcast %366 : vector<1x1x128xf32> to vector<8x16x128xf32>
      %368 = arith.mulf %363, %367 : vector<8x16x128xf32>
      %369 = arith.addf %361, %368 : vector<8x16x128xf32>
      %c20_i32_175 = arith.constant 20 : i32
      %370 = tpu.dynamic_rotate %338 by %c20_i32_175 dim 1 : vector<8x24x128xf32>, i32 -> vector<8x24x128xf32>
      %371 = vector.extract_strided_slice %370 {offsets = [0, 0, 0], sizes = [8, 16, 128], strides = [1, 1, 1]} : vector<8x24x128xf32> to vector<8x16x128xf32>
      %c5_176 = arith.constant 5 : index
      %c4_177 = arith.constant 4 : index
      %c0_178 = arith.constant 0 : index
      %372 = vector.load %arg3[%c5_176, %c4_177, %c0_178] : memref<7x7x128xf32, #tpu.memory_space<vmem>>, vector<1x1x128xf32>
      %373 = vector.shape_cast %372 : vector<1x1x128xf32> to vector<128xf32>
      %374 = vector.shape_cast %373 : vector<128xf32> to vector<1x1x128xf32>
      %375 = vector.broadcast %374 : vector<1x1x128xf32> to vector<8x16x128xf32>
      %376 = arith.mulf %371, %375 : vector<8x16x128xf32>
      %377 = arith.addf %369, %376 : vector<8x16x128xf32>
      %c19_i32_179 = arith.constant 19 : i32
      %378 = tpu.dynamic_rotate %338 by %c19_i32_179 dim 1 : vector<8x24x128xf32>, i32 -> vector<8x24x128xf32>
      %379 = vector.extract_strided_slice %378 {offsets = [0, 0, 0], sizes = [8, 16, 128], strides = [1, 1, 1]} : vector<8x24x128xf32> to vector<8x16x128xf32>
      %c5_180 = arith.constant 5 : index
      %c5_181 = arith.constant 5 : index
      %c0_182 = arith.constant 0 : index
      %380 = vector.load %arg3[%c5_180, %c5_181, %c0_182] : memref<7x7x128xf32, #tpu.memory_space<vmem>>, vector<1x1x128xf32>
      %381 = vector.shape_cast %380 : vector<1x1x128xf32> to vector<128xf32>
      %382 = vector.shape_cast %381 : vector<128xf32> to vector<1x1x128xf32>
      %383 = vector.broadcast %382 : vector<1x1x128xf32> to vector<8x16x128xf32>
      %384 = arith.mulf %379, %383 : vector<8x16x128xf32>
      %385 = arith.addf %377, %384 : vector<8x16x128xf32>
      %c18_i32_183 = arith.constant 18 : i32
      %386 = tpu.dynamic_rotate %338 by %c18_i32_183 dim 1 : vector<8x24x128xf32>, i32 -> vector<8x24x128xf32>
      %387 = vector.extract_strided_slice %386 {offsets = [0, 0, 0], sizes = [8, 16, 128], strides = [1, 1, 1]} : vector<8x24x128xf32> to vector<8x16x128xf32>
      %c5_184 = arith.constant 5 : index
      %c6_185 = arith.constant 6 : index
      %c0_186 = arith.constant 0 : index
      %388 = vector.load %arg3[%c5_184, %c6_185, %c0_186] : memref<7x7x128xf32, #tpu.memory_space<vmem>>, vector<1x1x128xf32>
      %389 = vector.shape_cast %388 : vector<1x1x128xf32> to vector<128xf32>
      %390 = vector.shape_cast %389 : vector<128xf32> to vector<1x1x128xf32>
      %391 = vector.broadcast %390 : vector<1x1x128xf32> to vector<8x16x128xf32>
      %392 = arith.mulf %387, %391 : vector<8x16x128xf32>
      %393 = arith.addf %385, %392 : vector<8x16x128xf32>
      %c6_i32 = arith.constant 6 : i32
      %394 = arith.addi %32, %c6_i32 : i32
      %395 = arith.index_cast %9 : i32 to index
      %396 = arith.index_cast %394 : i32 to index
      %c0_187 = arith.constant 0 : index
      %c0_188 = arith.constant 0 : index
      %397 = vector.load %arg8[%395, %396, %c0_187, %c0_188] : memref<2x22x24x128xf32, #tpu.memory_space<vmem>>, vector<1x8x24x128xf32>
      %398 = vector.shape_cast %397 : vector<1x8x24x128xf32> to vector<8x24x128xf32>
      %399 = vector.extract_strided_slice %398 {offsets = [0, 0, 0], sizes = [8, 16, 128], strides = [1, 1, 1]} : vector<8x24x128xf32> to vector<8x16x128xf32>
      %c6_189 = arith.constant 6 : index
      %c0_190 = arith.constant 0 : index
      %c0_191 = arith.constant 0 : index
      %400 = vector.load %arg3[%c6_189, %c0_190, %c0_191] : memref<7x7x128xf32, #tpu.memory_space<vmem>>, vector<1x1x128xf32>
      %401 = vector.shape_cast %400 : vector<1x1x128xf32> to vector<128xf32>
      %402 = vector.shape_cast %401 : vector<128xf32> to vector<1x1x128xf32>
      %403 = vector.broadcast %402 : vector<1x1x128xf32> to vector<8x16x128xf32>
      %404 = arith.mulf %399, %403 : vector<8x16x128xf32>
      %405 = arith.addf %393, %404 : vector<8x16x128xf32>
      %c23_i32_192 = arith.constant 23 : i32
      %406 = tpu.dynamic_rotate %398 by %c23_i32_192 dim 1 : vector<8x24x128xf32>, i32 -> vector<8x24x128xf32>
      %407 = vector.extract_strided_slice %406 {offsets = [0, 0, 0], sizes = [8, 16, 128], strides = [1, 1, 1]} : vector<8x24x128xf32> to vector<8x16x128xf32>
      %c6_193 = arith.constant 6 : index
      %c1_194 = arith.constant 1 : index
      %c0_195 = arith.constant 0 : index
      %408 = vector.load %arg3[%c6_193, %c1_194, %c0_195] : memref<7x7x128xf32, #tpu.memory_space<vmem>>, vector<1x1x128xf32>
      %409 = vector.shape_cast %408 : vector<1x1x128xf32> to vector<128xf32>
      %410 = vector.shape_cast %409 : vector<128xf32> to vector<1x1x128xf32>
      %411 = vector.broadcast %410 : vector<1x1x128xf32> to vector<8x16x128xf32>
      %412 = arith.mulf %407, %411 : vector<8x16x128xf32>
      %413 = arith.addf %405, %412 : vector<8x16x128xf32>
      %c22_i32_196 = arith.constant 22 : i32
      %414 = tpu.dynamic_rotate %398 by %c22_i32_196 dim 1 : vector<8x24x128xf32>, i32 -> vector<8x24x128xf32>
      %415 = vector.extract_strided_slice %414 {offsets = [0, 0, 0], sizes = [8, 16, 128], strides = [1, 1, 1]} : vector<8x24x128xf32> to vector<8x16x128xf32>
      %c6_197 = arith.constant 6 : index
      %c2_198 = arith.constant 2 : index
      %c0_199 = arith.constant 0 : index
      %416 = vector.load %arg3[%c6_197, %c2_198, %c0_199] : memref<7x7x128xf32, #tpu.memory_space<vmem>>, vector<1x1x128xf32>
      %417 = vector.shape_cast %416 : vector<1x1x128xf32> to vector<128xf32>
      %418 = vector.shape_cast %417 : vector<128xf32> to vector<1x1x128xf32>
      %419 = vector.broadcast %418 : vector<1x1x128xf32> to vector<8x16x128xf32>
      %420 = arith.mulf %415, %419 : vector<8x16x128xf32>
      %421 = arith.addf %413, %420 : vector<8x16x128xf32>
      %c21_i32_200 = arith.constant 21 : i32
      %422 = tpu.dynamic_rotate %398 by %c21_i32_200 dim 1 : vector<8x24x128xf32>, i32 -> vector<8x24x128xf32>
      %423 = vector.extract_strided_slice %422 {offsets = [0, 0, 0], sizes = [8, 16, 128], strides = [1, 1, 1]} : vector<8x24x128xf32> to vector<8x16x128xf32>
      %c6_201 = arith.constant 6 : index
      %c3_202 = arith.constant 3 : index
      %c0_203 = arith.constant 0 : index
      %424 = vector.load %arg3[%c6_201, %c3_202, %c0_203] : memref<7x7x128xf32, #tpu.memory_space<vmem>>, vector<1x1x128xf32>
      %425 = vector.shape_cast %424 : vector<1x1x128xf32> to vector<128xf32>
      %426 = vector.shape_cast %425 : vector<128xf32> to vector<1x1x128xf32>
      %427 = vector.broadcast %426 : vector<1x1x128xf32> to vector<8x16x128xf32>
      %428 = arith.mulf %423, %427 : vector<8x16x128xf32>
      %429 = arith.addf %421, %428 : vector<8x16x128xf32>
      %c20_i32_204 = arith.constant 20 : i32
      %430 = tpu.dynamic_rotate %398 by %c20_i32_204 dim 1 : vector<8x24x128xf32>, i32 -> vector<8x24x128xf32>
      %431 = vector.extract_strided_slice %430 {offsets = [0, 0, 0], sizes = [8, 16, 128], strides = [1, 1, 1]} : vector<8x24x128xf32> to vector<8x16x128xf32>
      %c6_205 = arith.constant 6 : index
      %c4_206 = arith.constant 4 : index
      %c0_207 = arith.constant 0 : index
      %432 = vector.load %arg3[%c6_205, %c4_206, %c0_207] : memref<7x7x128xf32, #tpu.memory_space<vmem>>, vector<1x1x128xf32>
      %433 = vector.shape_cast %432 : vector<1x1x128xf32> to vector<128xf32>
      %434 = vector.shape_cast %433 : vector<128xf32> to vector<1x1x128xf32>
      %435 = vector.broadcast %434 : vector<1x1x128xf32> to vector<8x16x128xf32>
      %436 = arith.mulf %431, %435 : vector<8x16x128xf32>
      %437 = arith.addf %429, %436 : vector<8x16x128xf32>
      %c19_i32_208 = arith.constant 19 : i32
      %438 = tpu.dynamic_rotate %398 by %c19_i32_208 dim 1 : vector<8x24x128xf32>, i32 -> vector<8x24x128xf32>
      %439 = vector.extract_strided_slice %438 {offsets = [0, 0, 0], sizes = [8, 16, 128], strides = [1, 1, 1]} : vector<8x24x128xf32> to vector<8x16x128xf32>
      %c6_209 = arith.constant 6 : index
      %c5_210 = arith.constant 5 : index
      %c0_211 = arith.constant 0 : index
      %440 = vector.load %arg3[%c6_209, %c5_210, %c0_211] : memref<7x7x128xf32, #tpu.memory_space<vmem>>, vector<1x1x128xf32>
      %441 = vector.shape_cast %440 : vector<1x1x128xf32> to vector<128xf32>
      %442 = vector.shape_cast %441 : vector<128xf32> to vector<1x1x128xf32>
      %443 = vector.broadcast %442 : vector<1x1x128xf32> to vector<8x16x128xf32>
      %444 = arith.mulf %439, %443 : vector<8x16x128xf32>
      %445 = arith.addf %437, %444 : vector<8x16x128xf32>
      %c18_i32_212 = arith.constant 18 : i32
      %446 = tpu.dynamic_rotate %398 by %c18_i32_212 dim 1 : vector<8x24x128xf32>, i32 -> vector<8x24x128xf32>
      %447 = vector.extract_strided_slice %446 {offsets = [0, 0, 0], sizes = [8, 16, 128], strides = [1, 1, 1]} : vector<8x24x128xf32> to vector<8x16x128xf32>
      %c6_213 = arith.constant 6 : index
      %c6_214 = arith.constant 6 : index
      %c0_215 = arith.constant 0 : index
      %448 = vector.load %arg3[%c6_213, %c6_214, %c0_215] : memref<7x7x128xf32, #tpu.memory_space<vmem>>, vector<1x1x128xf32>
      %449 = vector.shape_cast %448 : vector<1x1x128xf32> to vector<128xf32>
      %450 = vector.shape_cast %449 : vector<128xf32> to vector<1x1x128xf32>
      %451 = vector.broadcast %450 : vector<1x1x128xf32> to vector<8x16x128xf32>
      %452 = arith.mulf %447, %451 : vector<8x16x128xf32>
      %453 = arith.addf %445, %452 : vector<8x16x128xf32>
      %454 = vector.shape_cast %25 : vector<128xf32> to vector<1x1x128xf32>
      %455 = vector.broadcast %454 : vector<1x1x128xf32> to vector<8x16x128xf32>
      %456 = arith.addf %453, %455 : vector<8x16x128xf32>
      %457 = vector.shape_cast %456 : vector<8x16x128xf32> to vector<128x128xf32>
      %458 = arith.truncf %457 : vector<128x128xf32> to vector<128x128xbf16>
      %c0_216 = arith.constant 0 : index
      %c0_217 = arith.constant 0 : index
      %459 = vector.load %arg5[%c0_216, %c0_217] : memref<128x128xbf16, #tpu.memory_space<vmem>>, vector<128x128xbf16>
      %cst_218 = arith.constant dense<0.000000e+00> : vector<128x128xf32>
      %460 = tpu.matmul %458, %459, %cst_218 {dimension_numbers = #tpu.dot_dimension_numbers<[1], [0], [0], [1], [0, 0, 1, 1], [], []>} : vector<128x128xbf16>, vector<128x128xbf16>, vector<128x128xf32> -> vector<128x128xf32>
      %461 = vector.shape_cast %460 : vector<128x128xf32> to vector<8x16x128xf32>
      %462 = arith.addf %456, %461 : vector<8x16x128xf32>
      %463 = vector.shape_cast %27 : vector<128xf32> to vector<1x1x128xf32>
      %464 = vector.broadcast %463 : vector<1x1x128xf32> to vector<8x16x128xf32>
      %465 = arith.addf %462, %464 : vector<8x16x128xf32>
      %c0_219 = arith.constant 0 : index
      %466 = arith.index_cast %32 : i32 to index
      %c0_220 = arith.constant 0 : index
      %c0_221 = arith.constant 0 : index
      %467 = vector.load %arg7[%c0_219, %466, %c0_220, %c0_221] : memref<1x16x16x128xf32, #tpu.memory_space<vmem>>, vector<1x8x16x128xf32>
      %468 = vector.shape_cast %467 : vector<1x8x16x128xf32> to vector<8x16x128xf32>
      %469 = vector.shape_cast %465 : vector<8x16x128xf32> to vector<1x8x16x128xf32>
      tpu.vector_store %arg7[%c0_219, %466, %c0_220, %c0_221], %469 {strides = array<i32>} : memref<1x16x16x128xf32, #tpu.memory_space<vmem>>, vector<1x8x16x128xf32>,
    }
    %c2_i32_19 = arith.constant 2 : i32
    return
  }
  func.func @transform_1(%arg0: i32, %arg1: i32) -> (i32, i32, i32) {
    %c0_i32 = arith.constant 0 : i32
    %c0_i32_0 = arith.constant 0 : i32
    %c0_i32_1 = arith.constant 0 : i32
    %c0_i32_2 = arith.constant 0 : i32
    return %c0_i32, %c0_i32_0, %c0_i32_1 : i32, i32, i32
  }
  func.func @transform_2(%arg0: i32, %arg1: i32) -> (i32, i32) {
    %c0_i32 = arith.constant 0 : i32
    %c0_i32_0 = arith.constant 0 : i32
    %c0_i32_1 = arith.constant 0 : i32
    return %c0_i32, %c0_i32_0 : i32, i32
  }
  func.func @transform_3(%arg0: i32, %arg1: i32) -> (i32, i32) {
    %c0_i32 = arith.constant 0 : i32
    %c0_i32_0 = arith.constant 0 : i32
    %c0_i32_1 = arith.constant 0 : i32
    return %c0_i32, %c0_i32_0 : i32, i32
  }
  func.func @transform_4(%arg0: i32, %arg1: i32) -> (i32, i32) {
    %c0_i32 = arith.constant 0 : i32
    %c0_i32_0 = arith.constant 0 : i32
    %c0_i32_1 = arith.constant 0 : i32
    return %c0_i32, %c0_i32_0 : i32, i32
  }
  func.func @transform_5(%arg0: i32, %arg1: i32) -> (i32, i32, i32, i32) {
    %c0_i32 = arith.constant 0 : i32
    %c0_i32_0 = arith.constant 0 : i32
    %c0_i32_1 = arith.constant 0 : i32
    return %arg0, %arg1, %c0_i32, %c0_i32_0 : i32, i32, i32, i32
  }
}

</mosaic_0001>

<llo_original>
// kernel: tpu_custom_call.1
$region0: #{tpu_custom_call.1}
  #allocation0 [shape = 'u32[]', space=smem, size = 0x4, offset = 0x4, fixed_abs, tag = 'smem constant byte address 0x4 - core index']
  #allocation1 [shape = 'u32[144,128]{1,0:T(1,128)}', space=vmem, size = 0x12000, scoped, tag = 'internal scratch']
  #allocation2 [shape = 'f32[2,22,24,128]{3,2,1,0:T(8,128)}', space=vmem, size = 0x84000, scoped, tag = 'scratch operand']
  #allocation3 [shape = 's32[2]{0}', space=sflag, size = 0x8, scoped, tag = 'scratch operand']
  #allocation10 [shape = 's32[]', space=sflag, size = 0x4, offset = 0, fixed_abs, tag = 'sflag constant byte address 0x0 - dummy sync flag']
  #allocation11 [shape = 's32[]', space=sflag, size = 0x4, offset = 0, fixed_abs, tag = 'sflag constant byte address 0x0 - dummy sync flag']
  #allocation12 [shape = 'u32[]', space=smem, size = 0x4, offset = 0x44, fixed_abs, tag = 'smem constant byte address 0x44 - assertion arg 0']
  #allocation13 [shape = 'u32[]', space=smem, size = 0x4, offset = 0x48, fixed_abs, tag = 'smem constant byte address 0x48 - assertion arg 1']
  #allocation14 [shape = 's32[]', space=sflag, size = 0x4, offset = 0, fixed_abs, tag = 'sflag constant byte address 0x0 - dummy sync flag']
  #allocation15 [shape = 's32[]', space=sflag, size = 0x4, offset = 0, fixed_abs, tag = 'sflag constant byte address 0x0 - dummy sync flag']
  %s0 = inlined_call_operand.hbm [shape: f32[2,22,24,128], index: 0, kind: input, shape index: {}]
  %s1 = inlined_call_operand.hbm [shape: f32[7,7,128], index: 1, kind: input, shape index: {}]
  %s2 = inlined_call_operand.vmem [shape: f32[1,128], index: 2, kind: input, shape index: {}]
  %s3 = inlined_call_operand.hbm [shape: bf16[128,128], index: 3, kind: input, shape index: {}]
  %s4 = inlined_call_operand.vmem [shape: f32[1,128], index: 4, kind: input, shape index: {}]
  %s5 = inlined_call_operand.hbm [shape: f32[2,16,16,128], index: 5, kind: output, shape index: {}]
  %s6 = sld [smem:[#allocation0]]
  $region80: #{tpu_custom_call.1} parent=0
    _
  %s8 = ssub.s32 1, %s6
  %s9 = scalar_select 0, %s8, %s6
  $region1: #{tpu_custom_call.1} parent=0
    #allocation4 [shape = 'u8[28672]{0}', space=vmem, size = 0x7000, scoped, tag = 'input window, operand 1, single buffered']
    #allocation5 [shape = 's32[2]{0}', space=sflag, size = 0x8, scoped, tag = 'scoped memory for tpu_custom_call.1']
    #allocation6 [shape = 's32[2]{0}', space=sflag, size = 0x8, scoped, tag = 'scoped memory for tpu_custom_call.1']
    #allocation7 [shape = 'u8[32768]{0}', space=vmem, size = 0x8000, scoped, tag = 'input window, operand 3, single buffered']
    #allocation8 [shape = 's32[1]{0}', space=sflag, size = 0x4, scoped, tag = 'scoped memory for tpu_custom_call.1']
    #allocation9 [shape = 'u8[262144]{0}', space=vmem, size = 0x40000, scoped, tag = 'output window, operand 0']
    %10 = vsyncpa [#allocation5], 0
    %11 = vsyncpa [#allocation8], 0
    %12 = vsyncpa [#allocation6], 0
    %s13 = scalar_lea.sflag [#allocation6], 1
    %14 = vsyncpa %s13, 0
    loop: start=0, step=1, limit=4
    $region2: #{tpu_custom_call.1} parent=1 // loop_pre_header
      _
    $region3: #{tpu_custom_call.1} parent=1 // loop_header
      %s16 = sphi 0, %s20
      %p17 = scmp.ge.s32.totalorder %s16, 4
      %s23 = sphi 0, %s35
      %s24 = sphi 0, %s31
      %s25 = sphi 0, %s23
      %s26 = sphi 0, %s24
      %s27 = sphi 0, %s25
      %s28 = sphi 0, %s26
      %s36 = sphi 0, %s36
      %s38 = sphi 0, %s36
      %s39 = sphi 0, %s38
      %s53 = sphi 0, %s39
      %s57 = sphi 0, %s57
      %s59 = sphi 0, %s57
      %s60 = sphi 0, %s59
      %s74 = sphi 0, %s60
      %s78 = sphi 0, %s78
      %s80 = sphi 0, %s78
      %s81 = sphi 0, %s80
      %s95 = sphi 0, %s81
      %s99 = sphi 0, %s99
      %s101 = sphi 0, %s99
      %s102 = sphi 0, %s101
      %s116 = sphi 0, %s102
      %s124 = sphi 0, %s126
      %s127 = sphi 0, %s124
      %s128 = sphi 0, %s127
      %s144 = sphi 0, %s128
    $region4: #{tpu_custom_call.1} parent=1 // loop_header_branch
      %19 = sbr.rel (%p17) target = $region8
    $region5: #{tpu_custom_call.1} parent=1 // loop_body
      %s21 = ssub.s32 %s16, 1
      %s22 = ssub.s32 %s16, 2
      %s29 = sadd.s32 1, %s24
      %p30 = scmp.ge.s32.totalorder %s29, 1
      %s31 = scalar_select %p30, 0, %s29
      %s32 = sadd.s32 1, %s23
      %s33 = scalar_select %p30, %s32, %s23
      %p34 = scmp.ge.s32.totalorder %s33, 2
      %s35 = scalar_select %p34, 0, %s33
      %s37 = sadd.s32 %s36, 1
      %p40 = scmp.eq.s32.totalorder %s16, 1
      %p41 = scmp.ne.s32.totalorder %s36, %s38
      %p42 = scmp.eq.s32.totalorder %s16, 0
      %p43 = por %p41, %p42
      %p44 = scmp.ne.s32.totalorder %s36, %s38
      %p45 = scmp.eq.s32.totalorder %s21, 1
      %p46 = por %p44, %p45
      %p47 = scmp.ne.s32.totalorder %s38, %s39
      %p48 = scmp.eq.s32.totalorder %s21, 0
      %p49 = por %p47, %p48
      %p50 = scmp.ne.s32.totalorder %s38, %s39
      %p51 = scmp.eq.s32.totalorder %s22, 1
      %p52 = por %p50, %p51
      %p54 = scmp.ne.s32.totalorder %s39, %s53
      %p55 = scmp.eq.s32.totalorder %s22, 0
      %p56 = por %p54, %p55
      %s58 = sadd.s32 %s57, 1
      %p61 = scmp.eq.s32.totalorder %s16, 1
      %p62 = scmp.ne.s32.totalorder %s57, %s59
      %p63 = scmp.eq.s32.totalorder %s16, 0
      %p64 = por %p62, %p63
      %p65 = scmp.ne.s32.totalorder %s57, %s59
      %p66 = scmp.eq.s32.totalorder %s21, 1
      %p67 = por %p65, %p66
      %p68 = scmp.ne.s32.totalorder %s59, %s60
      %p69 = scmp.eq.s32.totalorder %s21, 0
      %p70 = por %p68, %p69
      %p71 = scmp.ne.s32.totalorder %s59, %s60
      %p72 = scmp.eq.s32.totalorder %s22, 1
      %p73 = por %p71, %p72
      %p75 = scmp.ne.s32.totalorder %s60, %s74
      %p76 = scmp.eq.s32.totalorder %s22, 0
      %p77 = por %p75, %p76
      %s79 = sadd.s32 %s78, 1
      %p82 = scmp.eq.s32.totalorder %s16, 1
      %p83 = scmp.ne.s32.totalorder %s78, %s80
      %p84 = scmp.eq.s32.totalorder %s16, 0
      %p85 = por %p83, %p84
      %p86 = scmp.ne.s32.totalorder %s78, %s80
      %p87 = scmp.eq.s32.totalorder %s21, 1
      %p88 = por %p86, %p87
      %p89 = scmp.ne.s32.totalorder %s80, %s81
      %p90 = scmp.eq.s32.totalorder %s21, 0
      %p91 = por %p89, %p90
      %p92 = scmp.ne.s32.totalorder %s80, %s81
      %p93 = scmp.eq.s32.totalorder %s22, 1
      %p94 = por %p92, %p93
      %p96 = scmp.ne.s32.totalorder %s81, %s95
      %p97 = scmp.eq.s32.totalorder %s22, 0
      %p98 = por %p96, %p97
      %s100 = sadd.s32 %s99, 1
      %p103 = scmp.eq.s32.totalorder %s16, 1
      %p104 = scmp.ne.s32.totalorder %s99, %s101
      %p105 = scmp.eq.s32.totalorder %s16, 0
      %p106 = por %p104, %p105
      %p107 = scmp.ne.s32.totalorder %s99, %s101
      %p108 = scmp.eq.s32.totalorder %s21, 1
      %p109 = por %p107, %p108
      %p110 = scmp.ne.s32.totalorder %s101, %s102
      %p111 = scmp.eq.s32.totalorder %s21, 0
      %p112 = por %p110, %p111
      %p113 = scmp.ne.s32.totalorder %s101, %s102
      %p114 = scmp.eq.s32.totalorder %s22, 1
      %p115 = por %p113, %p114
      %p117 = scmp.ne.s32.totalorder %s102, %s116
      %p118 = scmp.eq.s32.totalorder %s22, 0
      %p119 = por %p117, %p118
      %s120 = ssub.s32 %s23, %s35
      %s121 = ssub.s32 %s24, %s31
      %s122 = sor.u32 %s120, %s121
      %p123 = scmp.eq.s32.totalorder %s122, 0
      %s125 = sadd.s32 %s124, 1
      %s126 = scalar_select %p123, %s124, %s125
      %p129 = pneg %p123
      %p130 = scmp.eq.s32.totalorder %s16, 1
      %p131 = por %p129, %p130
      %p132 = scmp.ne.s32.totalorder %s124, %s127
      %p133 = scmp.eq.s32.totalorder %s16, 0
      %p134 = por %p132, %p133
      %p135 = scmp.ne.s32.totalorder %s124, %s127
      %p136 = scmp.eq.s32.totalorder %s21, 1
      %p137 = por %p135, %p136
      %p138 = scmp.ne.s32.totalorder %s127, %s128
      %p139 = scmp.eq.s32.totalorder %s21, 0
      %p140 = por %p138, %p139
      %p141 = scmp.ne.s32.totalorder %s127, %s128
      %p142 = scmp.eq.s32.totalorder %s22, 1
      %p143 = por %p141, %p142
      %p145 = scmp.ne.s32.totalorder %s128, %s144
      %p146 = scmp.eq.s32.totalorder %s22, 0
      %p147 = por %p145, %p146
      %p148 = scmp.le.s32.totalorder 1, %s16
      %p149 = scmp.lt.s32.totalorder %s16, 3
      %p150 = pnand %p148, %p149
      %p151 = pneg %p150
      // Predicated region
      $region9: #{tpu_custom_call.1} parent=5 // pred_check
        _
      $region10: #{tpu_custom_call.1} parent=5 // pred_check_branch
        %153 = sbr.rel (%p150) target = $region12
      $region11: #{tpu_custom_call.1} parent=5 // pred_region
        %s154 = ssub.s32 %s16, 1
        // Predicated region
        $region13: #{tpu_custom_call.1} parent=11 // pred_check
          %p155 = pneg %p49
        $region14: #{tpu_custom_call.1} parent=11 // pred_check_branch
          %157 = sbr.rel (%p155) target = $region16
        $region15: #{tpu_custom_call.1} parent=11 // pred_region
          %s159 = ssub.s32 896, 896
          %160 = vsyncadd [#allocation5], %s159
          %s161 = sshll.u32 [#allocation4], 4
          %s162 = int_to_ptr.vmem [resolvable:$true] %s161
          %167 = dma.hbm_to_vmem [thread:$0]  %s1, 896, %s162, [#allocation5], 128, 128, 8
        $region16: #{tpu_custom_call.1} parent=11 // pred_fallthru
          _
        // Predicated region
        $region17: #{tpu_custom_call.1} parent=11 // pred_check
          %p168 = pneg %p70
        $region18: #{tpu_custom_call.1} parent=11 // pred_check_branch
          %170 = sbr.rel (%p168) target = $region20
        $region19: #{tpu_custom_call.1} parent=11 // pred_region
          _
        $region20: #{tpu_custom_call.1} parent=11 // pred_fallthru
          _
        // Predicated region
        $region21: #{tpu_custom_call.1} parent=11 // pred_check
          %p171 = pneg %p91
        $region22: #{tpu_custom_call.1} parent=11 // pred_check_branch
          %173 = sbr.rel (%p171) target = $region24
        $region23: #{tpu_custom_call.1} parent=11 // pred_region
          %s175 = ssub.s32 1024, 1024
          %176 = vsyncadd [#allocation8], %s175
          %s177 = sshll.u32 [#allocation7], 4
          %s178 = int_to_ptr.vmem [resolvable:$true] %s177
          %183 = dma.hbm_to_vmem [thread:$0]  %s3, 1024, %s178, [#allocation8], 64, 64, 4
        $region24: #{tpu_custom_call.1} parent=11 // pred_fallthru
          _
        // Predicated region
        $region25: #{tpu_custom_call.1} parent=11 // pred_check
          %p184 = pneg %p112
        $region26: #{tpu_custom_call.1} parent=11 // pred_check_branch
          %186 = sbr.rel (%p184) target = $region28
        $region27: #{tpu_custom_call.1} parent=11 // pred_region
          _
        $region28: #{tpu_custom_call.1} parent=11 // pred_fallthru
          _
      $region12: #{tpu_custom_call.1} parent=5 // pred_fallthru
        _
      %p187 = scmp.lt.s32.totalorder %s16, 2
      // Predicated region
      $region29: #{tpu_custom_call.1} parent=5 // pred_check
        %p188 = pneg %p187
      $region30: #{tpu_custom_call.1} parent=5 // pred_check_branch
        %190 = sbr.rel (%p188) target = $region32
      $region31: #{tpu_custom_call.1} parent=5 // pred_region
        _
      $region32: #{tpu_custom_call.1} parent=5 // pred_fallthru
        _
      %p191 = scmp.le.s32.totalorder 1, %s16
      %p192 = scmp.lt.s32.totalorder %s16, 3
      %p193 = pnand %p191, %p192
      %p194 = pneg %p193
      // Predicated region
      $region33: #{tpu_custom_call.1} parent=5 // pred_check
        _
      $region34: #{tpu_custom_call.1} parent=5 // pred_check_branch
        %196 = sbr.rel (%p193) target = $region36
      $region35: #{tpu_custom_call.1} parent=5 // pred_region
        %s197 = ssub.s32 %s16, 1
        // Predicated region
        $region37: #{tpu_custom_call.1} parent=35 // pred_check
          %p198 = pneg %p49
        $region38: #{tpu_custom_call.1} parent=35 // pred_check_branch
          %200 = sbr.rel (%p198) target = $region40
        $region39: #{tpu_custom_call.1} parent=35 // pred_region
          %201 = dma.done [#allocation5], 896
        $region40: #{tpu_custom_call.1} parent=35 // pred_fallthru
          _
        // Predicated region
        $region41: #{tpu_custom_call.1} parent=35 // pred_check
          %p202 = pneg %p91
        $region42: #{tpu_custom_call.1} parent=35 // pred_check_branch
          %204 = sbr.rel (%p202) target = $region44
        $region43: #{tpu_custom_call.1} parent=35 // pred_region
          %205 = dma.done [#allocation8], 1024
        $region44: #{tpu_custom_call.1} parent=35 // pred_fallthru
          _
        %p206 = pneg %p49
        %p207 = pneg %p46
        %p208 = pneg %p70
        %p209 = pneg %p67
        %p210 = pneg %p91
        %p211 = pneg %p88
        %p212 = pneg %p112
        %p213 = pneg %p109
        %p214 = pneg %p140
        %p215 = pneg %p137
        %s216 = sand.u32 %s127, 1
        %s217 = scalar_lea.sflag [#allocation6], %s216
        %s218 = sand.u32 %s127, 1
        %s219 = smul.addr %s218, 256
        %s220 = scalar_lea.vmem [#allocation9], %s219
        %s221 = smul.u32 16, %s26
        %p223 = scmp.lt.s32.totalorder %s26, 0
        %s224 = ssub.s32 0, %s26
        %s225 = scalar_select %p223, %s224, %s26
        %s226 = sand.u32 %s225, 1
        %s227 = ssub.s32 0, %s226
        %s228 = scalar_select %p223, %s227, %s226
        %p229 = scmp.ne.s32.totalorder %s228, 0
        %p230 = scmp.lt.s32.totalorder %s228, 0
        %p231 = pnand %p230, %p229
        %p232 = pneg %p231
        %s233 = sadd.s32 %s228, 2
        %s234 = scalar_select %p232, %s233, %s228
        %p235 = scmp.eq.s32.totalorder %s26, 0
        // Predicated region
        $region45: #{tpu_custom_call.1} parent=35 // pred_check
          %p236 = pneg %p235
        $region46: #{tpu_custom_call.1} parent=35 // pred_check_branch
          %238 = sbr.rel (%p236) target = $region48
        $region47: #{tpu_custom_call.1} parent=35 // pred_region
          %s239 = smul.u32 %s25, 528
          %s240 = smul.addr %s239, 16
          %s241 = scalar_lea.hbm %s0, %s240
          // Predicated region
          $region49: #{tpu_custom_call.1} parent=47 // pred_check
            _
          $region50: #{tpu_custom_call.1} parent=47 // pred_check_branch
            %243 = sbr.rel target = $region52
          $region51: #{tpu_custom_call.1} parent=47 // pred_region
            %244 = sst [smem:[#allocation12]] [#allocation11]
            %245 = sst [smem:[#allocation13]] [#allocation10]
          $region52: #{tpu_custom_call.1} parent=47 // pred_fallthru
            _
          %247 = shalt.err (0)
          %s249 = sshll.u32 [#allocation2], 4
          %s250 = int_to_ptr.vmem [resolvable:$true] %s249
          %252 = dma.hbm_to_vmem [thread:$0]  %s241, 8448, %s250, [#allocation3]
        $region48: #{tpu_custom_call.1} parent=35 // pred_fallthru
          _
        %s253 = scalar_lea.sflag [#allocation3], %s234
        %s254 = smul.u32 22, 24
        %s255 = smul.u32 %s254, 1
        %s256 = sshll.u32 %s255, 4
        %257 = dma.done %s253, %s256
        %s258 = sadd.s32 %s26, 1
        %p259 = scmp.lt.s32.totalorder %s258, 1
        // Predicated region
        $region53: #{tpu_custom_call.1} parent=35 // pred_check
          %p260 = pneg %p259
        $region54: #{tpu_custom_call.1} parent=35 // pred_check_branch
          %262 = sbr.rel (%p260) target = $region56
        $region55: #{tpu_custom_call.1} parent=35 // pred_region
          %s263 = smul.u32 %s258, 16
          %s264 = ssub.s32 1, %s234
          %s265 = smul.u32 %s263, 24
          %s266 = smul.u32 %s25, 528
          %s267 = sadd.s32 %s265, %s266
          %s268 = smul.addr %s267, 16
          %s269 = scalar_lea.hbm %s0, %s268
          %s270 = smul.u32 %s264, 528
          %s271 = scalar_lea.vmem [#allocation2], %s270
          %s272 = scalar_lea.sflag [#allocation3], %s264
          // Predicated region
          $region57: #{tpu_custom_call.1} parent=55 // pred_check
            _
          $region58: #{tpu_custom_call.1} parent=55 // pred_check_branch
            %274 = sbr.rel target = $region60
          $region59: #{tpu_custom_call.1} parent=55 // pred_region
            %275 = sst [smem:[#allocation12]] [#allocation15]
            %276 = sst [smem:[#allocation13]] [#allocation14]
          $region60: #{tpu_custom_call.1} parent=55 // pred_fallthru
            _
          %278 = shalt.err (0)
          %s280 = sshll.u32 %s271, 4
          %s281 = int_to_ptr.vmem [resolvable:$true] %s280
          %283 = dma.hbm_to_vmem [thread:$0]  %s269, 8448, %s281, %s272
        $region56: #{tpu_custom_call.1} parent=35 // pred_fallthru
          _
        %v284 = vld [vmem:[%s2] sm:$0x1]
        %v285 = vld [vmem:[%s4] sm:$0x1]
        loop: start=0, step=1, limit=2
        $region61: #{tpu_custom_call.1} parent=35 // loop_pre_header
          _
        $region62: #{tpu_custom_call.1} parent=35 // loop_header
          %s287 = sphi 0, %s291
          %p288 = scmp.ge.s32.totalorder %s287, 2
        $region63: #{tpu_custom_call.1} parent=35 // loop_header_branch
          %290 = sbr.rel (%p288) target = $region67
        $region64: #{tpu_custom_call.1} parent=35 // loop_body
          %s292 = smul.u32 %s287, 8
          %s293 = smul.u32 %s292, 24
          %s294 = smul.u32 %s234, 528
          %s295 = sadd.s32 %s293, %s294
          %s296 = scalar_lea.vmem [#allocation2], %s295
          %v297 = vld [vmem:[%s296] sm:$0xff]
          %v298 = vld [vmem:[%s296 + $0x8] sm:$0xff]
          %v299 = vld [vmem:[%s296 + $0x10] sm:$0xff]
          %v300 = vld [vmem:[%s296 + $0x18] sm:$0xff]
          %v301 = vld [vmem:[%s296 + $0x20] sm:$0xff]
          %v302 = vld [vmem:[%s296 + $0x28] sm:$0xff]
          %v303 = vld [vmem:[%s296 + $0x30] sm:$0xff]
          %v304 = vld [vmem:[%s296 + $0x38] sm:$0xff]
          %v305 = vld [vmem:[%s296 + $0x40] sm:$0xff]
          %v306 = vld [vmem:[%s296 + $0x48] sm:$0xff]
          %v307 = vld [vmem:[%s296 + $0x50] sm:$0xff]
          %v308 = vld [vmem:[%s296 + $0x58] sm:$0xff]
          %v309 = vld [vmem:[%s296 + $0x60] sm:$0xff]
          %v310 = vld [vmem:[%s296 + $0x68] sm:$0xff]
          %v311 = vld [vmem:[%s296 + $0x70] sm:$0xff]
          %v312 = vld [vmem:[%s296 + $0x78] sm:$0xff]
          %v313 = vld [vmem:[%s296 + $0x80] sm:$0xff]
          %v314 = vld [vmem:[%s296 + $0x88] sm:$0xff]
          %v315 = vld [vmem:[%s296 + $0x90] sm:$0xff]
          %v316 = vld [vmem:[%s296 + $0x98] sm:$0xff]
          %v317 = vld [vmem:[%s296 + $0xa0] sm:$0xff]
          %v318 = vld [vmem:[%s296 + $0xa8] sm:$0xff]
          %v319 = vld [vmem:[%s296 + $0xb0] sm:$0xff]
          %v320 = vld [vmem:[%s296 + $0xb8] sm:$0xff]
          %v321 = vld [vmem:[#allocation4] sm:$0x1]
          %v322 = vlaneseq
          %v323 = vshrl.u32 %v322, 7
          %v324 = vsub.s32 0, %v323
          %v325 = vrot.slane %v321, %v324
          %v326 = vmul.f32 %v297, %v325
          %v327 = vmul.f32 %v298, %v325
          %v328 = vmul.f32 %v300, %v325
          %v329 = vmul.f32 %v301, %v325
          %v330 = vmul.f32 %v303, %v325
          %v331 = vmul.f32 %v304, %v325
          %v332 = vmul.f32 %v306, %v325
          %v333 = vmul.f32 %v307, %v325
          %v334 = vmul.f32 %v309, %v325
          %v335 = vmul.f32 %v310, %v325
          %v336 = vmul.f32 %v312, %v325
          %v337 = vmul.f32 %v313, %v325
          %v338 = vmul.f32 %v315, %v325
          %v339 = vmul.f32 %v316, %v325
          %v340 = vmul.f32 %v318, %v325
          %v341 = vmul.f32 %v319, %v325
          %v342 = vadd.f32 %v326, 0.0
          %v343 = vadd.f32 %v327, 0.0
          %v344 = vadd.f32 %v328, 0.0
          %v345 = vadd.f32 %v329, 0.0
          %v346 = vadd.f32 %v330, 0.0
          %v347 = vadd.f32 %v331, 0.0
          %v348 = vadd.f32 %v332, 0.0
          %v349 = vadd.f32 %v333, 0.0
          %v350 = vadd.f32 %v334, 0.0
          %v351 = vadd.f32 %v335, 0.0
          %v352 = vadd.f32 %v336, 0.0
          %v353 = vadd.f32 %v337, 0.0
          %v354 = vadd.f32 %v338, 0.0
          %v355 = vadd.f32 %v339, 0.0
          %v356 = vadd.f32 %v340, 0.0
          %v357 = vadd.f32 %v341, 0.0
          %v358 = vrot.slane %v297, 1
          %v359 = vrot.slane %v300, 1
          %v360 = vrot.slane %v303, 1
          %v361 = vrot.slane %v306, 1
          %v362 = vrot.slane %v309, 1
          %v363 = vrot.slane %v312, 1
          %v364 = vrot.slane %v315, 1
          %v365 = vrot.slane %v318, 1
          %v366 = vrot.slane %v298, 1
          %v367 = vrot.slane %v301, 1
          %v368 = vrot.slane %v304, 1
          %v369 = vrot.slane %v307, 1
          %v370 = vrot.slane %v310, 1
          %v371 = vrot.slane %v313, 1
          %v372 = vrot.slane %v316, 1
          %v373 = vrot.slane %v319, 1
          %v374 = vrot.slane %v299, 1
          %v375 = vrot.slane %v302, 1
          %v376 = vrot.slane %v305, 1
          %v377 = vrot.slane %v308, 1
          %v378 = vrot.slane %v311, 1
          %v379 = vrot.slane %v314, 1
          %v380 = vrot.slane %v317, 1
          %v381 = vrot.slane %v320, 1
          %v382 = vlaneseq
          %v383 = vshrl.u32 %v382, 7
          %vm384 = vcmp.lt.s32.totalorder %v383, 7
          %v385 = vsel %vm384, %v366, %v374
          %v386 = vsel %vm384, %v367, %v375
          %v387 = vsel %vm384, %v368, %v376
          %v388 = vsel %vm384, %v369, %v377
          %v389 = vsel %vm384, %v370, %v378
          %v390 = vsel %vm384, %v371, %v379
          %v391 = vsel %vm384, %v372, %v380
          %v392 = vsel %vm384, %v373, %v381
          %v393 = vsel %vm384, %v358, %v366
          %v394 = vsel %vm384, %v359, %v367
          %v395 = vsel %vm384, %v360, %v368
          %v396 = vsel %vm384, %v361, %v369
          %v397 = vsel %vm384, %v362, %v370
          %v398 = vsel %vm384, %v363, %v371
          %v399 = vsel %vm384, %v364, %v372
          %v400 = vsel %vm384, %v365, %v373
          %v401 = vld [vmem:[#allocation4 + $0x1] sm:$0x1]
          %v402 = vlaneseq
          %v403 = vshrl.u32 %v402, 7
          %v404 = vsub.s32 0, %v403
          %v405 = vrot.slane %v401, %v404
          %v406 = vmul.f32 %v393, %v405
          %v407 = vmul.f32 %v385, %v405
          %v408 = vmul.f32 %v394, %v405
          %v409 = vmul.f32 %v386, %v405
          %v410 = vmul.f32 %v395, %v405
          %v411 = vmul.f32 %v387, %v405
          %v412 = vmul.f32 %v396, %v405
          %v413 = vmul.f32 %v388, %v405
          %v414 = vmul.f32 %v397, %v405
          %v415 = vmul.f32 %v389, %v405
          %v416 = vmul.f32 %v398, %v405
          %v417 = vmul.f32 %v390, %v405
          %v418 = vmul.f32 %v399, %v405
          %v419 = vmul.f32 %v391, %v405
          %v420 = vmul.f32 %v400, %v405
          %v421 = vmul.f32 %v392, %v405
          %v422 = vadd.f32 %v342, %v406
          %v423 = vadd.f32 %v343, %v407
          %v424 = vadd.f32 %v344, %v408
          %v425 = vadd.f32 %v345, %v409
          %v426 = vadd.f32 %v346, %v410
          %v427 = vadd.f32 %v347, %v411
          %v428 = vadd.f32 %v348, %v412
          %v429 = vadd.f32 %v349, %v413
          %v430 = vadd.f32 %v350, %v414
          %v431 = vadd.f32 %v351, %v415
          %v432 = vadd.f32 %v352, %v416
          %v433 = vadd.f32 %v353, %v417
          %v434 = vadd.f32 %v354, %v418
          %v435 = vadd.f32 %v355, %v419
          %v436 = vadd.f32 %v356, %v420
          %v437 = vadd.f32 %v357, %v421
          %v438 = vrot.slane %v297, 2
          %v439 = vrot.slane %v300, 2
          %v440 = vrot.slane %v303, 2
          %v441 = vrot.slane %v306, 2
          %v442 = vrot.slane %v309, 2
          %v443 = vrot.slane %v312, 2
          %v444 = vrot.slane %v315, 2
          %v445 = vrot.slane %v318, 2
          %v446 = vrot.slane %v298, 2
          %v447 = vrot.slane %v301, 2
          %v448 = vrot.slane %v304, 2
          %v449 = vrot.slane %v307, 2
          %v450 = vrot.slane %v310, 2
          %v451 = vrot.slane %v313, 2
          %v452 = vrot.slane %v316, 2
          %v453 = vrot.slane %v319, 2
          %v454 = vrot.slane %v299, 2
          %v455 = vrot.slane %v302, 2
          %v456 = vrot.slane %v305, 2
          %v457 = vrot.slane %v308, 2
          %v458 = vrot.slane %v311, 2
          %v459 = vrot.slane %v314, 2
          %v460 = vrot.slane %v317, 2
          %v461 = vrot.slane %v320, 2
          %vm462 = vcmp.lt.s32.totalorder %v383, 6
          %v463 = vsel %vm462, %v446, %v454
          %v464 = vsel %vm462, %v447, %v455
          %v465 = vsel %vm462, %v448, %v456
          %v466 = vsel %vm462, %v449, %v457
          %v467 = vsel %vm462, %v450, %v458
          %v468 = vsel %vm462, %v451, %v459
          %v469 = vsel %vm462, %v452, %v460
          %v470 = vsel %vm462, %v453, %v461
          %v471 = vsel %vm462, %v438, %v446
          %v472 = vsel %vm462, %v439, %v447
          %v473 = vsel %vm462, %v440, %v448
          %v474 = vsel %vm462, %v441, %v449
          %v475 = vsel %vm462, %v442, %v450
          %v476 = vsel %vm462, %v443, %v451
          %v477 = vsel %vm462, %v444, %v452
          %v478 = vsel %vm462, %v445, %v453
          %v479 = vld [vmem:[#allocation4 + $0x2] sm:$0x1]
          %v480 = vlaneseq
          %v481 = vshrl.u32 %v480, 7
          %v482 = vsub.s32 0, %v481
          %v483 = vrot.slane %v479, %v482
          %v484 = vmul.f32 %v471, %v483
          %v485 = vmul.f32 %v463, %v483
          %v486 = vmul.f32 %v472, %v483
          %v487 = vmul.f32 %v464, %v483
          %v488 = vmul.f32 %v473, %v483
          %v489 = vmul.f32 %v465, %v483
          %v490 = vmul.f32 %v474, %v483
          %v491 = vmul.f32 %v466, %v483
          %v492 = vmul.f32 %v475, %v483
          %v493 = vmul.f32 %v467, %v483
          %v494 = vmul.f32 %v476, %v483
          %v495 = vmul.f32 %v468, %v483
          %v496 = vmul.f32 %v477, %v483
          %v497 = vmul.f32 %v469, %v483
          %v498 = vmul.f32 %v478, %v483
          %v499 = vmul.f32 %v470, %v483
          %v500 = vadd.f32 %v422, %v484
          %v501 = vadd.f32 %v423, %v485
          %v502 = vadd.f32 %v424, %v486
          %v503 = vadd.f32 %v425, %v487
          %v504 = vadd.f32 %v426, %v488
          %v505 = vadd.f32 %v427, %v489
          %v506 = vadd.f32 %v428, %v490
          %v507 = vadd.f32 %v429, %v491
          %v508 = vadd.f32 %v430, %v492
          %v509 = vadd.f32 %v431, %v493
          %v510 = vadd.f32 %v432, %v494
          %v511 = vadd.f32 %v433, %v495
          %v512 = vadd.f32 %v434, %v496
          %v513 = vadd.f32 %v435, %v497
          %v514 = vadd.f32 %v436, %v498
          %v515 = vadd.f32 %v437, %v499
          %v516 = vrot.slane %v297, 3
          %v517 = vrot.slane %v300, 3
          %v518 = vrot.slane %v303, 3
          %v519 = vrot.slane %v306, 3
          %v520 = vrot.slane %v309, 3
          %v521 = vrot.slane %v312, 3
          %v522 = vrot.slane %v315, 3
          %v523 = vrot.slane %v318, 3
          %v524 = vrot.slane %v298, 3
          %v525 = vrot.slane %v301, 3
          %v526 = vrot.slane %v304, 3
          %v527 = vrot.slane %v307, 3
          %v528 = vrot.slane %v310, 3
          %v529 = vrot.slane %v313, 3
          %v530 = vrot.slane %v316, 3
          %v531 = vrot.slane %v319, 3
          %v532 = vrot.slane %v299, 3
          %v533 = vrot.slane %v302, 3
          %v534 = vrot.slane %v305, 3
          %v535 = vrot.slane %v308, 3
          %v536 = vrot.slane %v311, 3
          %v537 = vrot.slane %v314, 3
          %v538 = vrot.slane %v317, 3
          %v539 = vrot.slane %v320, 3
          %vm540 = vcmp.lt.s32.totalorder %v383, 5
          %v541 = vsel %vm540, %v524, %v532
          %v542 = vsel %vm540, %v525, %v533
          %v543 = vsel %vm540, %v526, %v534
          %v544 = vsel %vm540, %v527, %v535
          %v545 = vsel %vm540, %v528, %v536
          %v546 = vsel %vm540, %v529, %v537
          %v547 = vsel %vm540, %v530, %v538
          %v548 = vsel %vm540, %v531, %v539
          %v549 = vsel %vm540, %v516, %v524
          %v550 = vsel %vm540, %v517, %v525
          %v551 = vsel %vm540, %v518, %v526
          %v552 = vsel %vm540, %v519, %v527
          %v553 = vsel %vm540, %v520, %v528
          %v554 = vsel %vm540, %v521, %v529
          %v555 = vsel %vm540, %v522, %v530
          %v556 = vsel %vm540, %v523, %v531
          %v557 = vld [vmem:[#allocation4 + $0x3] sm:$0x1]
          %v558 = vlaneseq
          %v559 = vshrl.u32 %v558, 7
          %v560 = vsub.s32 0, %v559
          %v561 = vrot.slane %v557, %v560
          %v562 = vmul.f32 %v549, %v561
          %v563 = vmul.f32 %v541, %v561
          %v564 = vmul.f32 %v550, %v561
          %v565 = vmul.f32 %v542, %v561
          %v566 = vmul.f32 %v551, %v561
          %v567 = vmul.f32 %v543, %v561
          %v568 = vmul.f32 %v552, %v561
          %v569 = vmul.f32 %v544, %v561
          %v570 = vmul.f32 %v553, %v561
          %v571 = vmul.f32 %v545, %v561
          %v572 = vmul.f32 %v554, %v561
          %v573 = vmul.f32 %v546, %v561
          %v574 = vmul.f32 %v555, %v561
          %v575 = vmul.f32 %v547, %v561
          %v576 = vmul.f32 %v556, %v561
          %v577 = vmul.f32 %v548, %v561
          %v578 = vadd.f32 %v500, %v562
          %v579 = vadd.f32 %v501, %v563
          %v580 = vadd.f32 %v502, %v564
          %v581 = vadd.f32 %v503, %v565
          %v582 = vadd.f32 %v504, %v566
          %v583 = vadd.f32 %v505, %v567
          %v584 = vadd.f32 %v506, %v568
          %v585 = vadd.f32 %v507, %v569
          %v586 = vadd.f32 %v508, %v570
          %v587 = vadd.f32 %v509, %v571
          %v588 = vadd.f32 %v510, %v572
          %v589 = vadd.f32 %v511, %v573
          %v590 = vadd.f32 %v512, %v574
          %v591 = vadd.f32 %v513, %v575
          %v592 = vadd.f32 %v514, %v576
          %v593 = vadd.f32 %v515, %v577
          %v594 = vrot.slane %v297, 4
          %v595 = vrot.slane %v300, 4
          %v596 = vrot.slane %v303, 4
          %v597 = vrot.slane %v306, 4
          %v598 = vrot.slane %v309, 4
          %v599 = vrot.slane %v312, 4
          %v600 = vrot.slane %v315, 4
          %v601 = vrot.slane %v318, 4
          %v602 = vrot.slane %v298, 4
          %v603 = vrot.slane %v301, 4
          %v604 = vrot.slane %v304, 4
          %v605 = vrot.slane %v307, 4
          %v606 = vrot.slane %v310, 4
          %v607 = vrot.slane %v313, 4
          %v608 = vrot.slane %v316, 4
          %v609 = vrot.slane %v319, 4
          %v610 = vrot.slane %v299, 4
          %v611 = vrot.slane %v302, 4
          %v612 = vrot.slane %v305, 4
          %v613 = vrot.slane %v308, 4
          %v614 = vrot.slane %v311, 4
          %v615 = vrot.slane %v314, 4
          %v616 = vrot.slane %v317, 4
          %v617 = vrot.slane %v320, 4
          %vm618 = vcmp.lt.s32.totalorder %v383, 4
          %v619 = vsel %vm618, %v602, %v610
          %v620 = vsel %vm618, %v603, %v611
          %v621 = vsel %vm618, %v604, %v612
          %v622 = vsel %vm618, %v605, %v613
          %v623 = vsel %vm618, %v606, %v614
          %v624 = vsel %vm618, %v607, %v615
          %v625 = vsel %vm618, %v608, %v616
          %v626 = vsel %vm618, %v609, %v617
          %v627 = vsel %vm618, %v594, %v602
          %v628 = vsel %vm618, %v595, %v603
          %v629 = vsel %vm618, %v596, %v604
          %v630 = vsel %vm618, %v597, %v605
          %v631 = vsel %vm618, %v598, %v606
          %v632 = vsel %vm618, %v599, %v607
          %v633 = vsel %vm618, %v600, %v608
          %v634 = vsel %vm618, %v601, %v609
          %v635 = vld [vmem:[#allocation4 + $0x4] sm:$0x1]
          %v636 = vlaneseq
          %v637 = vshrl.u32 %v636, 7
          %v638 = vsub.s32 0, %v637
          %v639 = vrot.slane %v635, %v638
          %v640 = vmul.f32 %v627, %v639
          %v641 = vmul.f32 %v619, %v639
          %v642 = vmul.f32 %v628, %v639
          %v643 = vmul.f32 %v620, %v639
          %v644 = vmul.f32 %v629, %v639
          %v645 = vmul.f32 %v621, %v639
          %v646 = vmul.f32 %v630, %v639
          %v647 = vmul.f32 %v622, %v639
          %v648 = vmul.f32 %v631, %v639
          %v649 = vmul.f32 %v623, %v639
          %v650 = vmul.f32 %v632, %v639
          %v651 = vmul.f32 %v624, %v639
          %v652 = vmul.f32 %v633, %v639
          %v653 = vmul.f32 %v625, %v639
          %v654 = vmul.f32 %v634, %v639
          %v655 = vmul.f32 %v626, %v639
          %v656 = vadd.f32 %v578, %v640
          %v657 = vadd.f32 %v579, %v641
          %v658 = vadd.f32 %v580, %v642
          %v659 = vadd.f32 %v581, %v643
          %v660 = vadd.f32 %v582, %v644
          %v661 = vadd.f32 %v583, %v645
          %v662 = vadd.f32 %v584, %v646
          %v663 = vadd.f32 %v585, %v647
          %v664 = vadd.f32 %v586, %v648
          %v665 = vadd.f32 %v587, %v649
          %v666 = vadd.f32 %v588, %v650
          %v667 = vadd.f32 %v589, %v651
          %v668 = vadd.f32 %v590, %v652
          %v669 = vadd.f32 %v591, %v653
          %v670 = vadd.f32 %v592, %v654
          %v671 = vadd.f32 %v593, %v655
          %v672 = vrot.slane %v297, 5
          %v673 = vrot.slane %v300, 5
          %v674 = vrot.slane %v303, 5
          %v675 = vrot.slane %v306, 5
          %v676 = vrot.slane %v309, 5
          %v677 = vrot.slane %v312, 5
          %v678 = vrot.slane %v315, 5
          %v679 = vrot.slane %v318, 5
          %v680 = vrot.slane %v298, 5
          %v681 = vrot.slane %v301, 5
          %v682 = vrot.slane %v304, 5
          %v683 = vrot.slane %v307, 5
          %v684 = vrot.slane %v310, 5
          %v685 = vrot.slane %v313, 5
          %v686 = vrot.slane %v316, 5
          %v687 = vrot.slane %v319, 5
          %v688 = vrot.slane %v299, 5
          %v689 = vrot.slane %v302, 5
          %v690 = vrot.slane %v305, 5
          %v691 = vrot.slane %v308, 5
          %v692 = vrot.slane %v311, 5
          %v693 = vrot.slane %v314, 5
          %v694 = vrot.slane %v317, 5
          %v695 = vrot.slane %v320, 5
          %vm696 = vcmp.lt.s32.totalorder %v383, 3
          %v697 = vsel %vm696, %v680, %v688
          %v698 = vsel %vm696, %v681, %v689
          %v699 = vsel %vm696, %v682, %v690
          %v700 = vsel %vm696, %v683, %v691
          %v701 = vsel %vm696, %v684, %v692
          %v702 = vsel %vm696, %v685, %v693
          %v703 = vsel %vm696, %v686, %v694
          %v704 = vsel %vm696, %v687, %v695
          %v705 = vsel %vm696, %v672, %v680
          %v706 = vsel %vm696, %v673, %v681
          %v707 = vsel %vm696, %v674, %v682
          %v708 = vsel %vm696, %v675, %v683
          %v709 = vsel %vm696, %v676, %v684
          %v710 = vsel %vm696, %v677, %v685
          %v711 = vsel %vm696, %v678, %v686
          %v712 = vsel %vm696, %v679, %v687
          %v713 = vld [vmem:[#allocation4 + $0x5] sm:$0x1]
          %v714 = vlaneseq
          %v715 = vshrl.u32 %v714, 7
          %v716 = vsub.s32 0, %v715
          %v717 = vrot.slane %v713, %v716
          %v718 = vmul.f32 %v705, %v717
          %v719 = vmul.f32 %v697, %v717
          %v720 = vmul.f32 %v706, %v717
          %v721 = vmul.f32 %v698, %v717
          %v722 = vmul.f32 %v707, %v717
          %v723 = vmul.f32 %v699, %v717
          %v724 = vmul.f32 %v708, %v717
          %v725 = vmul.f32 %v700, %v717
          %v726 = vmul.f32 %v709, %v717
          %v727 = vmul.f32 %v701, %v717
          %v728 = vmul.f32 %v710, %v717
          %v729 = vmul.f32 %v702, %v717
          %v730 = vmul.f32 %v711, %v717
          %v731 = vmul.f32 %v703, %v717
          %v732 = vmul.f32 %v712, %v717
          %v733 = vmul.f32 %v704, %v717
          %v734 = vadd.f32 %v656, %v718
          %v735 = vadd.f32 %v657, %v719
          %v736 = vadd.f32 %v658, %v720
          %v737 = vadd.f32 %v659, %v721
          %v738 = vadd.f32 %v660, %v722
          %v739 = vadd.f32 %v661, %v723
          %v740 = vadd.f32 %v662, %v724
          %v741 = vadd.f32 %v663, %v725
          %v742 = vadd.f32 %v664, %v726
          %v743 = vadd.f32 %v665, %v727
          %v744 = vadd.f32 %v666, %v728
          %v745 = vadd.f32 %v667, %v729
          %v746 = vadd.f32 %v668, %v730
          %v747 = vadd.f32 %v669, %v731
          %v748 = vadd.f32 %v670, %v732
          %v749 = vadd.f32 %v671, %v733
          %v750 = vrot.slane %v297, 6
          %v751 = vrot.slane %v300, 6
          %v752 = vrot.slane %v303, 6
          %v753 = vrot.slane %v306, 6
          %v754 = vrot.slane %v309, 6
          %v755 = vrot.slane %v312, 6
          %v756 = vrot.slane %v315, 6
          %v757 = vrot.slane %v318, 6
          %v758 = vrot.slane %v298, 6
          %v759 = vrot.slane %v301, 6
          %v760 = vrot.slane %v304, 6
          %v761 = vrot.slane %v307, 6
          %v762 = vrot.slane %v310, 6
          %v763 = vrot.slane %v313, 6
          %v764 = vrot.slane %v316, 6
          %v765 = vrot.slane %v319, 6
          %v766 = vrot.slane %v299, 6
          %v767 = vrot.slane %v302, 6
          %v768 = vrot.slane %v305, 6
          %v769 = vrot.slane %v308, 6
          %v770 = vrot.slane %v311, 6
          %v771 = vrot.slane %v314, 6
          %v772 = vrot.slane %v317, 6
          %v773 = vrot.slane %v320, 6
          %vm774 = vcmp.lt.s32.totalorder %v383, 2
          %v775 = vsel %vm774, %v758, %v766
          %v776 = vsel %vm774, %v759, %v767
          %v777 = vsel %vm774, %v760, %v768
          %v778 = vsel %vm774, %v761, %v769
          %v779 = vsel %vm774, %v762, %v770
          %v780 = vsel %vm774, %v763, %v771
          %v781 = vsel %vm774, %v764, %v772
          %v782 = vsel %vm774, %v765, %v773
          %v783 = vsel %vm774, %v750, %v758
          %v784 = vsel %vm774, %v751, %v759
          %v785 = vsel %vm774, %v752, %v760
          %v786 = vsel %vm774, %v753, %v761
          %v787 = vsel %vm774, %v754, %v762
          %v788 = vsel %vm774, %v755, %v763
          %v789 = vsel %vm774, %v756, %v764
          %v790 = vsel %vm774, %v757, %v765
          %v791 = vld [vmem:[#allocation4 + $0x6] sm:$0x1]
          %v792 = vlaneseq
          %v793 = vshrl.u32 %v792, 7
          %v794 = vsub.s32 0, %v793
          %v795 = vrot.slane %v791, %v794
          %v796 = vmul.f32 %v783, %v795
          %v797 = vmul.f32 %v775, %v795
          %v798 = vmul.f32 %v784, %v795
          %v799 = vmul.f32 %v776, %v795
          %v800 = vmul.f32 %v785, %v795
          %v801 = vmul.f32 %v777, %v795
          %v802 = vmul.f32 %v786, %v795
          %v803 = vmul.f32 %v778, %v795
          %v804 = vmul.f32 %v787, %v795
          %v805 = vmul.f32 %v779, %v795
          %v806 = vmul.f32 %v788, %v795
          %v807 = vmul.f32 %v780, %v795
          %v808 = vmul.f32 %v789, %v795
          %v809 = vmul.f32 %v781, %v795
          %v810 = vmul.f32 %v790, %v795
          %v811 = vmul.f32 %v782, %v795
          %v812 = vadd.f32 %v734, %v796
          %v813 = vadd.f32 %v735, %v797
          %v814 = vadd.f32 %v736, %v798
          %v815 = vadd.f32 %v737, %v799
          %v816 = vadd.f32 %v738, %v800
          %v817 = vadd.f32 %v739, %v801
          %v818 = vadd.f32 %v740, %v802
          %v819 = vadd.f32 %v741, %v803
          %v820 = vadd.f32 %v742, %v804
          %v821 = vadd.f32 %v743, %v805
          %v822 = vadd.f32 %v744, %v806
          %v823 = vadd.f32 %v745, %v807
          %v824 = vadd.f32 %v746, %v808
          %v825 = vadd.f32 %v747, %v809
          %v826 = vadd.f32 %v748, %v810
          %v827 = vadd.f32 %v749, %v811
          %s828 = sadd.s32 %s292, 1
          %s829 = smul.u32 %s828, 24
          %s830 = sadd.s32 %s829, %s294
          %s831 = scalar_lea.vmem [#allocation2], %s830
          %v832 = vld [vmem:[%s831] sm:$0xff]
          %v833 = vld [vmem:[%s831 + $0x8] sm:$0xff]
          %v834 = vld [vmem:[%s831 + $0x10] sm:$0xff]
          %v835 = vld [vmem:[%s831 + $0x18] sm:$0xff]
          %v836 = vld [vmem:[%s831 + $0x20] sm:$0xff]
          %v837 = vld [vmem:[%s831 + $0x28] sm:$0xff]
          %v838 = vld [vmem:[%s831 + $0x30] sm:$0xff]
          %v839 = vld [vmem:[%s831 + $0x38] sm:$0xff]
          %v840 = vld [vmem:[%s831 + $0x40] sm:$0xff]
          %v841 = vld [vmem:[%s831 + $0x48] sm:$0xff]
          %v842 = vld [vmem:[%s831 + $0x50] sm:$0xff]
          %v843 = vld [vmem:[%s831 + $0x58] sm:$0xff]
          %v844 = vld [vmem:[%s831 + $0x60] sm:$0xff]
          %v845 = vld [vmem:[%s831 + $0x68] sm:$0xff]
          %v846 = vld [vmem:[%s831 + $0x70] sm:$0xff]
          %v847 = vld [vmem:[%s831 + $0x78] sm:$0xff]
          %v848 = vld [vmem:[%s831 + $0x80] sm:$0xff]
          %v849 = vld [vmem:[%s831 + $0x88] sm:$0xff]
          %v850 = vld [vmem:[%s831 + $0x90] sm:$0xff]
          %v851 = vld [vmem:[%s831 + $0x98] sm:$0xff]
          %v852 = vld [vmem:[%s831 + $0xa0] sm:$0xff]
          %v853 = vld [vmem:[%s831 + $0xa8] sm:$0xff]
          %v854 = vld [vmem:[%s831 + $0xb0] sm:$0xff]
          %v855 = vld [vmem:[%s831 + $0xb8] sm:$0xff]
          %s856 = scalar_lea.vmem [#allocation4], 8
          %v857 = vld [vmem:[%s856] sm:$0x1]
          %v858 = vlaneseq
          %v859 = vshrl.u32 %v858, 7
          %v860 = vsub.s32 0, %v859
          %v861 = vrot.slane %v857, %v860
          %v862 = vmul.f32 %v832, %v861
          %v863 = vmul.f32 %v833, %v861
          %v864 = vmul.f32 %v835, %v861
          %v865 = vmul.f32 %v836, %v861
          %v866 = vmul.f32 %v838, %v861
          %v867 = vmul.f32 %v839, %v861
          %v868 = vmul.f32 %v841, %v861
          %v869 = vmul.f32 %v842, %v861
          %v870 = vmul.f32 %v844, %v861
          %v871 = vmul.f32 %v845, %v861
          %v872 = vmul.f32 %v847, %v861
          %v873 = vmul.f32 %v848, %v861
          %v874 = vmul.f32 %v850, %v861
          %v875 = vmul.f32 %v851, %v861
          %v876 = vmul.f32 %v853, %v861
          %v877 = vmul.f32 %v854, %v861
          %v878 = vadd.f32 %v812, %v862
          %v879 = vadd.f32 %v813, %v863
          %v880 = vadd.f32 %v814, %v864
          %v881 = vadd.f32 %v815, %v865
          %v882 = vadd.f32 %v816, %v866
          %v883 = vadd.f32 %v817, %v867
          %v884 = vadd.f32 %v818, %v868
          %v885 = vadd.f32 %v819, %v869
          %v886 = vadd.f32 %v820, %v870
          %v887 = vadd.f32 %v821, %v871
          %v888 = vadd.f32 %v822, %v872
          %v889 = vadd.f32 %v823, %v873
          %v890 = vadd.f32 %v824, %v874
          %v891 = vadd.f32 %v825, %v875
          %v892 = vadd.f32 %v826, %v876
          %v893 = vadd.f32 %v827, %v877
          %v894 = vrot.slane %v832, 1
          %v895 = vrot.slane %v835, 1
          %v896 = vrot.slane %v838, 1
          %v897 = vrot.slane %v841, 1
          %v898 = vrot.slane %v844, 1
          %v899 = vrot.slane %v847, 1
          %v900 = vrot.slane %v850, 1
          %v901 = vrot.slane %v853, 1
          %v902 = vrot.slane %v833, 1
          %v903 = vrot.slane %v836, 1
          %v904 = vrot.slane %v839, 1
          %v905 = vrot.slane %v842, 1
          %v906 = vrot.slane %v845, 1
          %v907 = vrot.slane %v848, 1
          %v908 = vrot.slane %v851, 1
          %v909 = vrot.slane %v854, 1
          %v910 = vrot.slane %v834, 1
          %v911 = vrot.slane %v837, 1
          %v912 = vrot.slane %v840, 1
          %v913 = vrot.slane %v843, 1
          %v914 = vrot.slane %v846, 1
          %v915 = vrot.slane %v849, 1
          %v916 = vrot.slane %v852, 1
          %v917 = vrot.slane %v855, 1
          %v918 = vsel %vm384, %v902, %v910
          %v919 = vsel %vm384, %v903, %v911
          %v920 = vsel %vm384, %v904, %v912
          %v921 = vsel %vm384, %v905, %v913
          %v922 = vsel %vm384, %v906, %v914
          %v923 = vsel %vm384, %v907, %v915
          %v924 = vsel %vm384, %v908, %v916
          %v925 = vsel %vm384, %v909, %v917
          %v926 = vsel %vm384, %v894, %v902
          %v927 = vsel %vm384, %v895, %v903
          %v928 = vsel %vm384, %v896, %v904
          %v929 = vsel %vm384, %v897, %v905
          %v930 = vsel %vm384, %v898, %v906
          %v931 = vsel %vm384, %v899, %v907
          %v932 = vsel %vm384, %v900, %v908
          %v933 = vsel %vm384, %v901, %v909
          %v934 = vld [vmem:[%s856 + $0x1] sm:$0x1]
          %v935 = vlaneseq
          %v936 = vshrl.u32 %v935, 7
          %v937 = vsub.s32 0, %v936
          %v938 = vrot.slane %v934, %v937
          %v939 = vmul.f32 %v926, %v938
          %v940 = vmul.f32 %v918, %v938
          %v941 = vmul.f32 %v927, %v938
          %v942 = vmul.f32 %v919, %v938
          %v943 = vmul.f32 %v928, %v938
          %v944 = vmul.f32 %v920, %v938
          %v945 = vmul.f32 %v929, %v938
          %v946 = vmul.f32 %v921, %v938
          %v947 = vmul.f32 %v930, %v938
          %v948 = vmul.f32 %v922, %v938
          %v949 = vmul.f32 %v931, %v938
          %v950 = vmul.f32 %v923, %v938
          %v951 = vmul.f32 %v932, %v938
          %v952 = vmul.f32 %v924, %v938
          %v953 = vmul.f32 %v933, %v938
          %v954 = vmul.f32 %v925, %v938
          %v955 = vadd.f32 %v878, %v939
          %v956 = vadd.f32 %v879, %v940
          %v957 = vadd.f32 %v880, %v941
          %v958 = vadd.f32 %v881, %v942
          %v959 = vadd.f32 %v882, %v943
          %v960 = vadd.f32 %v883, %v944
          %v961 = vadd.f32 %v884, %v945
          %v962 = vadd.f32 %v885, %v946
          %v963 = vadd.f32 %v886, %v947
          %v964 = vadd.f32 %v887, %v948
          %v965 = vadd.f32 %v888, %v949
          %v966 = vadd.f32 %v889, %v950
          %v967 = vadd.f32 %v890, %v951
          %v968 = vadd.f32 %v891, %v952
          %v969 = vadd.f32 %v892, %v953
          %v970 = vadd.f32 %v893, %v954
          %v971 = vrot.slane %v832, 2
          %v972 = vrot.slane %v835, 2
          %v973 = vrot.slane %v838, 2
          %v974 = vrot.slane %v841, 2
          %v975 = vrot.slane %v844, 2
          %v976 = vrot.slane %v847, 2
          %v977 = vrot.slane %v850, 2
          %v978 = vrot.slane %v853, 2
          %v979 = vrot.slane %v833, 2
          %v980 = vrot.slane %v836, 2
          %v981 = vrot.slane %v839, 2
          %v982 = vrot.slane %v842, 2
          %v983 = vrot.slane %v845, 2
          %v984 = vrot.slane %v848, 2
          %v985 = vrot.slane %v851, 2
          %v986 = vrot.slane %v854, 2
          %v987 = vrot.slane %v834, 2
          %v988 = vrot.slane %v837, 2
          %v989 = vrot.slane %v840, 2
          %v990 = vrot.slane %v843, 2
          %v991 = vrot.slane %v846, 2
          %v992 = vrot.slane %v849, 2
          %v993 = vrot.slane %v852, 2
          %v994 = vrot.slane %v855, 2
          %v995 = vsel %vm462, %v979, %v987
          %v996 = vsel %vm462, %v980, %v988
          %v997 = vsel %vm462, %v981, %v989
          %v998 = vsel %vm462, %v982, %v990
          %v999 = vsel %vm462, %v983, %v991
          %v1000 = vsel %vm462, %v984, %v992
          %v1001 = vsel %vm462, %v985, %v993
          %v1002 = vsel %vm462, %v986, %v994
          %v1003 = vsel %vm462, %v971, %v979
          %v1004 = vsel %vm462, %v972, %v980
          %v1005 = vsel %vm462, %v973, %v981
          %v1006 = vsel %vm462, %v974, %v982
          %v1007 = vsel %vm462, %v975, %v983
          %v1008 = vsel %vm462, %v976, %v984
          %v1009 = vsel %vm462, %v977, %v985
          %v1010 = vsel %vm462, %v978, %v986
          %v1011 = vld [vmem:[%s856 + $0x2] sm:$0x1]
          %v1012 = vlaneseq
          %v1013 = vshrl.u32 %v1012, 7
          %v1014 = vsub.s32 0, %v1013
          %v1015 = vrot.slane %v1011, %v1014
          %v1016 = vmul.f32 %v1003, %v1015
          %v1017 = vmul.f32 %v995, %v1015
          %v1018 = vmul.f32 %v1004, %v1015
          %v1019 = vmul.f32 %v996, %v1015
          %v1020 = vmul.f32 %v1005, %v1015
          %v1021 = vmul.f32 %v997, %v1015
          %v1022 = vmul.f32 %v1006, %v1015
          %v1023 = vmul.f32 %v998, %v1015
          %v1024 = vmul.f32 %v1007, %v1015
          %v1025 = vmul.f32 %v999, %v1015
          %v1026 = vmul.f32 %v1008, %v1015
          %v1027 = vmul.f32 %v1000, %v1015
          %v1028 = vmul.f32 %v1009, %v1015
          %v1029 = vmul.f32 %v1001, %v1015
          %v1030 = vmul.f32 %v1010, %v1015
          %v1031 = vmul.f32 %v1002, %v1015
          %v1032 = vadd.f32 %v955, %v1016
          %v1033 = vadd.f32 %v956, %v1017
          %v1034 = vadd.f32 %v957, %v1018
          %v1035 = vadd.f32 %v958, %v1019
          %v1036 = vadd.f32 %v959, %v1020
          %v1037 = vadd.f32 %v960, %v1021
          %v1038 = vadd.f32 %v961, %v1022
          %v1039 = vadd.f32 %v962, %v1023
          %v1040 = vadd.f32 %v963, %v1024
          %v1041 = vadd.f32 %v964, %v1025
          %v1042 = vadd.f32 %v965, %v1026
          %v1043 = vadd.f32 %v966, %v1027
          %v1044 = vadd.f32 %v967, %v1028
          %v1045 = vadd.f32 %v968, %v1029
          %v1046 = vadd.f32 %v969, %v1030
          %v1047 = vadd.f32 %v970, %v1031
          %v1048 = vrot.slane %v832, 3
          %v1049 = vrot.slane %v835, 3
          %v1050 = vrot.slane %v838, 3
          %v1051 = vrot.slane %v841, 3
          %v1052 = vrot.slane %v844, 3
          %v1053 = vrot.slane %v847, 3
          %v1054 = vrot.slane %v850, 3
          %v1055 = vrot.slane %v853, 3
          %v1056 = vrot.slane %v833, 3
          %v1057 = vrot.slane %v836, 3
          %v1058 = vrot.slane %v839, 3
          %v1059 = vrot.slane %v842, 3
          %v1060 = vrot.slane %v845, 3
          %v1061 = vrot.slane %v848, 3
          %v1062 = vrot.slane %v851, 3
          %v1063 = vrot.slane %v854, 3
          %v1064 = vrot.slane %v834, 3
          %v1065 = vrot.slane %v837, 3
          %v1066 = vrot.slane %v840, 3
          %v1067 = vrot.slane %v843, 3
          %v1068 = vrot.slane %v846, 3
          %v1069 = vrot.slane %v849, 3
          %v1070 = vrot.slane %v852, 3
          %v1071 = vrot.slane %v855, 3
          %v1072 = vsel %vm540, %v1056, %v1064
          %v1073 = vsel %vm540, %v1057, %v1065
          %v1074 = vsel %vm540, %v1058, %v1066
          %v1075 = vsel %vm540, %v1059, %v1067
          %v1076 = vsel %vm540, %v1060, %v1068
          %v1077 = vsel %vm540, %v1061, %v1069
          %v1078 = vsel %vm540, %v1062, %v1070
          %v1079 = vsel %vm540, %v1063, %v1071
          %v1080 = vsel %vm540, %v1048, %v1056
          %v1081 = vsel %vm540, %v1049, %v1057
          %v1082 = vsel %vm540, %v1050, %v1058
          %v1083 = vsel %vm540, %v1051, %v1059
          %v1084 = vsel %vm540, %v1052, %v1060
          %v1085 = vsel %vm540, %v1053, %v1061
          %v1086 = vsel %vm540, %v1054, %v1062
          %v1087 = vsel %vm540, %v1055, %v1063
          %v1088 = vld [vmem:[%s856 + $0x3] sm:$0x1]
          %v1089 = vlaneseq
          %v1090 = vshrl.u32 %v1089, 7
          %v1091 = vsub.s32 0, %v1090
          %v1092 = vrot.slane %v1088, %v1091
          %v1093 = vmul.f32 %v1080, %v1092
          %v1094 = vmul.f32 %v1072, %v1092
          %v1095 = vmul.f32 %v1081, %v1092
          %v1096 = vmul.f32 %v1073, %v1092
          %v1097 = vmul.f32 %v1082, %v1092
          %v1098 = vmul.f32 %v1074, %v1092
          %v1099 = vmul.f32 %v1083, %v1092
          %v1100 = vmul.f32 %v1075, %v1092
          %v1101 = vmul.f32 %v1084, %v1092
          %v1102 = vmul.f32 %v1076, %v1092
          %v1103 = vmul.f32 %v1085, %v1092
          %v1104 = vmul.f32 %v1077, %v1092
          %v1105 = vmul.f32 %v1086, %v1092
          %v1106 = vmul.f32 %v1078, %v1092
          %v1107 = vmul.f32 %v1087, %v1092
          %v1108 = vmul.f32 %v1079, %v1092
          %v1109 = vadd.f32 %v1032, %v1093
          %v1110 = vadd.f32 %v1033, %v1094
          %v1111 = vadd.f32 %v1034, %v1095
          %v1112 = vadd.f32 %v1035, %v1096
          %v1113 = vadd.f32 %v1036, %v1097
          %v1114 = vadd.f32 %v1037, %v1098
          %v1115 = vadd.f32 %v1038, %v1099
          %v1116 = vadd.f32 %v1039, %v1100
          %v1117 = vadd.f32 %v1040, %v1101
          %v1118 = vadd.f32 %v1041, %v1102
          %v1119 = vadd.f32 %v1042, %v1103
          %v1120 = vadd.f32 %v1043, %v1104
          %v1121 = vadd.f32 %v1044, %v1105
          %v1122 = vadd.f32 %v1045, %v1106
          %v1123 = vadd.f32 %v1046, %v1107
          %v1124 = vadd.f32 %v1047, %v1108
          %v1125 = vrot.slane %v832, 4
          %v1126 = vrot.slane %v835, 4
          %v1127 = vrot.slane %v838, 4
          %v1128 = vrot.slane %v841, 4
          %v1129 = vrot.slane %v844, 4
          %v1130 = vrot.slane %v847, 4
          %v1131 = vrot.slane %v850, 4
          %v1132 = vrot.slane %v853, 4
          %v1133 = vrot.slane %v833, 4
          %v1134 = vrot.slane %v836, 4
          %v1135 = vrot.slane %v839, 4
          %v1136 = vrot.slane %v842, 4
          %v1137 = vrot.slane %v845, 4
          %v1138 = vrot.slane %v848, 4
          %v1139 = vrot.slane %v851, 4
          %v1140 = vrot.slane %v854, 4
          %v1141 = vrot.slane %v834, 4
          %v1142 = vrot.slane %v837, 4
          %v1143 = vrot.slane %v840, 4
          %v1144 = vrot.slane %v843, 4
          %v1145 = vrot.slane %v846, 4
          %v1146 = vrot.slane %v849, 4
          %v1147 = vrot.slane %v852, 4
          %v1148 = vrot.slane %v855, 4
          %v1149 = vsel %vm618, %v1133, %v1141
          %v1150 = vsel %vm618, %v1134, %v1142
          %v1151 = vsel %vm618, %v1135, %v1143
          %v1152 = vsel %vm618, %v1136, %v1144
          %v1153 = vsel %vm618, %v1137, %v1145
          %v1154 = vsel %vm618, %v1138, %v1146
          %v1155 = vsel %vm618, %v1139, %v1147
          %v1156 = vsel %vm618, %v1140, %v1148
          %v1157 = vsel %vm618, %v1125, %v1133
          %v1158 = vsel %vm618, %v1126, %v1134
          %v1159 = vsel %vm618, %v1127, %v1135
          %v1160 = vsel %vm618, %v1128, %v1136
          %v1161 = vsel %vm618, %v1129, %v1137
          %v1162 = vsel %vm618, %v1130, %v1138
          %v1163 = vsel %vm618, %v1131, %v1139
          %v1164 = vsel %vm618, %v1132, %v1140
          %v1165 = vld [vmem:[%s856 + $0x4] sm:$0x1]
          %v1166 = vlaneseq
          %v1167 = vshrl.u32 %v1166, 7
          %v1168 = vsub.s32 0, %v1167
          %v1169 = vrot.slane %v1165, %v1168
          %v1170 = vmul.f32 %v1157, %v1169
          %v1171 = vmul.f32 %v1149, %v1169
          %v1172 = vmul.f32 %v1158, %v1169
          %v1173 = vmul.f32 %v1150, %v1169
          %v1174 = vmul.f32 %v1159, %v1169
          %v1175 = vmul.f32 %v1151, %v1169
          %v1176 = vmul.f32 %v1160, %v1169
          %v1177 = vmul.f32 %v1152, %v1169
          %v1178 = vmul.f32 %v1161, %v1169
          %v1179 = vmul.f32 %v1153, %v1169
          %v1180 = vmul.f32 %v1162, %v1169
          %v1181 = vmul.f32 %v1154, %v1169
          %v1182 = vmul.f32 %v1163, %v1169
          %v1183 = vmul.f32 %v1155, %v1169
          %v1184 = vmul.f32 %v1164, %v1169
          %v1185 = vmul.f32 %v1156, %v1169
          %v1186 = vadd.f32 %v1109, %v1170
          %v1187 = vadd.f32 %v1110, %v1171
          %v1188 = vadd.f32 %v1111, %v1172
          %v1189 = vadd.f32 %v1112, %v1173
          %v1190 = vadd.f32 %v1113, %v1174
          %v1191 = vadd.f32 %v1114, %v1175
          %v1192 = vadd.f32 %v1115, %v1176
          %v1193 = vadd.f32 %v1116, %v1177
          %v1194 = vadd.f32 %v1117, %v1178
          %v1195 = vadd.f32 %v1118, %v1179
          %v1196 = vadd.f32 %v1119, %v1180
          %v1197 = vadd.f32 %v1120, %v1181
          %v1198 = vadd.f32 %v1121, %v1182
          %v1199 = vadd.f32 %v1122, %v1183
          %v1200 = vadd.f32 %v1123, %v1184
          %v1201 = vadd.f32 %v1124, %v1185
          %v1202 = vrot.slane %v832, 5
          %v1203 = vrot.slane %v835, 5
          %v1204 = vrot.slane %v838, 5
          %v1205 = vrot.slane %v841, 5
          %v1206 = vrot.slane %v844, 5
          %v1207 = vrot.slane %v847, 5
          %v1208 = vrot.slane %v850, 5
          %v1209 = vrot.slane %v853, 5
          %v1210 = vrot.slane %v833, 5
          %v1211 = vrot.slane %v836, 5
          %v1212 = vrot.slane %v839, 5
          %v1213 = vrot.slane %v842, 5
          %v1214 = vrot.slane %v845, 5
          %v1215 = vrot.slane %v848, 5
          %v1216 = vrot.slane %v851, 5
          %v1217 = vrot.slane %v854, 5
          %v1218 = vrot.slane %v834, 5
          %v1219 = vrot.slane %v837, 5
          %v1220 = vrot.slane %v840, 5
          %v1221 = vrot.slane %v843, 5
          %v1222 = vrot.slane %v846, 5
          %v1223 = vrot.slane %v849, 5
          %v1224 = vrot.slane %v852, 5
          %v1225 = vrot.slane %v855, 5
          %v1226 = vsel %vm696, %v1210, %v1218
          %v1227 = vsel %vm696, %v1211, %v1219
          %v1228 = vsel %vm696, %v1212, %v1220
          %v1229 = vsel %vm696, %v1213, %v1221
          %v1230 = vsel %vm696, %v1214, %v1222
          %v1231 = vsel %vm696, %v1215, %v1223
          %v1232 = vsel %vm696, %v1216, %v1224
          %v1233 = vsel %vm696, %v1217, %v1225
          %v1234 = vsel %vm696, %v1202, %v1210
          %v1235 = vsel %vm696, %v1203, %v1211
          %v1236 = vsel %vm696, %v1204, %v1212
          %v1237 = vsel %vm696, %v1205, %v1213
          %v1238 = vsel %vm696, %v1206, %v1214
          %v1239 = vsel %vm696, %v1207, %v1215
          %v1240 = vsel %vm696, %v1208, %v1216
          %v1241 = vsel %vm696, %v1209, %v1217
          %v1242 = vld [vmem:[%s856 + $0x5] sm:$0x1]
          %v1243 = vlaneseq
          %v1244 = vshrl.u32 %v1243, 7
          %v1245 = vsub.s32 0, %v1244
          %v1246 = vrot.slane %v1242, %v1245
          %v1247 = vmul.f32 %v1234, %v1246
          %v1248 = vmul.f32 %v1226, %v1246
          %v1249 = vmul.f32 %v1235, %v1246
          %v1250 = vmul.f32 %v1227, %v1246
          %v1251 = vmul.f32 %v1236, %v1246
          %v1252 = vmul.f32 %v1228, %v1246
          %v1253 = vmul.f32 %v1237, %v1246
          %v1254 = vmul.f32 %v1229, %v1246
          %v1255 = vmul.f32 %v1238, %v1246
          %v1256 = vmul.f32 %v1230, %v1246
          %v1257 = vmul.f32 %v1239, %v1246
          %v1258 = vmul.f32 %v1231, %v1246
          %v1259 = vmul.f32 %v1240, %v1246
          %v1260 = vmul.f32 %v1232, %v1246
          %v1261 = vmul.f32 %v1241, %v1246
          %v1262 = vmul.f32 %v1233, %v1246
          %v1263 = vadd.f32 %v1186, %v1247
          %v1264 = vadd.f32 %v1187, %v1248
          %v1265 = vadd.f32 %v1188, %v1249
          %v1266 = vadd.f32 %v1189, %v1250
          %v1267 = vadd.f32 %v1190, %v1251
          %v1268 = vadd.f32 %v1191, %v1252
          %v1269 = vadd.f32 %v1192, %v1253
          %v1270 = vadd.f32 %v1193, %v1254
          %v1271 = vadd.f32 %v1194, %v1255
          %v1272 = vadd.f32 %v1195, %v1256
          %v1273 = vadd.f32 %v1196, %v1257
          %v1274 = vadd.f32 %v1197, %v1258
          %v1275 = vadd.f32 %v1198, %v1259
          %v1276 = vadd.f32 %v1199, %v1260
          %v1277 = vadd.f32 %v1200, %v1261
          %v1278 = vadd.f32 %v1201, %v1262
          %v1279 = vrot.slane %v832, 6
          %v1280 = vrot.slane %v835, 6
          %v1281 = vrot.slane %v838, 6
          %v1282 = vrot.slane %v841, 6
          %v1283 = vrot.slane %v844, 6
          %v1284 = vrot.slane %v847, 6
          %v1285 = vrot.slane %v850, 6
          %v1286 = vrot.slane %v853, 6
          %v1287 = vrot.slane %v833, 6
          %v1288 = vrot.slane %v836, 6
          %v1289 = vrot.slane %v839, 6
          %v1290 = vrot.slane %v842, 6
          %v1291 = vrot.slane %v845, 6
          %v1292 = vrot.slane %v848, 6
          %v1293 = vrot.slane %v851, 6
          %v1294 = vrot.slane %v854, 6
          %v1295 = vrot.slane %v834, 6
          %v1296 = vrot.slane %v837, 6
          %v1297 = vrot.slane %v840, 6
          %v1298 = vrot.slane %v843, 6
          %v1299 = vrot.slane %v846, 6
          %v1300 = vrot.slane %v849, 6
          %v1301 = vrot.slane %v852, 6
          %v1302 = vrot.slane %v855, 6
          %v1303 = vsel %vm774, %v1287, %v1295
          %v1304 = vsel %vm774, %v1288, %v1296
          %v1305 = vsel %vm774, %v1289, %v1297
          %v1306 = vsel %vm774, %v1290, %v1298
          %v1307 = vsel %vm774, %v1291, %v1299
          %v1308 = vsel %vm774, %v1292, %v1300
          %v1309 = vsel %vm774, %v1293, %v1301
          %v1310 = vsel %vm774, %v1294, %v1302
          %v1311 = vsel %vm774, %v1279, %v1287
          %v1312 = vsel %vm774, %v1280, %v1288
          %v1313 = vsel %vm774, %v1281, %v1289
          %v1314 = vsel %vm774, %v1282, %v1290
          %v1315 = vsel %vm774, %v1283, %v1291
          %v1316 = vsel %vm774, %v1284, %v1292
          %v1317 = vsel %vm774, %v1285, %v1293
          %v1318 = vsel %vm774, %v1286, %v1294
          %v1319 = vld [vmem:[%s856 + $0x6] sm:$0x1]
          %v1320 = vlaneseq
          %v1321 = vshrl.u32 %v1320, 7
          %v1322 = vsub.s32 0, %v1321
          %v1323 = vrot.slane %v1319, %v1322
          %v1324 = vmul.f32 %v1311, %v1323
          %v1325 = vmul.f32 %v1303, %v1323
          %v1326 = vmul.f32 %v1312, %v1323
          %v1327 = vmul.f32 %v1304, %v1323
          %v1328 = vmul.f32 %v1313, %v1323
          %v1329 = vmul.f32 %v1305, %v1323
          %v1330 = vmul.f32 %v1314, %v1323
          %v1331 = vmul.f32 %v1306, %v1323
          %v1332 = vmul.f32 %v1315, %v1323
          %v1333 = vmul.f32 %v1307, %v1323
          %v1334 = vmul.f32 %v1316, %v1323
          %v1335 = vmul.f32 %v1308, %v1323
          %v1336 = vmul.f32 %v1317, %v1323
          %v1337 = vmul.f32 %v1309, %v1323
          %v1338 = vmul.f32 %v1318, %v1323
          %v1339 = vmul.f32 %v1310, %v1323
          %v1340 = vadd.f32 %v1263, %v1324
          %v1341 = vadd.f32 %v1264, %v1325
          %v1342 = vadd.f32 %v1265, %v1326
          %v1343 = vadd.f32 %v1266, %v1327
          %v1344 = vadd.f32 %v1267, %v1328
          %v1345 = vadd.f32 %v1268, %v1329
          %v1346 = vadd.f32 %v1269, %v1330
          %v1347 = vadd.f32 %v1270, %v1331
          %v1348 = vadd.f32 %v1271, %v1332
          %v1349 = vadd.f32 %v1272, %v1333
          %v1350 = vadd.f32 %v1273, %v1334
          %v1351 = vadd.f32 %v1274, %v1335
          %v1352 = vadd.f32 %v1275, %v1336
          %v1353 = vadd.f32 %v1276, %v1337
          %v1354 = vadd.f32 %v1277, %v1338
          %v1355 = vadd.f32 %v1278, %v1339
          %s1356 = sadd.s32 %s292, 2
          %s1357 = smul.u32 %s1356, 24
          %s1358 = sadd.s32 %s1357, %s294
          %s1359 = scalar_lea.vmem [#allocation2], %s1358
          %v1360 = vld [vmem:[%s1359] sm:$0xff]
          %v1361 = vld [vmem:[%s1359 + $0x8] sm:$0xff]
          %v1362 = vld [vmem:[%s1359 + $0x10] sm:$0xff]
          %v1363 = vld [vmem:[%s1359 + $0x18] sm:$0xff]
          %v1364 = vld [vmem:[%s1359 + $0x20] sm:$0xff]
          %v1365 = vld [vmem:[%s1359 + $0x28] sm:$0xff]
          %v1366 = vld [vmem:[%s1359 + $0x30] sm:$0xff]
          %v1367 = vld [vmem:[%s1359 + $0x38] sm:$0xff]
          %v1368 = vld [vmem:[%s1359 + $0x40] sm:$0xff]
          %v1369 = vld [vmem:[%s1359 + $0x48] sm:$0xff]
          %v1370 = vld [vmem:[%s1359 + $0x50] sm:$0xff]
          %v1371 = vld [vmem:[%s1359 + $0x58] sm:$0xff]
          %v1372 = vld [vmem:[%s1359 + $0x60] sm:$0xff]
          %v1373 = vld [vmem:[%s1359 + $0x68] sm:$0xff]
          %v1374 = vld [vmem:[%s1359 + $0x70] sm:$0xff]
          %v1375 = vld [vmem:[%s1359 + $0x78] sm:$0xff]
          %v1376 = vld [vmem:[%s1359 + $0x80] sm:$0xff]
          %v1377 = vld [vmem:[%s1359 + $0x88] sm:$0xff]
          %v1378 = vld [vmem:[%s1359 + $0x90] sm:$0xff]
          %v1379 = vld [vmem:[%s1359 + $0x98] sm:$0xff]
          %v1380 = vld [vmem:[%s1359 + $0xa0] sm:$0xff]
          %v1381 = vld [vmem:[%s1359 + $0xa8] sm:$0xff]
          %v1382 = vld [vmem:[%s1359 + $0xb0] sm:$0xff]
          %v1383 = vld [vmem:[%s1359 + $0xb8] sm:$0xff]
          %s1384 = scalar_lea.vmem [#allocation4], 16
          %v1385 = vld [vmem:[%s1384] sm:$0x1]
          %v1386 = vlaneseq
          %v1387 = vshrl.u32 %v1386, 7
          %v1388 = vsub.s32 0, %v1387
          %v1389 = vrot.slane %v1385, %v1388
          %v1390 = vmul.f32 %v1360, %v1389
          %v1391 = vmul.f32 %v1361, %v1389
          %v1392 = vmul.f32 %v1363, %v1389
          %v1393 = vmul.f32 %v1364, %v1389
          %v1394 = vmul.f32 %v1366, %v1389
          %v1395 = vmul.f32 %v1367, %v1389
          %v1396 = vmul.f32 %v1369, %v1389
          %v1397 = vmul.f32 %v1370, %v1389
          %v1398 = vmul.f32 %v1372, %v1389
          %v1399 = vmul.f32 %v1373, %v1389
          %v1400 = vmul.f32 %v1375, %v1389
          %v1401 = vmul.f32 %v1376, %v1389
          %v1402 = vmul.f32 %v1378, %v1389
          %v1403 = vmul.f32 %v1379, %v1389
          %v1404 = vmul.f32 %v1381, %v1389
          %v1405 = vmul.f32 %v1382, %v1389
          %v1406 = vadd.f32 %v1340, %v1390
          %v1407 = vadd.f32 %v1341, %v1391
          %v1408 = vadd.f32 %v1342, %v1392
          %v1409 = vadd.f32 %v1343, %v1393
          %v1410 = vadd.f32 %v1344, %v1394
          %v1411 = vadd.f32 %v1345, %v1395
          %v1412 = vadd.f32 %v1346, %v1396
          %v1413 = vadd.f32 %v1347, %v1397
          %v1414 = vadd.f32 %v1348, %v1398
          %v1415 = vadd.f32 %v1349, %v1399
          %v1416 = vadd.f32 %v1350, %v1400
          %v1417 = vadd.f32 %v1351, %v1401
          %v1418 = vadd.f32 %v1352, %v1402
          %v1419 = vadd.f32 %v1353, %v1403
          %v1420 = vadd.f32 %v1354, %v1404
          %v1421 = vadd.f32 %v1355, %v1405
          %v1422 = vrot.slane %v1360, 1
          %v1423 = vrot.slane %v1363, 1
          %v1424 = vrot.slane %v1366, 1
          %v1425 = vrot.slane %v1369, 1
          %v1426 = vrot.slane %v1372, 1
          %v1427 = vrot.slane %v1375, 1
          %v1428 = vrot.slane %v1378, 1
          %v1429 = vrot.slane %v1381, 1
          %v1430 = vrot.slane %v1361, 1
          %v1431 = vrot.slane %v1364, 1
          %v1432 = vrot.slane %v1367, 1
          %v1433 = vrot.slane %v1370, 1
          %v1434 = vrot.slane %v1373, 1
          %v1435 = vrot.slane %v1376, 1
          %v1436 = vrot.slane %v1379, 1
          %v1437 = vrot.slane %v1382, 1
          %v1438 = vrot.slane %v1362, 1
          %v1439 = vrot.slane %v1365, 1
          %v1440 = vrot.slane %v1368, 1
          %v1441 = vrot.slane %v1371, 1
          %v1442 = vrot.slane %v1374, 1
          %v1443 = vrot.slane %v1377, 1
          %v1444 = vrot.slane %v1380, 1
          %v1445 = vrot.slane %v1383, 1
          %v1446 = vsel %vm384, %v1430, %v1438
          %v1447 = vsel %vm384, %v1431, %v1439
          %v1448 = vsel %vm384, %v1432, %v1440
          %v1449 = vsel %vm384, %v1433, %v1441
          %v1450 = vsel %vm384, %v1434, %v1442
          %v1451 = vsel %vm384, %v1435, %v1443
          %v1452 = vsel %vm384, %v1436, %v1444
          %v1453 = vsel %vm384, %v1437, %v1445
          %v1454 = vsel %vm384, %v1422, %v1430
          %v1455 = vsel %vm384, %v1423, %v1431
          %v1456 = vsel %vm384, %v1424, %v1432
          %v1457 = vsel %vm384, %v1425, %v1433
          %v1458 = vsel %vm384, %v1426, %v1434
          %v1459 = vsel %vm384, %v1427, %v1435
          %v1460 = vsel %vm384, %v1428, %v1436
          %v1461 = vsel %vm384, %v1429, %v1437
          %v1462 = vld [vmem:[%s1384 + $0x1] sm:$0x1]
          %v1463 = vlaneseq
          %v1464 = vshrl.u32 %v1463, 7
          %v1465 = vsub.s32 0, %v1464
          %v1466 = vrot.slane %v1462, %v1465
          %v1467 = vmul.f32 %v1454, %v1466
          %v1468 = vmul.f32 %v1446, %v1466
          %v1469 = vmul.f32 %v1455, %v1466
          %v1470 = vmul.f32 %v1447, %v1466
          %v1471 = vmul.f32 %v1456, %v1466
          %v1472 = vmul.f32 %v1448, %v1466
          %v1473 = vmul.f32 %v1457, %v1466
          %v1474 = vmul.f32 %v1449, %v1466
          %v1475 = vmul.f32 %v1458, %v1466
          %v1476 = vmul.f32 %v1450, %v1466
          %v1477 = vmul.f32 %v1459, %v1466
          %v1478 = vmul.f32 %v1451, %v1466
          %v1479 = vmul.f32 %v1460, %v1466
          %v1480 = vmul.f32 %v1452, %v1466
          %v1481 = vmul.f32 %v1461, %v1466
          %v1482 = vmul.f32 %v1453, %v1466
          %v1483 = vadd.f32 %v1406, %v1467
          %v1484 = vadd.f32 %v1407, %v1468
          %v1485 = vadd.f32 %v1408, %v1469
          %v1486 = vadd.f32 %v1409, %v1470
          %v1487 = vadd.f32 %v1410, %v1471
          %v1488 = vadd.f32 %v1411, %v1472
          %v1489 = vadd.f32 %v1412, %v1473
          %v1490 = vadd.f32 %v1413, %v1474
          %v1491 = vadd.f32 %v1414, %v1475
          %v1492 = vadd.f32 %v1415, %v1476
          %v1493 = vadd.f32 %v1416, %v1477
          %v1494 = vadd.f32 %v1417, %v1478
          %v1495 = vadd.f32 %v1418, %v1479
          %v1496 = vadd.f32 %v1419, %v1480
          %v1497 = vadd.f32 %v1420, %v1481
          %v1498 = vadd.f32 %v1421, %v1482
          %v1499 = vrot.slane %v1360, 2
          %v1500 = vrot.slane %v1363, 2
          %v1501 = vrot.slane %v1366, 2
          %v1502 = vrot.slane %v1369, 2
          %v1503 = vrot.slane %v1372, 2
          %v1504 = vrot.slane %v1375, 2
          %v1505 = vrot.slane %v1378, 2
          %v1506 = vrot.slane %v1381, 2
          %v1507 = vrot.slane %v1361, 2
          %v1508 = vrot.slane %v1364, 2
          %v1509 = vrot.slane %v1367, 2
          %v1510 = vrot.slane %v1370, 2
          %v1511 = vrot.slane %v1373, 2
          %v1512 = vrot.slane %v1376, 2
          %v1513 = vrot.slane %v1379, 2
          %v1514 = vrot.slane %v1382, 2
          %v1515 = vrot.slane %v1362, 2
          %v1516 = vrot.slane %v1365, 2
          %v1517 = vrot.slane %v1368, 2
          %v1518 = vrot.slane %v1371, 2
          %v1519 = vrot.slane %v1374, 2
          %v1520 = vrot.slane %v1377, 2
          %v1521 = vrot.slane %v1380, 2
          %v1522 = vrot.slane %v1383, 2
          %v1523 = vsel %vm462, %v1507, %v1515
          %v1524 = vsel %vm462, %v1508, %v1516
          %v1525 = vsel %vm462, %v1509, %v1517
          %v1526 = vsel %vm462, %v1510, %v1518
          %v1527 = vsel %vm462, %v1511, %v1519
          %v1528 = vsel %vm462, %v1512, %v1520
          %v1529 = vsel %vm462, %v1513, %v1521
          %v1530 = vsel %vm462, %v1514, %v1522
          %v1531 = vsel %vm462, %v1499, %v1507
          %v1532 = vsel %vm462, %v1500, %v1508
          %v1533 = vsel %vm462, %v1501, %v1509
          %v1534 = vsel %vm462, %v1502, %v1510
          %v1535 = vsel %vm462, %v1503, %v1511
          %v1536 = vsel %vm462, %v1504, %v1512
          %v1537 = vsel %vm462, %v1505, %v1513
          %v1538 = vsel %vm462, %v1506, %v1514
          %v1539 = vld [vmem:[%s1384 + $0x2] sm:$0x1]
          %v1540 = vlaneseq
          %v1541 = vshrl.u32 %v1540, 7
          %v1542 = vsub.s32 0, %v1541
          %v1543 = vrot.slane %v1539, %v1542
          %v1544 = vmul.f32 %v1531, %v1543
          %v1545 = vmul.f32 %v1523, %v1543
          %v1546 = vmul.f32 %v1532, %v1543
          %v1547 = vmul.f32 %v1524, %v1543
          %v1548 = vmul.f32 %v1533, %v1543
          %v1549 = vmul.f32 %v1525, %v1543
          %v1550 = vmul.f32 %v1534, %v1543
          %v1551 = vmul.f32 %v1526, %v1543
          %v1552 = vmul.f32 %v1535, %v1543
          %v1553 = vmul.f32 %v1527, %v1543
          %v1554 = vmul.f32 %v1536, %v1543
          %v1555 = vmul.f32 %v1528, %v1543
          %v1556 = vmul.f32 %v1537, %v1543
          %v1557 = vmul.f32 %v1529, %v1543
          %v1558 = vmul.f32 %v1538, %v1543
          %v1559 = vmul.f32 %v1530, %v1543
          %v1560 = vadd.f32 %v1483, %v1544
          %v1561 = vadd.f32 %v1484, %v1545
          %v1562 = vadd.f32 %v1485, %v1546
          %v1563 = vadd.f32 %v1486, %v1547
          %v1564 = vadd.f32 %v1487, %v1548
          %v1565 = vadd.f32 %v1488, %v1549
          %v1566 = vadd.f32 %v1489, %v1550
          %v1567 = vadd.f32 %v1490, %v1551
          %v1568 = vadd.f32 %v1491, %v1552
          %v1569 = vadd.f32 %v1492, %v1553
          %v1570 = vadd.f32 %v1493, %v1554
          %v1571 = vadd.f32 %v1494, %v1555
          %v1572 = vadd.f32 %v1495, %v1556
          %v1573 = vadd.f32 %v1496, %v1557
          %v1574 = vadd.f32 %v1497, %v1558
          %v1575 = vadd.f32 %v1498, %v1559
          %v1576 = vrot.slane %v1360, 3
          %v1577 = vrot.slane %v1363, 3
          %v1578 = vrot.slane %v1366, 3
          %v1579 = vrot.slane %v1369, 3
          %v1580 = vrot.slane %v1372, 3
          %v1581 = vrot.slane %v1375, 3
          %v1582 = vrot.slane %v1378, 3
          %v1583 = vrot.slane %v1381, 3
          %v1584 = vrot.slane %v1361, 3
          %v1585 = vrot.slane %v1364, 3
          %v1586 = vrot.slane %v1367, 3
          %v1587 = vrot.slane %v1370, 3
          %v1588 = vrot.slane %v1373, 3
          %v1589 = vrot.slane %v1376, 3
          %v1590 = vrot.slane %v1379, 3
          %v1591 = vrot.slane %v1382, 3
          %v1592 = vrot.slane %v1362, 3
          %v1593 = vrot.slane %v1365, 3
          %v1594 = vrot.slane %v1368, 3
          %v1595 = vrot.slane %v1371, 3
          %v1596 = vrot.slane %v1374, 3
          %v1597 = vrot.slane %v1377, 3
          %v1598 = vrot.slane %v1380, 3
          %v1599 = vrot.slane %v1383, 3
          %v1600 = vsel %vm540, %v1584, %v1592
          %v1601 = vsel %vm540, %v1585, %v1593
          %v1602 = vsel %vm540, %v1586, %v1594
          %v1603 = vsel %vm540, %v1587, %v1595
          %v1604 = vsel %vm540, %v1588, %v1596
          %v1605 = vsel %vm540, %v1589, %v1597
          %v1606 = vsel %vm540, %v1590, %v1598
          %v1607 = vsel %vm540, %v1591, %v1599
          %v1608 = vsel %vm540, %v1576, %v1584
          %v1609 = vsel %vm540, %v1577, %v1585
          %v1610 = vsel %vm540, %v1578, %v1586
          %v1611 = vsel %vm540, %v1579, %v1587
          %v1612 = vsel %vm540, %v1580, %v1588
          %v1613 = vsel %vm540, %v1581, %v1589
          %v1614 = vsel %vm540, %v1582, %v1590
          %v1615 = vsel %vm540, %v1583, %v1591
          %v1616 = vld [vmem:[%s1384 + $0x3] sm:$0x1]
          %v1617 = vlaneseq
          %v1618 = vshrl.u32 %v1617, 7
          %v1619 = vsub.s32 0, %v1618
          %v1620 = vrot.slane %v1616, %v1619
          %v1621 = vmul.f32 %v1608, %v1620
          %v1622 = vmul.f32 %v1600, %v1620
          %v1623 = vmul.f32 %v1609, %v1620
          %v1624 = vmul.f32 %v1601, %v1620
          %v1625 = vmul.f32 %v1610, %v1620
          %v1626 = vmul.f32 %v1602, %v1620
          %v1627 = vmul.f32 %v1611, %v1620
          %v1628 = vmul.f32 %v1603, %v1620
          %v1629 = vmul.f32 %v1612, %v1620
          %v1630 = vmul.f32 %v1604, %v1620
          %v1631 = vmul.f32 %v1613, %v1620
          %v1632 = vmul.f32 %v1605, %v1620
          %v1633 = vmul.f32 %v1614, %v1620
          %v1634 = vmul.f32 %v1606, %v1620
          %v1635 = vmul.f32 %v1615, %v1620
          %v1636 = vmul.f32 %v1607, %v1620
          %v1637 = vadd.f32 %v1560, %v1621
          %v1638 = vadd.f32 %v1561, %v1622
          %v1639 = vadd.f32 %v1562, %v1623
          %v1640 = vadd.f32 %v1563, %v1624
          %v1641 = vadd.f32 %v1564, %v1625
          %v1642 = vadd.f32 %v1565, %v1626
          %v1643 = vadd.f32 %v1566, %v1627
          %v1644 = vadd.f32 %v1567, %v1628
          %v1645 = vadd.f32 %v1568, %v1629
          %v1646 = vadd.f32 %v1569, %v1630
          %v1647 = vadd.f32 %v1570, %v1631
          %v1648 = vadd.f32 %v1571, %v1632
          %v1649 = vadd.f32 %v1572, %v1633
          %v1650 = vadd.f32 %v1573, %v1634
          %v1651 = vadd.f32 %v1574, %v1635
          %v1652 = vadd.f32 %v1575, %v1636
          %v1653 = vrot.slane %v1360, 4
          %v1654 = vrot.slane %v1363, 4
          %v1655 = vrot.slane %v1366, 4
          %v1656 = vrot.slane %v1369, 4
          %v1657 = vrot.slane %v1372, 4
          %v1658 = vrot.slane %v1375, 4
          %v1659 = vrot.slane %v1378, 4
          %v1660 = vrot.slane %v1381, 4
          %v1661 = vrot.slane %v1361, 4
          %v1662 = vrot.slane %v1364, 4
          %v1663 = vrot.slane %v1367, 4
          %v1664 = vrot.slane %v1370, 4
          %v1665 = vrot.slane %v1373, 4
          %v1666 = vrot.slane %v1376, 4
          %v1667 = vrot.slane %v1379, 4
          %v1668 = vrot.slane %v1382, 4
          %v1669 = vrot.slane %v1362, 4
          %v1670 = vrot.slane %v1365, 4
          %v1671 = vrot.slane %v1368, 4
          %v1672 = vrot.slane %v1371, 4
          %v1673 = vrot.slane %v1374, 4
          %v1674 = vrot.slane %v1377, 4
          %v1675 = vrot.slane %v1380, 4
          %v1676 = vrot.slane %v1383, 4
          %v1677 = vsel %vm618, %v1661, %v1669
          %v1678 = vsel %vm618, %v1662, %v1670
          %v1679 = vsel %vm618, %v1663, %v1671
          %v1680 = vsel %vm618, %v1664, %v1672
          %v1681 = vsel %vm618, %v1665, %v1673
          %v1682 = vsel %vm618, %v1666, %v1674
          %v1683 = vsel %vm618, %v1667, %v1675
          %v1684 = vsel %vm618, %v1668, %v1676
          %v1685 = vsel %vm618, %v1653, %v1661
          %v1686 = vsel %vm618, %v1654, %v1662
          %v1687 = vsel %vm618, %v1655, %v1663
          %v1688 = vsel %vm618, %v1656, %v1664
          %v1689 = vsel %vm618, %v1657, %v1665
          %v1690 = vsel %vm618, %v1658, %v1666
          %v1691 = vsel %vm618, %v1659, %v1667
          %v1692 = vsel %vm618, %v1660, %v1668
          %v1693 = vld [vmem:[%s1384 + $0x4] sm:$0x1]
          %v1694 = vlaneseq
          %v1695 = vshrl.u32 %v1694, 7
          %v1696 = vsub.s32 0, %v1695
          %v1697 = vrot.slane %v1693, %v1696
          %v1698 = vmul.f32 %v1685, %v1697
          %v1699 = vmul.f32 %v1677, %v1697
          %v1700 = vmul.f32 %v1686, %v1697
          %v1701 = vmul.f32 %v1678, %v1697
          %v1702 = vmul.f32 %v1687, %v1697
          %v1703 = vmul.f32 %v1679, %v1697
          %v1704 = vmul.f32 %v1688, %v1697
          %v1705 = vmul.f32 %v1680, %v1697
          %v1706 = vmul.f32 %v1689, %v1697
          %v1707 = vmul.f32 %v1681, %v1697
          %v1708 = vmul.f32 %v1690, %v1697
          %v1709 = vmul.f32 %v1682, %v1697
          %v1710 = vmul.f32 %v1691, %v1697
          %v1711 = vmul.f32 %v1683, %v1697
          %v1712 = vmul.f32 %v1692, %v1697
          %v1713 = vmul.f32 %v1684, %v1697
          %v1714 = vadd.f32 %v1637, %v1698
          %v1715 = vadd.f32 %v1638, %v1699
          %v1716 = vadd.f32 %v1639, %v1700
          %v1717 = vadd.f32 %v1640, %v1701
          %v1718 = vadd.f32 %v1641, %v1702
          %v1719 = vadd.f32 %v1642, %v1703
          %v1720 = vadd.f32 %v1643, %v1704
          %v1721 = vadd.f32 %v1644, %v1705
          %v1722 = vadd.f32 %v1645, %v1706
          %v1723 = vadd.f32 %v1646, %v1707
          %v1724 = vadd.f32 %v1647, %v1708
          %v1725 = vadd.f32 %v1648, %v1709
          %v1726 = vadd.f32 %v1649, %v1710
          %v1727 = vadd.f32 %v1650, %v1711
          %v1728 = vadd.f32 %v1651, %v1712
          %v1729 = vadd.f32 %v1652, %v1713
          %v1730 = vrot.slane %v1360, 5
          %v1731 = vrot.slane %v1363, 5
          %v1732 = vrot.slane %v1366, 5
          %v1733 = vrot.slane %v1369, 5
          %v1734 = vrot.slane %v1372, 5
          %v1735 = vrot.slane %v1375, 5
          %v1736 = vrot.slane %v1378, 5
          %v1737 = vrot.slane %v1381, 5
          %v1738 = vrot.slane %v1361, 5
          %v1739 = vrot.slane %v1364, 5
          %v1740 = vrot.slane %v1367, 5
          %v1741 = vrot.slane %v1370, 5
          %v1742 = vrot.slane %v1373, 5
          %v1743 = vrot.slane %v1376, 5
          %v1744 = vrot.slane %v1379, 5
          %v1745 = vrot.slane %v1382, 5
          %v1746 = vrot.slane %v1362, 5
          %v1747 = vrot.slane %v1365, 5
          %v1748 = vrot.slane %v1368, 5
          %v1749 = vrot.slane %v1371, 5
          %v1750 = vrot.slane %v1374, 5
          %v1751 = vrot.slane %v1377, 5
          %v1752 = vrot.slane %v1380, 5
          %v1753 = vrot.slane %v1383, 5
          %v1754 = vsel %vm696, %v1738, %v1746
          %v1755 = vsel %vm696, %v1739, %v1747
          %v1756 = vsel %vm696, %v1740, %v1748
          %v1757 = vsel %vm696, %v1741, %v1749
          %v1758 = vsel %vm696, %v1742, %v1750
          %v1759 = vsel %vm696, %v1743, %v1751
          %v1760 = vsel %vm696, %v1744, %v1752
          %v1761 = vsel %vm696, %v1745, %v1753
          %v1762 = vsel %vm696, %v1730, %v1738
          %v1763 = vsel %vm696, %v1731, %v1739
          %v1764 = vsel %vm696, %v1732, %v1740
          %v1765 = vsel %vm696, %v1733, %v1741
          %v1766 = vsel %vm696, %v1734, %v1742
          %v1767 = vsel %vm696, %v1735, %v1743
          %v1768 = vsel %vm696, %v1736, %v1744
          %v1769 = vsel %vm696, %v1737, %v1745
          %v1770 = vld [vmem:[%s1384 + $0x5] sm:$0x1]
          %v1771 = vlaneseq
          %v1772 = vshrl.u32 %v1771, 7
          %v1773 = vsub.s32 0, %v1772
          %v1774 = vrot.slane %v1770, %v1773
          %v1775 = vmul.f32 %v1762, %v1774
          %v1776 = vmul.f32 %v1754, %v1774
          %v1777 = vmul.f32 %v1763, %v1774
          %v1778 = vmul.f32 %v1755, %v1774
          %v1779 = vmul.f32 %v1764, %v1774
          %v1780 = vmul.f32 %v1756, %v1774
          %v1781 = vmul.f32 %v1765, %v1774
          %v1782 = vmul.f32 %v1757, %v1774
          %v1783 = vmul.f32 %v1766, %v1774
          %v1784 = vmul.f32 %v1758, %v1774
          %v1785 = vmul.f32 %v1767, %v1774
          %v1786 = vmul.f32 %v1759, %v1774
          %v1787 = vmul.f32 %v1768, %v1774
          %v1788 = vmul.f32 %v1760, %v1774
          %v1789 = vmul.f32 %v1769, %v1774
          %v1790 = vmul.f32 %v1761, %v1774
          %v1791 = vadd.f32 %v1714, %v1775
          %v1792 = vadd.f32 %v1715, %v1776
          %v1793 = vadd.f32 %v1716, %v1777
          %v1794 = vadd.f32 %v1717, %v1778
          %v1795 = vadd.f32 %v1718, %v1779
          %v1796 = vadd.f32 %v1719, %v1780
          %v1797 = vadd.f32 %v1720, %v1781
          %v1798 = vadd.f32 %v1721, %v1782
          %v1799 = vadd.f32 %v1722, %v1783
          %v1800 = vadd.f32 %v1723, %v1784
          %v1801 = vadd.f32 %v1724, %v1785
          %v1802 = vadd.f32 %v1725, %v1786
          %v1803 = vadd.f32 %v1726, %v1787
          %v1804 = vadd.f32 %v1727, %v1788
          %v1805 = vadd.f32 %v1728, %v1789
          %v1806 = vadd.f32 %v1729, %v1790
          %v1807 = vrot.slane %v1360, 6
          %v1808 = vrot.slane %v1363, 6
          %v1809 = vrot.slane %v1366, 6
          %v1810 = vrot.slane %v1369, 6
          %v1811 = vrot.slane %v1372, 6
          %v1812 = vrot.slane %v1375, 6
          %v1813 = vrot.slane %v1378, 6
          %v1814 = vrot.slane %v1381, 6
          %v1815 = vrot.slane %v1361, 6
          %v1816 = vrot.slane %v1364, 6
          %v1817 = vrot.slane %v1367, 6
          %v1818 = vrot.slane %v1370, 6
          %v1819 = vrot.slane %v1373, 6
          %v1820 = vrot.slane %v1376, 6
          %v1821 = vrot.slane %v1379, 6
          %v1822 = vrot.slane %v1382, 6
          %v1823 = vrot.slane %v1362, 6
          %v1824 = vrot.slane %v1365, 6
          %v1825 = vrot.slane %v1368, 6
          %v1826 = vrot.slane %v1371, 6
          %v1827 = vrot.slane %v1374, 6
          %v1828 = vrot.slane %v1377, 6
          %v1829 = vrot.slane %v1380, 6
          %v1830 = vrot.slane %v1383, 6
          %v1831 = vsel %vm774, %v1815, %v1823
          %v1832 = vsel %vm774, %v1816, %v1824
          %v1833 = vsel %vm774, %v1817, %v1825
          %v1834 = vsel %vm774, %v1818, %v1826
          %v1835 = vsel %vm774, %v1819, %v1827
          %v1836 = vsel %vm774, %v1820, %v1828
          %v1837 = vsel %vm774, %v1821, %v1829
          %v1838 = vsel %vm774, %v1822, %v1830
          %v1839 = vsel %vm774, %v1807, %v1815
          %v1840 = vsel %vm774, %v1808, %v1816
          %v1841 = vsel %vm774, %v1809, %v1817
          %v1842 = vsel %vm774, %v1810, %v1818
          %v1843 = vsel %vm774, %v1811, %v1819
          %v1844 = vsel %vm774, %v1812, %v1820
          %v1845 = vsel %vm774, %v1813, %v1821
          %v1846 = vsel %vm774, %v1814, %v1822
          %v1847 = vld [vmem:[%s1384 + $0x6] sm:$0x1]
          %v1848 = vlaneseq
          %v1849 = vshrl.u32 %v1848, 7
          %v1850 = vsub.s32 0, %v1849
          %v1851 = vrot.slane %v1847, %v1850
          %v1852 = vmul.f32 %v1839, %v1851
          %v1853 = vmul.f32 %v1831, %v1851
          %v1854 = vmul.f32 %v1840, %v1851
          %v1855 = vmul.f32 %v1832, %v1851
          %v1856 = vmul.f32 %v1841, %v1851
          %v1857 = vmul.f32 %v1833, %v1851
          %v1858 = vmul.f32 %v1842, %v1851
          %v1859 = vmul.f32 %v1834, %v1851
          %v1860 = vmul.f32 %v1843, %v1851
          %v1861 = vmul.f32 %v1835, %v1851
          %v1862 = vmul.f32 %v1844, %v1851
          %v1863 = vmul.f32 %v1836, %v1851
          %v1864 = vmul.f32 %v1845, %v1851
          %v1865 = vmul.f32 %v1837, %v1851
          %v1866 = vmul.f32 %v1846, %v1851
          %v1867 = vmul.f32 %v1838, %v1851
          %v1868 = vadd.f32 %v1791, %v1852
          %v1869 = vadd.f32 %v1792, %v1853
          %v1870 = vadd.f32 %v1793, %v1854
          %v1871 = vadd.f32 %v1794, %v1855
          %v1872 = vadd.f32 %v1795, %v1856
          %v1873 = vadd.f32 %v1796, %v1857
          %v1874 = vadd.f32 %v1797, %v1858
          %v1875 = vadd.f32 %v1798, %v1859
          %v1876 = vadd.f32 %v1799, %v1860
          %v1877 = vadd.f32 %v1800, %v1861
          %v1878 = vadd.f32 %v1801, %v1862
          %v1879 = vadd.f32 %v1802, %v1863
          %v1880 = vadd.f32 %v1803, %v1864
          %v1881 = vadd.f32 %v1804, %v1865
          %v1882 = vadd.f32 %v1805, %v1866
          %v1883 = vadd.f32 %v1806, %v1867
          %s1884 = sadd.s32 %s292, 3
          %s1885 = smul.u32 %s1884, 24
          %s1886 = sadd.s32 %s1885, %s294
          %s1887 = scalar_lea.vmem [#allocation2], %s1886
          %v1888 = vld [vmem:[%s1887] sm:$0xff]
          %v1889 = vld [vmem:[%s1887 + $0x8] sm:$0xff]
          %v1890 = vld [vmem:[%s1887 + $0x10] sm:$0xff]
          %v1891 = vld [vmem:[%s1887 + $0x18] sm:$0xff]
          %v1892 = vld [vmem:[%s1887 + $0x20] sm:$0xff]
          %v1893 = vld [vmem:[%s1887 + $0x28] sm:$0xff]
          %v1894 = vld [vmem:[%s1887 + $0x30] sm:$0xff]
          %v1895 = vld [vmem:[%s1887 + $0x38] sm:$0xff]
          %v1896 = vld [vmem:[%s1887 + $0x40] sm:$0xff]
          %v1897 = vld [vmem:[%s1887 + $0x48] sm:$0xff]
          %v1898 = vld [vmem:[%s1887 + $0x50] sm:$0xff]
          %v1899 = vld [vmem:[%s1887 + $0x58] sm:$0xff]
          %v1900 = vld [vmem:[%s1887 + $0x60] sm:$0xff]
          %v1901 = vld [vmem:[%s1887 + $0x68] sm:$0xff]
          %v1902 = vld [vmem:[%s1887 + $0x70] sm:$0xff]
          %v1903 = vld [vmem:[%s1887 + $0x78] sm:$0xff]
          %v1904 = vld [vmem:[%s1887 + $0x80] sm:$0xff]
          %v1905 = vld [vmem:[%s1887 + $0x88] sm:$0xff]
          %v1906 = vld [vmem:[%s1887 + $0x90] sm:$0xff]
          %v1907 = vld [vmem:[%s1887 + $0x98] sm:$0xff]
          %v1908 = vld [vmem:[%s1887 + $0xa0] sm:$0xff]
          %v1909 = vld [vmem:[%s1887 + $0xa8] sm:$0xff]
          %v1910 = vld [vmem:[%s1887 + $0xb0] sm:$0xff]
          %v1911 = vld [vmem:[%s1887 + $0xb8] sm:$0xff]
          %s1912 = scalar_lea.vmem [#allocation4], 24
          %v1913 = vld [vmem:[%s1912] sm:$0x1]
          %v1914 = vlaneseq
          %v1915 = vshrl.u32 %v1914, 7
          %v1916 = vsub.s32 0, %v1915
          %v1917 = vrot.slane %v1913, %v1916
          %v1918 = vmul.f32 %v1888, %v1917
          %v1919 = vmul.f32 %v1889, %v1917
          %v1920 = vmul.f32 %v1891, %v1917
          %v1921 = vmul.f32 %v1892, %v1917
          %v1922 = vmul.f32 %v1894, %v1917
          %v1923 = vmul.f32 %v1895, %v1917
          %v1924 = vmul.f32 %v1897, %v1917
          %v1925 = vmul.f32 %v1898, %v1917
          %v1926 = vmul.f32 %v1900, %v1917
          %v1927 = vmul.f32 %v1901, %v1917
          %v1928 = vmul.f32 %v1903, %v1917
          %v1929 = vmul.f32 %v1904, %v1917
          %v1930 = vmul.f32 %v1906, %v1917
          %v1931 = vmul.f32 %v1907, %v1917
          %v1932 = vmul.f32 %v1909, %v1917
          %v1933 = vmul.f32 %v1910, %v1917
          %v1934 = vadd.f32 %v1868, %v1918
          %v1935 = vadd.f32 %v1869, %v1919
          %v1936 = vadd.f32 %v1870, %v1920
          %v1937 = vadd.f32 %v1871, %v1921
          %v1938 = vadd.f32 %v1872, %v1922
          %v1939 = vadd.f32 %v1873, %v1923
          %v1940 = vadd.f32 %v1874, %v1924
          %v1941 = vadd.f32 %v1875, %v1925
          %v1942 = vadd.f32 %v1876, %v1926
          %v1943 = vadd.f32 %v1877, %v1927
          %v1944 = vadd.f32 %v1878, %v1928
          %v1945 = vadd.f32 %v1879, %v1929
          %v1946 = vadd.f32 %v1880, %v1930
          %v1947 = vadd.f32 %v1881, %v1931
          %v1948 = vadd.f32 %v1882, %v1932
          %v1949 = vadd.f32 %v1883, %v1933
          %v1950 = vrot.slane %v1888, 1
          %v1951 = vrot.slane %v1891, 1
          %v1952 = vrot.slane %v1894, 1
          %v1953 = vrot.slane %v1897, 1
          %v1954 = vrot.slane %v1900, 1
          %v1955 = vrot.slane %v1903, 1
          %v1956 = vrot.slane %v1906, 1
          %v1957 = vrot.slane %v1909, 1
          %v1958 = vrot.slane %v1889, 1
          %v1959 = vrot.slane %v1892, 1
          %v1960 = vrot.slane %v1895, 1
          %v1961 = vrot.slane %v1898, 1
          %v1962 = vrot.slane %v1901, 1
          %v1963 = vrot.slane %v1904, 1
          %v1964 = vrot.slane %v1907, 1
          %v1965 = vrot.slane %v1910, 1
          %v1966 = vrot.slane %v1890, 1
          %v1967 = vrot.slane %v1893, 1
          %v1968 = vrot.slane %v1896, 1
          %v1969 = vrot.slane %v1899, 1
          %v1970 = vrot.slane %v1902, 1
          %v1971 = vrot.slane %v1905, 1
          %v1972 = vrot.slane %v1908, 1
          %v1973 = vrot.slane %v1911, 1
          %v1974 = vsel %vm384, %v1958, %v1966
          %v1975 = vsel %vm384, %v1959, %v1967
          %v1976 = vsel %vm384, %v1960, %v1968
          %v1977 = vsel %vm384, %v1961, %v1969
          %v1978 = vsel %vm384, %v1962, %v1970
          %v1979 = vsel %vm384, %v1963, %v1971
          %v1980 = vsel %vm384, %v1964, %v1972
          %v1981 = vsel %vm384, %v1965, %v1973
          %v1982 = vsel %vm384, %v1950, %v1958
          %v1983 = vsel %vm384, %v1951, %v1959
          %v1984 = vsel %vm384, %v1952, %v1960
          %v1985 = vsel %vm384, %v1953, %v1961
          %v1986 = vsel %vm384, %v1954, %v1962
          %v1987 = vsel %vm384, %v1955, %v1963
          %v1988 = vsel %vm384, %v1956, %v1964
          %v1989 = vsel %vm384, %v1957, %v1965
          %v1990 = vld [vmem:[%s1912 + $0x1] sm:$0x1]
          %v1991 = vlaneseq
          %v1992 = vshrl.u32 %v1991, 7
          %v1993 = vsub.s32 0, %v1992
          %v1994 = vrot.slane %v1990, %v1993
          %v1995 = vmul.f32 %v1982, %v1994
          %v1996 = vmul.f32 %v1974, %v1994
          %v1997 = vmul.f32 %v1983, %v1994
          %v1998 = vmul.f32 %v1975, %v1994
          %v1999 = vmul.f32 %v1984, %v1994
          %v2000 = vmul.f32 %v1976, %v1994
          %v2001 = vmul.f32 %v1985, %v1994
          %v2002 = vmul.f32 %v1977, %v1994
          %v2003 = vmul.f32 %v1986, %v1994
          %v2004 = vmul.f32 %v1978, %v1994
          %v2005 = vmul.f32 %v1987, %v1994
          %v2006 = vmul.f32 %v1979, %v1994
          %v2007 = vmul.f32 %v1988, %v1994
          %v2008 = vmul.f32 %v1980, %v1994
          %v2009 = vmul.f32 %v1989, %v1994
          %v2010 = vmul.f32 %v1981, %v1994
          %v2011 = vadd.f32 %v1934, %v1995
          %v2012 = vadd.f32 %v1935, %v1996
          %v2013 = vadd.f32 %v1936, %v1997
          %v2014 = vadd.f32 %v1937, %v1998
          %v2015 = vadd.f32 %v1938, %v1999
          %v2016 = vadd.f32 %v1939, %v2000
          %v2017 = vadd.f32 %v1940, %v2001
          %v2018 = vadd.f32 %v1941, %v2002
          %v2019 = vadd.f32 %v1942, %v2003
          %v2020 = vadd.f32 %v1943, %v2004
          %v2021 = vadd.f32 %v1944, %v2005
          %v2022 = vadd.f32 %v1945, %v2006
          %v2023 = vadd.f32 %v1946, %v2007
          %v2024 = vadd.f32 %v1947, %v2008
          %v2025 = vadd.f32 %v1948, %v2009
          %v2026 = vadd.f32 %v1949, %v2010
          %v2027 = vrot.slane %v1888, 2
          %v2028 = vrot.slane %v1891, 2
          %v2029 = vrot.slane %v1894, 2
          %v2030 = vrot.slane %v1897, 2
          %v2031 = vrot.slane %v1900, 2
          %v2032 = vrot.slane %v1903, 2
          %v2033 = vrot.slane %v1906, 2
          %v2034 = vrot.slane %v1909, 2
          %v2035 = vrot.slane %v1889, 2
          %v2036 = vrot.slane %v1892, 2
          %v2037 = vrot.slane %v1895, 2
          %v2038 = vrot.slane %v1898, 2
          %v2039 = vrot.slane %v1901, 2
          %v2040 = vrot.slane %v1904, 2
          %v2041 = vrot.slane %v1907, 2
          %v2042 = vrot.slane %v1910, 2
          %v2043 = vrot.slane %v1890, 2
          %v2044 = vrot.slane %v1893, 2
          %v2045 = vrot.slane %v1896, 2
          %v2046 = vrot.slane %v1899, 2
          %v2047 = vrot.slane %v1902, 2
          %v2048 = vrot.slane %v1905, 2
          %v2049 = vrot.slane %v1908, 2
          %v2050 = vrot.slane %v1911, 2
          %v2051 = vsel %vm462, %v2035, %v2043
          %v2052 = vsel %vm462, %v2036, %v2044
          %v2053 = vsel %vm462, %v2037, %v2045
          %v2054 = vsel %vm462, %v2038, %v2046
          %v2055 = vsel %vm462, %v2039, %v2047
          %v2056 = vsel %vm462, %v2040, %v2048
          %v2057 = vsel %vm462, %v2041, %v2049
          %v2058 = vsel %vm462, %v2042, %v2050
          %v2059 = vsel %vm462, %v2027, %v2035
          %v2060 = vsel %vm462, %v2028, %v2036
          %v2061 = vsel %vm462, %v2029, %v2037
          %v2062 = vsel %vm462, %v2030, %v2038
          %v2063 = vsel %vm462, %v2031, %v2039
          %v2064 = vsel %vm462, %v2032, %v2040
          %v2065 = vsel %vm462, %v2033, %v2041
          %v2066 = vsel %vm462, %v2034, %v2042
          %v2067 = vld [vmem:[%s1912 + $0x2] sm:$0x1]
          %v2068 = vlaneseq
          %v2069 = vshrl.u32 %v2068, 7
          %v2070 = vsub.s32 0, %v2069
          %v2071 = vrot.slane %v2067, %v2070
          %v2072 = vmul.f32 %v2059, %v2071
          %v2073 = vmul.f32 %v2051, %v2071
          %v2074 = vmul.f32 %v2060, %v2071
          %v2075 = vmul.f32 %v2052, %v2071
          %v2076 = vmul.f32 %v2061, %v2071
          %v2077 = vmul.f32 %v2053, %v2071
          %v2078 = vmul.f32 %v2062, %v2071
          %v2079 = vmul.f32 %v2054, %v2071
          %v2080 = vmul.f32 %v2063, %v2071
          %v2081 = vmul.f32 %v2055, %v2071
          %v2082 = vmul.f32 %v2064, %v2071
          %v2083 = vmul.f32 %v2056, %v2071
          %v2084 = vmul.f32 %v2065, %v2071
          %v2085 = vmul.f32 %v2057, %v2071
          %v2086 = vmul.f32 %v2066, %v2071
          %v2087 = vmul.f32 %v2058, %v2071
          %v2088 = vadd.f32 %v2011, %v2072
          %v2089 = vadd.f32 %v2012, %v2073
          %v2090 = vadd.f32 %v2013, %v2074
          %v2091 = vadd.f32 %v2014, %v2075
          %v2092 = vadd.f32 %v2015, %v2076
          %v2093 = vadd.f32 %v2016, %v2077
          %v2094 = vadd.f32 %v2017, %v2078
          %v2095 = vadd.f32 %v2018, %v2079
          %v2096 = vadd.f32 %v2019, %v2080
          %v2097 = vadd.f32 %v2020, %v2081
          %v2098 = vadd.f32 %v2021, %v2082
          %v2099 = vadd.f32 %v2022, %v2083
          %v2100 = vadd.f32 %v2023, %v2084
          %v2101 = vadd.f32 %v2024, %v2085
          %v2102 = vadd.f32 %v2025, %v2086
          %v2103 = vadd.f32 %v2026, %v2087
          %v2104 = vrot.slane %v1888, 3
          %v2105 = vrot.slane %v1891, 3
          %v2106 = vrot.slane %v1894, 3
          %v2107 = vrot.slane %v1897, 3
          %v2108 = vrot.slane %v1900, 3
          %v2109 = vrot.slane %v1903, 3
          %v2110 = vrot.slane %v1906, 3
          %v2111 = vrot.slane %v1909, 3
          %v2112 = vrot.slane %v1889, 3
          %v2113 = vrot.slane %v1892, 3
          %v2114 = vrot.slane %v1895, 3
          %v2115 = vrot.slane %v1898, 3
          %v2116 = vrot.slane %v1901, 3
          %v2117 = vrot.slane %v1904, 3
          %v2118 = vrot.slane %v1907, 3
          %v2119 = vrot.slane %v1910, 3
          %v2120 = vrot.slane %v1890, 3
          %v2121 = vrot.slane %v1893, 3
          %v2122 = vrot.slane %v1896, 3
          %v2123 = vrot.slane %v1899, 3
          %v2124 = vrot.slane %v1902, 3
          %v2125 = vrot.slane %v1905, 3
          %v2126 = vrot.slane %v1908, 3
          %v2127 = vrot.slane %v1911, 3
          %v2128 = vsel %vm540, %v2112, %v2120
          %v2129 = vsel %vm540, %v2113, %v2121
          %v2130 = vsel %vm540, %v2114, %v2122
          %v2131 = vsel %vm540, %v2115, %v2123
          %v2132 = vsel %vm540, %v2116, %v2124
          %v2133 = vsel %vm540, %v2117, %v2125
          %v2134 = vsel %vm540, %v2118, %v2126
          %v2135 = vsel %vm540, %v2119, %v2127
          %v2136 = vsel %vm540, %v2104, %v2112
          %v2137 = vsel %vm540, %v2105, %v2113
          %v2138 = vsel %vm540, %v2106, %v2114
          %v2139 = vsel %vm540, %v2107, %v2115
          %v2140 = vsel %vm540, %v2108, %v2116
          %v2141 = vsel %vm540, %v2109, %v2117
          %v2142 = vsel %vm540, %v2110, %v2118
          %v2143 = vsel %vm540, %v2111, %v2119
          %v2144 = vld [vmem:[%s1912 + $0x3] sm:$0x1]
          %v2145 = vlaneseq
          %v2146 = vshrl.u32 %v2145, 7
          %v2147 = vsub.s32 0, %v2146
          %v2148 = vrot.slane %v2144, %v2147
          %v2149 = vmul.f32 %v2136, %v2148
          %v2150 = vmul.f32 %v2128, %v2148
          %v2151 = vmul.f32 %v2137, %v2148
          %v2152 = vmul.f32 %v2129, %v2148
          %v2153 = vmul.f32 %v2138, %v2148
          %v2154 = vmul.f32 %v2130, %v2148
          %v2155 = vmul.f32 %v2139, %v2148
          %v2156 = vmul.f32 %v2131, %v2148
          %v2157 = vmul.f32 %v2140, %v2148
          %v2158 = vmul.f32 %v2132, %v2148
          %v2159 = vmul.f32 %v2141, %v2148
          %v2160 = vmul.f32 %v2133, %v2148
          %v2161 = vmul.f32 %v2142, %v2148
          %v2162 = vmul.f32 %v2134, %v2148
          %v2163 = vmul.f32 %v2143, %v2148
          %v2164 = vmul.f32 %v2135, %v2148
          %v2165 = vadd.f32 %v2088, %v2149
          %v2166 = vadd.f32 %v2089, %v2150
          %v2167 = vadd.f32 %v2090, %v2151
          %v2168 = vadd.f32 %v2091, %v2152
          %v2169 = vadd.f32 %v2092, %v2153
          %v2170 = vadd.f32 %v2093, %v2154
          %v2171 = vadd.f32 %v2094, %v2155
          %v2172 = vadd.f32 %v2095, %v2156
          %v2173 = vadd.f32 %v2096, %v2157
          %v2174 = vadd.f32 %v2097, %v2158
          %v2175 = vadd.f32 %v2098, %v2159
          %v2176 = vadd.f32 %v2099, %v2160
          %v2177 = vadd.f32 %v2100, %v2161
          %v2178 = vadd.f32 %v2101, %v2162
          %v2179 = vadd.f32 %v2102, %v2163
          %v2180 = vadd.f32 %v2103, %v2164
          %v2181 = vrot.slane %v1888, 4
          %v2182 = vrot.slane %v1891, 4
          %v2183 = vrot.slane %v1894, 4
          %v2184 = vrot.slane %v1897, 4
          %v2185 = vrot.slane %v1900, 4
          %v2186 = vrot.slane %v1903, 4
          %v2187 = vrot.slane %v1906, 4
          %v2188 = vrot.slane %v1909, 4
          %v2189 = vrot.slane %v1889, 4
          %v2190 = vrot.slane %v1892, 4
          %v2191 = vrot.slane %v1895, 4
          %v2192 = vrot.slane %v1898, 4
          %v2193 = vrot.slane %v1901, 4
          %v2194 = vrot.slane %v1904, 4
          %v2195 = vrot.slane %v1907, 4
          %v2196 = vrot.slane %v1910, 4
          %v2197 = vrot.slane %v1890, 4
          %v2198 = vrot.slane %v1893, 4
          %v2199 = vrot.slane %v1896, 4
          %v2200 = vrot.slane %v1899, 4
          %v2201 = vrot.slane %v1902, 4
          %v2202 = vrot.slane %v1905, 4
          %v2203 = vrot.slane %v1908, 4
          %v2204 = vrot.slane %v1911, 4
          %v2205 = vsel %vm618, %v2189, %v2197
          %v2206 = vsel %vm618, %v2190, %v2198
          %v2207 = vsel %vm618, %v2191, %v2199
          %v2208 = vsel %vm618, %v2192, %v2200
          %v2209 = vsel %vm618, %v2193, %v2201
          %v2210 = vsel %vm618, %v2194, %v2202
          %v2211 = vsel %vm618, %v2195, %v2203
          %v2212 = vsel %vm618, %v2196, %v2204
          %v2213 = vsel %vm618, %v2181, %v2189
          %v2214 = vsel %vm618, %v2182, %v2190
          %v2215 = vsel %vm618, %v2183, %v2191
          %v2216 = vsel %vm618, %v2184, %v2192
          %v2217 = vsel %vm618, %v2185, %v2193
          %v2218 = vsel %vm618, %v2186, %v2194
          %v2219 = vsel %vm618, %v2187, %v2195
          %v2220 = vsel %vm618, %v2188, %v2196
          %v2221 = vld [vmem:[%s1912 + $0x4] sm:$0x1]
          %v2222 = vlaneseq
          %v2223 = vshrl.u32 %v2222, 7
          %v2224 = vsub.s32 0, %v2223
          %v2225 = vrot.slane %v2221, %v2224
          %v2226 = vmul.f32 %v2213, %v2225
          %v2227 = vmul.f32 %v2205, %v2225
          %v2228 = vmul.f32 %v2214, %v2225
          %v2229 = vmul.f32 %v2206, %v2225
          %v2230 = vmul.f32 %v2215, %v2225
          %v2231 = vmul.f32 %v2207, %v2225
          %v2232 = vmul.f32 %v2216, %v2225
          %v2233 = vmul.f32 %v2208, %v2225
          %v2234 = vmul.f32 %v2217, %v2225
          %v2235 = vmul.f32 %v2209, %v2225
          %v2236 = vmul.f32 %v2218, %v2225
          %v2237 = vmul.f32 %v2210, %v2225
          %v2238 = vmul.f32 %v2219, %v2225
          %v2239 = vmul.f32 %v2211, %v2225
          %v2240 = vmul.f32 %v2220, %v2225
          %v2241 = vmul.f32 %v2212, %v2225
          %v2242 = vadd.f32 %v2165, %v2226
          %v2243 = vadd.f32 %v2166, %v2227
          %v2244 = vadd.f32 %v2167, %v2228
          %v2245 = vadd.f32 %v2168, %v2229
          %v2246 = vadd.f32 %v2169, %v2230
          %v2247 = vadd.f32 %v2170, %v2231
          %v2248 = vadd.f32 %v2171, %v2232
          %v2249 = vadd.f32 %v2172, %v2233
          %v2250 = vadd.f32 %v2173, %v2234
          %v2251 = vadd.f32 %v2174, %v2235
          %v2252 = vadd.f32 %v2175, %v2236
          %v2253 = vadd.f32 %v2176, %v2237
          %v2254 = vadd.f32 %v2177, %v2238
          %v2255 = vadd.f32 %v2178, %v2239
          %v2256 = vadd.f32 %v2179, %v2240
          %v2257 = vadd.f32 %v2180, %v2241
          %v2258 = vrot.slane %v1888, 5
          %v2259 = vrot.slane %v1891, 5
          %v2260 = vrot.slane %v1894, 5
          %v2261 = vrot.slane %v1897, 5
          %v2262 = vrot.slane %v1900, 5
          %v2263 = vrot.slane %v1903, 5
          %v2264 = vrot.slane %v1906, 5
          %v2265 = vrot.slane %v1909, 5
          %v2266 = vrot.slane %v1889, 5
          %v2267 = vrot.slane %v1892, 5
          %v2268 = vrot.slane %v1895, 5
          %v2269 = vrot.slane %v1898, 5
          %v2270 = vrot.slane %v1901, 5
          %v2271 = vrot.slane %v1904, 5
          %v2272 = vrot.slane %v1907, 5
          %v2273 = vrot.slane %v1910, 5
          %v2274 = vrot.slane %v1890, 5
          %v2275 = vrot.slane %v1893, 5
          %v2276 = vrot.slane %v1896, 5
          %v2277 = vrot.slane %v1899, 5
          %v2278 = vrot.slane %v1902, 5
          %v2279 = vrot.slane %v1905, 5
          %v2280 = vrot.slane %v1908, 5
          %v2281 = vrot.slane %v1911, 5
          %v2282 = vsel %vm696, %v2266, %v2274
          %v2283 = vsel %vm696, %v2267, %v2275
          %v2284 = vsel %vm696, %v2268, %v2276
          %v2285 = vsel %vm696, %v2269, %v2277
          %v2286 = vsel %vm696, %v2270, %v2278
          %v2287 = vsel %vm696, %v2271, %v2279
          %v2288 = vsel %vm696, %v2272, %v2280
          %v2289 = vsel %vm696, %v2273, %v2281
          %v2290 = vsel %vm696, %v2258, %v2266
          %v2291 = vsel %vm696, %v2259, %v2267
          %v2292 = vsel %vm696, %v2260, %v2268
          %v2293 = vsel %vm696, %v2261, %v2269
          %v2294 = vsel %vm696, %v2262, %v2270
          %v2295 = vsel %vm696, %v2263, %v2271
          %v2296 = vsel %vm696, %v2264, %v2272
          %v2297 = vsel %vm696, %v2265, %v2273
          %v2298 = vld [vmem:[%s1912 + $0x5] sm:$0x1]
          %v2299 = vlaneseq
          %v2300 = vshrl.u32 %v2299, 7
          %v2301 = vsub.s32 0, %v2300
          %v2302 = vrot.slane %v2298, %v2301
          %v2303 = vmul.f32 %v2290, %v2302
          %v2304 = vmul.f32 %v2282, %v2302
          %v2305 = vmul.f32 %v2291, %v2302
          %v2306 = vmul.f32 %v2283, %v2302
          %v2307 = vmul.f32 %v2292, %v2302
          %v2308 = vmul.f32 %v2284, %v2302
          %v2309 = vmul.f32 %v2293, %v2302
          %v2310 = vmul.f32 %v2285, %v2302
          %v2311 = vmul.f32 %v2294, %v2302
          %v2312 = vmul.f32 %v2286, %v2302
          %v2313 = vmul.f32 %v2295, %v2302
          %v2314 = vmul.f32 %v2287, %v2302
          %v2315 = vmul.f32 %v2296, %v2302
          %v2316 = vmul.f32 %v2288, %v2302
          %v2317 = vmul.f32 %v2297, %v2302
          %v2318 = vmul.f32 %v2289, %v2302
          %v2319 = vadd.f32 %v2242, %v2303
          %v2320 = vadd.f32 %v2243, %v2304
          %v2321 = vadd.f32 %v2244, %v2305
          %v2322 = vadd.f32 %v2245, %v2306
          %v2323 = vadd.f32 %v2246, %v2307
          %v2324 = vadd.f32 %v2247, %v2308
          %v2325 = vadd.f32 %v2248, %v2309
          %v2326 = vadd.f32 %v2249, %v2310
          %v2327 = vadd.f32 %v2250, %v2311
          %v2328 = vadd.f32 %v2251, %v2312
          %v2329 = vadd.f32 %v2252, %v2313
          %v2330 = vadd.f32 %v2253, %v2314
          %v2331 = vadd.f32 %v2254, %v2315
          %v2332 = vadd.f32 %v2255, %v2316
          %v2333 = vadd.f32 %v2256, %v2317
          %v2334 = vadd.f32 %v2257, %v2318
          %v2335 = vrot.slane %v1888, 6
          %v2336 = vrot.slane %v1891, 6
          %v2337 = vrot.slane %v1894, 6
          %v2338 = vrot.slane %v1897, 6
          %v2339 = vrot.slane %v1900, 6
          %v2340 = vrot.slane %v1903, 6
          %v2341 = vrot.slane %v1906, 6
          %v2342 = vrot.slane %v1909, 6
          %v2343 = vrot.slane %v1889, 6
          %v2344 = vrot.slane %v1892, 6
          %v2345 = vrot.slane %v1895, 6
          %v2346 = vrot.slane %v1898, 6
          %v2347 = vrot.slane %v1901, 6
          %v2348 = vrot.slane %v1904, 6
          %v2349 = vrot.slane %v1907, 6
          %v2350 = vrot.slane %v1910, 6
          %v2351 = vrot.slane %v1890, 6
          %v2352 = vrot.slane %v1893, 6
          %v2353 = vrot.slane %v1896, 6
          %v2354 = vrot.slane %v1899, 6
          %v2355 = vrot.slane %v1902, 6
          %v2356 = vrot.slane %v1905, 6
          %v2357 = vrot.slane %v1908, 6
          %v2358 = vrot.slane %v1911, 6
          %v2359 = vsel %vm774, %v2343, %v2351
          %v2360 = vsel %vm774, %v2344, %v2352
          %v2361 = vsel %vm774, %v2345, %v2353
          %v2362 = vsel %vm774, %v2346, %v2354
          %v2363 = vsel %vm774, %v2347, %v2355
          %v2364 = vsel %vm774, %v2348, %v2356
          %v2365 = vsel %vm774, %v2349, %v2357
          %v2366 = vsel %vm774, %v2350, %v2358
          %v2367 = vsel %vm774, %v2335, %v2343
          %v2368 = vsel %vm774, %v2336, %v2344
          %v2369 = vsel %vm774, %v2337, %v2345
          %v2370 = vsel %vm774, %v2338, %v2346
          %v2371 = vsel %vm774, %v2339, %v2347
          %v2372 = vsel %vm774, %v2340, %v2348
          %v2373 = vsel %vm774, %v2341, %v2349
          %v2374 = vsel %vm774, %v2342, %v2350
          %v2375 = vld [vmem:[%s1912 + $0x6] sm:$0x1]
          %v2376 = vlaneseq
          %v2377 = vshrl.u32 %v2376, 7
          %v2378 = vsub.s32 0, %v2377
          %v2379 = vrot.slane %v2375, %v2378
          %v2380 = vmul.f32 %v2367, %v2379
          %v2381 = vmul.f32 %v2359, %v2379
          %v2382 = vmul.f32 %v2368, %v2379
          %v2383 = vmul.f32 %v2360, %v2379
          %v2384 = vmul.f32 %v2369, %v2379
          %v2385 = vmul.f32 %v2361, %v2379
          %v2386 = vmul.f32 %v2370, %v2379
          %v2387 = vmul.f32 %v2362, %v2379
          %v2388 = vmul.f32 %v2371, %v2379
          %v2389 = vmul.f32 %v2363, %v2379
          %v2390 = vmul.f32 %v2372, %v2379
          %v2391 = vmul.f32 %v2364, %v2379
          %v2392 = vmul.f32 %v2373, %v2379
          %v2393 = vmul.f32 %v2365, %v2379
          %v2394 = vmul.f32 %v2374, %v2379
          %v2395 = vmul.f32 %v2366, %v2379
          %v2396 = vadd.f32 %v2319, %v2380
          %v2397 = vadd.f32 %v2320, %v2381
          %v2398 = vadd.f32 %v2321, %v2382
          %v2399 = vadd.f32 %v2322, %v2383
          %v2400 = vadd.f32 %v2323, %v2384
          %v2401 = vadd.f32 %v2324, %v2385
          %v2402 = vadd.f32 %v2325, %v2386
          %v2403 = vadd.f32 %v2326, %v2387
          %v2404 = vadd.f32 %v2327, %v2388
          %v2405 = vadd.f32 %v2328, %v2389
          %v2406 = vadd.f32 %v2329, %v2390
          %v2407 = vadd.f32 %v2330, %v2391
          %v2408 = vadd.f32 %v2331, %v2392
          %v2409 = vadd.f32 %v2332, %v2393
          %v2410 = vadd.f32 %v2333, %v2394
          %v2411 = vadd.f32 %v2334, %v2395
          %s2412 = sadd.s32 %s292, 4
          %s2413 = smul.u32 %s2412, 24
          %s2414 = sadd.s32 %s2413, %s294
          %s2415 = scalar_lea.vmem [#allocation2], %s2414
          %v2416 = vld [vmem:[%s2415] sm:$0xff]
          %v2417 = vld [vmem:[%s2415 + $0x8] sm:$0xff]
          %v2418 = vld [vmem:[%s2415 + $0x10] sm:$0xff]
          %v2419 = vld [vmem:[%s2415 + $0x18] sm:$0xff]
          %v2420 = vld [vmem:[%s2415 + $0x20] sm:$0xff]
          %v2421 = vld [vmem:[%s2415 + $0x28] sm:$0xff]
          %v2422 = vld [vmem:[%s2415 + $0x30] sm:$0xff]
          %v2423 = vld [vmem:[%s2415 + $0x38] sm:$0xff]
          %v2424 = vld [vmem:[%s2415 + $0x40] sm:$0xff]
          %v2425 = vld [vmem:[%s2415 + $0x48] sm:$0xff]
          %v2426 = vld [vmem:[%s2415 + $0x50] sm:$0xff]
          %v2427 = vld [vmem:[%s2415 + $0x58] sm:$0xff]
          %v2428 = vld [vmem:[%s2415 + $0x60] sm:$0xff]
          %v2429 = vld [vmem:[%s2415 + $0x68] sm:$0xff]
          %v2430 = vld [vmem:[%s2415 + $0x70] sm:$0xff]
          %v2431 = vld [vmem:[%s2415 + $0x78] sm:$0xff]
          %v2432 = vld [vmem:[%s2415 + $0x80] sm:$0xff]
          %v2433 = vld [vmem:[%s2415 + $0x88] sm:$0xff]
          %v2434 = vld [vmem:[%s2415 + $0x90] sm:$0xff]
          %v2435 = vld [vmem:[%s2415 + $0x98] sm:$0xff]
          %v2436 = vld [vmem:[%s2415 + $0xa0] sm:$0xff]
          %v2437 = vld [vmem:[%s2415 + $0xa8] sm:$0xff]
          %v2438 = vld [vmem:[%s2415 + $0xb0] sm:$0xff]
          %v2439 = vld [vmem:[%s2415 + $0xb8] sm:$0xff]
          %s2440 = scalar_lea.vmem [#allocation4], 32
          %v2441 = vld [vmem:[%s2440] sm:$0x1]
          %v2442 = vlaneseq
          %v2443 = vshrl.u32 %v2442, 7
          %v2444 = vsub.s32 0, %v2443
          %v2445 = vrot.slane %v2441, %v2444
          %v2446 = vmul.f32 %v2416, %v2445
          %v2447 = vmul.f32 %v2417, %v2445
          %v2448 = vmul.f32 %v2419, %v2445
          %v2449 = vmul.f32 %v2420, %v2445
          %v2450 = vmul.f32 %v2422, %v2445
          %v2451 = vmul.f32 %v2423, %v2445
          %v2452 = vmul.f32 %v2425, %v2445
          %v2453 = vmul.f32 %v2426, %v2445
          %v2454 = vmul.f32 %v2428, %v2445
          %v2455 = vmul.f32 %v2429, %v2445
          %v2456 = vmul.f32 %v2431, %v2445
          %v2457 = vmul.f32 %v2432, %v2445
          %v2458 = vmul.f32 %v2434, %v2445
          %v2459 = vmul.f32 %v2435, %v2445
          %v2460 = vmul.f32 %v2437, %v2445
          %v2461 = vmul.f32 %v2438, %v2445
          %v2462 = vadd.f32 %v2396, %v2446
          %v2463 = vadd.f32 %v2397, %v2447
          %v2464 = vadd.f32 %v2398, %v2448
          %v2465 = vadd.f32 %v2399, %v2449
          %v2466 = vadd.f32 %v2400, %v2450
          %v2467 = vadd.f32 %v2401, %v2451
          %v2468 = vadd.f32 %v2402, %v2452
          %v2469 = vadd.f32 %v2403, %v2453
          %v2470 = vadd.f32 %v2404, %v2454
          %v2471 = vadd.f32 %v2405, %v2455
          %v2472 = vadd.f32 %v2406, %v2456
          %v2473 = vadd.f32 %v2407, %v2457
          %v2474 = vadd.f32 %v2408, %v2458
          %v2475 = vadd.f32 %v2409, %v2459
          %v2476 = vadd.f32 %v2410, %v2460
          %v2477 = vadd.f32 %v2411, %v2461
          %v2478 = vrot.slane %v2416, 1
          %v2479 = vrot.slane %v2419, 1
          %v2480 = vrot.slane %v2422, 1
          %v2481 = vrot.slane %v2425, 1
          %v2482 = vrot.slane %v2428, 1
          %v2483 = vrot.slane %v2431, 1
          %v2484 = vrot.slane %v2434, 1
          %v2485 = vrot.slane %v2437, 1
          %v2486 = vrot.slane %v2417, 1
          %v2487 = vrot.slane %v2420, 1
          %v2488 = vrot.slane %v2423, 1
          %v2489 = vrot.slane %v2426, 1
          %v2490 = vrot.slane %v2429, 1
          %v2491 = vrot.slane %v2432, 1
          %v2492 = vrot.slane %v2435, 1
          %v2493 = vrot.slane %v2438, 1
          %v2494 = vrot.slane %v2418, 1
          %v2495 = vrot.slane %v2421, 1
          %v2496 = vrot.slane %v2424, 1
          %v2497 = vrot.slane %v2427, 1
          %v2498 = vrot.slane %v2430, 1
          %v2499 = vrot.slane %v2433, 1
          %v2500 = vrot.slane %v2436, 1
          %v2501 = vrot.slane %v2439, 1
          %v2502 = vsel %vm384, %v2486, %v2494
          %v2503 = vsel %vm384, %v2487, %v2495
          %v2504 = vsel %vm384, %v2488, %v2496
          %v2505 = vsel %vm384, %v2489, %v2497
          %v2506 = vsel %vm384, %v2490, %v2498
          %v2507 = vsel %vm384, %v2491, %v2499
          %v2508 = vsel %vm384, %v2492, %v2500
          %v2509 = vsel %vm384, %v2493, %v2501
          %v2510 = vsel %vm384, %v2478, %v2486
          %v2511 = vsel %vm384, %v2479, %v2487
          %v2512 = vsel %vm384, %v2480, %v2488
          %v2513 = vsel %vm384, %v2481, %v2489
          %v2514 = vsel %vm384, %v2482, %v2490
          %v2515 = vsel %vm384, %v2483, %v2491
          %v2516 = vsel %vm384, %v2484, %v2492
          %v2517 = vsel %vm384, %v2485, %v2493
          %v2518 = vld [vmem:[%s2440 + $0x1] sm:$0x1]
          %v2519 = vlaneseq
          %v2520 = vshrl.u32 %v2519, 7
          %v2521 = vsub.s32 0, %v2520
          %v2522 = vrot.slane %v2518, %v2521
          %v2523 = vmul.f32 %v2510, %v2522
          %v2524 = vmul.f32 %v2502, %v2522
          %v2525 = vmul.f32 %v2511, %v2522
          %v2526 = vmul.f32 %v2503, %v2522
          %v2527 = vmul.f32 %v2512, %v2522
          %v2528 = vmul.f32 %v2504, %v2522
          %v2529 = vmul.f32 %v2513, %v2522
          %v2530 = vmul.f32 %v2505, %v2522
          %v2531 = vmul.f32 %v2514, %v2522
          %v2532 = vmul.f32 %v2506, %v2522
          %v2533 = vmul.f32 %v2515, %v2522
          %v2534 = vmul.f32 %v2507, %v2522
          %v2535 = vmul.f32 %v2516, %v2522
          %v2536 = vmul.f32 %v2508, %v2522
          %v2537 = vmul.f32 %v2517, %v2522
          %v2538 = vmul.f32 %v2509, %v2522
          %v2539 = vadd.f32 %v2462, %v2523
          %v2540 = vadd.f32 %v2463, %v2524
          %v2541 = vadd.f32 %v2464, %v2525
          %v2542 = vadd.f32 %v2465, %v2526
          %v2543 = vadd.f32 %v2466, %v2527
          %v2544 = vadd.f32 %v2467, %v2528
          %v2545 = vadd.f32 %v2468, %v2529
          %v2546 = vadd.f32 %v2469, %v2530
          %v2547 = vadd.f32 %v2470, %v2531
          %v2548 = vadd.f32 %v2471, %v2532
          %v2549 = vadd.f32 %v2472, %v2533
          %v2550 = vadd.f32 %v2473, %v2534
          %v2551 = vadd.f32 %v2474, %v2535
          %v2552 = vadd.f32 %v2475, %v2536
          %v2553 = vadd.f32 %v2476, %v2537
          %v2554 = vadd.f32 %v2477, %v2538
          %v2555 = vrot.slane %v2416, 2
          %v2556 = vrot.slane %v2419, 2
          %v2557 = vrot.slane %v2422, 2
          %v2558 = vrot.slane %v2425, 2
          %v2559 = vrot.slane %v2428, 2
          %v2560 = vrot.slane %v2431, 2
          %v2561 = vrot.slane %v2434, 2
          %v2562 = vrot.slane %v2437, 2
          %v2563 = vrot.slane %v2417, 2
          %v2564 = vrot.slane %v2420, 2
          %v2565 = vrot.slane %v2423, 2
          %v2566 = vrot.slane %v2426, 2
          %v2567 = vrot.slane %v2429, 2
          %v2568 = vrot.slane %v2432, 2
          %v2569 = vrot.slane %v2435, 2
          %v2570 = vrot.slane %v2438, 2
          %v2571 = vrot.slane %v2418, 2
          %v2572 = vrot.slane %v2421, 2
          %v2573 = vrot.slane %v2424, 2
          %v2574 = vrot.slane %v2427, 2
          %v2575 = vrot.slane %v2430, 2
          %v2576 = vrot.slane %v2433, 2
          %v2577 = vrot.slane %v2436, 2
          %v2578 = vrot.slane %v2439, 2
          %v2579 = vsel %vm462, %v2563, %v2571
          %v2580 = vsel %vm462, %v2564, %v2572
          %v2581 = vsel %vm462, %v2565, %v2573
          %v2582 = vsel %vm462, %v2566, %v2574
          %v2583 = vsel %vm462, %v2567, %v2575
          %v2584 = vsel %vm462, %v2568, %v2576
          %v2585 = vsel %vm462, %v2569, %v2577
          %v2586 = vsel %vm462, %v2570, %v2578
          %v2587 = vsel %vm462, %v2555, %v2563
          %v2588 = vsel %vm462, %v2556, %v2564
          %v2589 = vsel %vm462, %v2557, %v2565
          %v2590 = vsel %vm462, %v2558, %v2566
          %v2591 = vsel %vm462, %v2559, %v2567
          %v2592 = vsel %vm462, %v2560, %v2568
          %v2593 = vsel %vm462, %v2561, %v2569
          %v2594 = vsel %vm462, %v2562, %v2570
          %v2595 = vld [vmem:[%s2440 + $0x2] sm:$0x1]
          %v2596 = vlaneseq
          %v2597 = vshrl.u32 %v2596, 7
          %v2598 = vsub.s32 0, %v2597
          %v2599 = vrot.slane %v2595, %v2598
          %v2600 = vmul.f32 %v2587, %v2599
          %v2601 = vmul.f32 %v2579, %v2599
          %v2602 = vmul.f32 %v2588, %v2599
          %v2603 = vmul.f32 %v2580, %v2599
          %v2604 = vmul.f32 %v2589, %v2599
          %v2605 = vmul.f32 %v2581, %v2599
          %v2606 = vmul.f32 %v2590, %v2599
          %v2607 = vmul.f32 %v2582, %v2599
          %v2608 = vmul.f32 %v2591, %v2599
          %v2609 = vmul.f32 %v2583, %v2599
          %v2610 = vmul.f32 %v2592, %v2599
          %v2611 = vmul.f32 %v2584, %v2599
          %v2612 = vmul.f32 %v2593, %v2599
          %v2613 = vmul.f32 %v2585, %v2599
          %v2614 = vmul.f32 %v2594, %v2599
          %v2615 = vmul.f32 %v2586, %v2599
          %v2616 = vadd.f32 %v2539, %v2600
          %v2617 = vadd.f32 %v2540, %v2601
          %v2618 = vadd.f32 %v2541, %v2602
          %v2619 = vadd.f32 %v2542, %v2603
          %v2620 = vadd.f32 %v2543, %v2604
          %v2621 = vadd.f32 %v2544, %v2605
          %v2622 = vadd.f32 %v2545, %v2606
          %v2623 = vadd.f32 %v2546, %v2607
          %v2624 = vadd.f32 %v2547, %v2608
          %v2625 = vadd.f32 %v2548, %v2609
          %v2626 = vadd.f32 %v2549, %v2610
          %v2627 = vadd.f32 %v2550, %v2611
          %v2628 = vadd.f32 %v2551, %v2612
          %v2629 = vadd.f32 %v2552, %v2613
          %v2630 = vadd.f32 %v2553, %v2614
          %v2631 = vadd.f32 %v2554, %v2615
          %v2632 = vrot.slane %v2416, 3
          %v2633 = vrot.slane %v2419, 3
          %v2634 = vrot.slane %v2422, 3
          %v2635 = vrot.slane %v2425, 3
          %v2636 = vrot.slane %v2428, 3
          %v2637 = vrot.slane %v2431, 3
          %v2638 = vrot.slane %v2434, 3
          %v2639 = vrot.slane %v2437, 3
          %v2640 = vrot.slane %v2417, 3
          %v2641 = vrot.slane %v2420, 3
          %v2642 = vrot.slane %v2423, 3
          %v2643 = vrot.slane %v2426, 3
          %v2644 = vrot.slane %v2429, 3
          %v2645 = vrot.slane %v2432, 3
          %v2646 = vrot.slane %v2435, 3
          %v2647 = vrot.slane %v2438, 3
          %v2648 = vrot.slane %v2418, 3
          %v2649 = vrot.slane %v2421, 3
          %v2650 = vrot.slane %v2424, 3
          %v2651 = vrot.slane %v2427, 3
          %v2652 = vrot.slane %v2430, 3
          %v2653 = vrot.slane %v2433, 3
          %v2654 = vrot.slane %v2436, 3
          %v2655 = vrot.slane %v2439, 3
          %v2656 = vsel %vm540, %v2640, %v2648
          %v2657 = vsel %vm540, %v2641, %v2649
          %v2658 = vsel %vm540, %v2642, %v2650
          %v2659 = vsel %vm540, %v2643, %v2651
          %v2660 = vsel %vm540, %v2644, %v2652
          %v2661 = vsel %vm540, %v2645, %v2653
          %v2662 = vsel %vm540, %v2646, %v2654
          %v2663 = vsel %vm540, %v2647, %v2655
          %v2664 = vsel %vm540, %v2632, %v2640
          %v2665 = vsel %vm540, %v2633, %v2641
          %v2666 = vsel %vm540, %v2634, %v2642
          %v2667 = vsel %vm540, %v2635, %v2643
          %v2668 = vsel %vm540, %v2636, %v2644
          %v2669 = vsel %vm540, %v2637, %v2645
          %v2670 = vsel %vm540, %v2638, %v2646
          %v2671 = vsel %vm540, %v2639, %v2647
          %v2672 = vld [vmem:[%s2440 + $0x3] sm:$0x1]
          %v2673 = vlaneseq
          %v2674 = vshrl.u32 %v2673, 7
          %v2675 = vsub.s32 0, %v2674
          %v2676 = vrot.slane %v2672, %v2675
          %v2677 = vmul.f32 %v2664, %v2676
          %v2678 = vmul.f32 %v2656, %v2676
          %v2679 = vmul.f32 %v2665, %v2676
          %v2680 = vmul.f32 %v2657, %v2676
          %v2681 = vmul.f32 %v2666, %v2676
          %v2682 = vmul.f32 %v2658, %v2676
          %v2683 = vmul.f32 %v2667, %v2676
          %v2684 = vmul.f32 %v2659, %v2676
          %v2685 = vmul.f32 %v2668, %v2676
          %v2686 = vmul.f32 %v2660, %v2676
          %v2687 = vmul.f32 %v2669, %v2676
          %v2688 = vmul.f32 %v2661, %v2676
          %v2689 = vmul.f32 %v2670, %v2676
          %v2690 = vmul.f32 %v2662, %v2676
          %v2691 = vmul.f32 %v2671, %v2676
          %v2692 = vmul.f32 %v2663, %v2676
          %v2693 = vadd.f32 %v2616, %v2677
          %v2694 = vadd.f32 %v2617, %v2678
          %v2695 = vadd.f32 %v2618, %v2679
          %v2696 = vadd.f32 %v2619, %v2680
          %v2697 = vadd.f32 %v2620, %v2681
          %v2698 = vadd.f32 %v2621, %v2682
          %v2699 = vadd.f32 %v2622, %v2683
          %v2700 = vadd.f32 %v2623, %v2684
          %v2701 = vadd.f32 %v2624, %v2685
          %v2702 = vadd.f32 %v2625, %v2686
          %v2703 = vadd.f32 %v2626, %v2687
          %v2704 = vadd.f32 %v2627, %v2688
          %v2705 = vadd.f32 %v2628, %v2689
          %v2706 = vadd.f32 %v2629, %v2690
          %v2707 = vadd.f32 %v2630, %v2691
          %v2708 = vadd.f32 %v2631, %v2692
          %v2709 = vrot.slane %v2416, 4
          %v2710 = vrot.slane %v2419, 4
          %v2711 = vrot.slane %v2422, 4
          %v2712 = vrot.slane %v2425, 4
          %v2713 = vrot.slane %v2428, 4
          %v2714 = vrot.slane %v2431, 4
          %v2715 = vrot.slane %v2434, 4
          %v2716 = vrot.slane %v2437, 4
          %v2717 = vrot.slane %v2417, 4
          %v2718 = vrot.slane %v2420, 4
          %v2719 = vrot.slane %v2423, 4
          %v2720 = vrot.slane %v2426, 4
          %v2721 = vrot.slane %v2429, 4
          %v2722 = vrot.slane %v2432, 4
          %v2723 = vrot.slane %v2435, 4
          %v2724 = vrot.slane %v2438, 4
          %v2725 = vrot.slane %v2418, 4
          %v2726 = vrot.slane %v2421, 4
          %v2727 = vrot.slane %v2424, 4
          %v2728 = vrot.slane %v2427, 4
          %v2729 = vrot.slane %v2430, 4
          %v2730 = vrot.slane %v2433, 4
          %v2731 = vrot.slane %v2436, 4
          %v2732 = vrot.slane %v2439, 4
          %v2733 = vsel %vm618, %v2717, %v2725
          %v2734 = vsel %vm618, %v2718, %v2726
          %v2735 = vsel %vm618, %v2719, %v2727
          %v2736 = vsel %vm618, %v2720, %v2728
          %v2737 = vsel %vm618, %v2721, %v2729
          %v2738 = vsel %vm618, %v2722, %v2730
          %v2739 = vsel %vm618, %v2723, %v2731
          %v2740 = vsel %vm618, %v2724, %v2732
          %v2741 = vsel %vm618, %v2709, %v2717
          %v2742 = vsel %vm618, %v2710, %v2718
          %v2743 = vsel %vm618, %v2711, %v2719
          %v2744 = vsel %vm618, %v2712, %v2720
          %v2745 = vsel %vm618, %v2713, %v2721
          %v2746 = vsel %vm618, %v2714, %v2722
          %v2747 = vsel %vm618, %v2715, %v2723
          %v2748 = vsel %vm618, %v2716, %v2724
          %v2749 = vld [vmem:[%s2440 + $0x4] sm:$0x1]
          %v2750 = vlaneseq
          %v2751 = vshrl.u32 %v2750, 7
          %v2752 = vsub.s32 0, %v2751
          %v2753 = vrot.slane %v2749, %v2752
          %v2754 = vmul.f32 %v2741, %v2753
          %v2755 = vmul.f32 %v2733, %v2753
          %v2756 = vmul.f32 %v2742, %v2753
          %v2757 = vmul.f32 %v2734, %v2753
          %v2758 = vmul.f32 %v2743, %v2753
          %v2759 = vmul.f32 %v2735, %v2753
          %v2760 = vmul.f32 %v2744, %v2753
          %v2761 = vmul.f32 %v2736, %v2753
          %v2762 = vmul.f32 %v2745, %v2753
          %v2763 = vmul.f32 %v2737, %v2753
          %v2764 = vmul.f32 %v2746, %v2753
          %v2765 = vmul.f32 %v2738, %v2753
          %v2766 = vmul.f32 %v2747, %v2753
          %v2767 = vmul.f32 %v2739, %v2753
          %v2768 = vmul.f32 %v2748, %v2753
          %v2769 = vmul.f32 %v2740, %v2753
          %v2770 = vadd.f32 %v2693, %v2754
          %v2771 = vadd.f32 %v2694, %v2755
          %v2772 = vadd.f32 %v2695, %v2756
          %v2773 = vadd.f32 %v2696, %v2757
          %v2774 = vadd.f32 %v2697, %v2758
          %v2775 = vadd.f32 %v2698, %v2759
          %v2776 = vadd.f32 %v2699, %v2760
          %v2777 = vadd.f32 %v2700, %v2761
          %v2778 = vadd.f32 %v2701, %v2762
          %v2779 = vadd.f32 %v2702, %v2763
          %v2780 = vadd.f32 %v2703, %v2764
          %v2781 = vadd.f32 %v2704, %v2765
          %v2782 = vadd.f32 %v2705, %v2766
          %v2783 = vadd.f32 %v2706, %v2767
          %v2784 = vadd.f32 %v2707, %v2768
          %v2785 = vadd.f32 %v2708, %v2769
          %v2786 = vrot.slane %v2416, 5
          %v2787 = vrot.slane %v2419, 5
          %v2788 = vrot.slane %v2422, 5
          %v2789 = vrot.slane %v2425, 5
          %v2790 = vrot.slane %v2428, 5
          %v2791 = vrot.slane %v2431, 5
          %v2792 = vrot.slane %v2434, 5
          %v2793 = vrot.slane %v2437, 5
          %v2794 = vrot.slane %v2417, 5
          %v2795 = vrot.slane %v2420, 5
          %v2796 = vrot.slane %v2423, 5
          %v2797 = vrot.slane %v2426, 5
          %v2798 = vrot.slane %v2429, 5
          %v2799 = vrot.slane %v2432, 5
          %v2800 = vrot.slane %v2435, 5
          %v2801 = vrot.slane %v2438, 5
          %v2802 = vrot.slane %v2418, 5
          %v2803 = vrot.slane %v2421, 5
          %v2804 = vrot.slane %v2424, 5
          %v2805 = vrot.slane %v2427, 5
          %v2806 = vrot.slane %v2430, 5
          %v2807 = vrot.slane %v2433, 5
          %v2808 = vrot.slane %v2436, 5
          %v2809 = vrot.slane %v2439, 5
          %v2810 = vsel %vm696, %v2794, %v2802
          %v2811 = vsel %vm696, %v2795, %v2803
          %v2812 = vsel %vm696, %v2796, %v2804
          %v2813 = vsel %vm696, %v2797, %v2805
          %v2814 = vsel %vm696, %v2798, %v2806
          %v2815 = vsel %vm696, %v2799, %v2807
          %v2816 = vsel %vm696, %v2800, %v2808
          %v2817 = vsel %vm696, %v2801, %v2809
          %v2818 = vsel %vm696, %v2786, %v2794
          %v2819 = vsel %vm696, %v2787, %v2795
          %v2820 = vsel %vm696, %v2788, %v2796
          %v2821 = vsel %vm696, %v2789, %v2797
          %v2822 = vsel %vm696, %v2790, %v2798
          %v2823 = vsel %vm696, %v2791, %v2799
          %v2824 = vsel %vm696, %v2792, %v2800
          %v2825 = vsel %vm696, %v2793, %v2801
          %v2826 = vld [vmem:[%s2440 + $0x5] sm:$0x1]
          %v2827 = vlaneseq
          %v2828 = vshrl.u32 %v2827, 7
          %v2829 = vsub.s32 0, %v2828
          %v2830 = vrot.slane %v2826, %v2829
          %v2831 = vmul.f32 %v2818, %v2830
          %v2832 = vmul.f32 %v2810, %v2830
          %v2833 = vmul.f32 %v2819, %v2830
          %v2834 = vmul.f32 %v2811, %v2830
          %v2835 = vmul.f32 %v2820, %v2830
          %v2836 = vmul.f32 %v2812, %v2830
          %v2837 = vmul.f32 %v2821, %v2830
          %v2838 = vmul.f32 %v2813, %v2830
          %v2839 = vmul.f32 %v2822, %v2830
          %v2840 = vmul.f32 %v2814, %v2830
          %v2841 = vmul.f32 %v2823, %v2830
          %v2842 = vmul.f32 %v2815, %v2830
          %v2843 = vmul.f32 %v2824, %v2830
          %v2844 = vmul.f32 %v2816, %v2830
          %v2845 = vmul.f32 %v2825, %v2830
          %v2846 = vmul.f32 %v2817, %v2830
          %v2847 = vadd.f32 %v2770, %v2831
          %v2848 = vadd.f32 %v2771, %v2832
          %v2849 = vadd.f32 %v2772, %v2833
          %v2850 = vadd.f32 %v2773, %v2834
          %v2851 = vadd.f32 %v2774, %v2835
          %v2852 = vadd.f32 %v2775, %v2836
          %v2853 = vadd.f32 %v2776, %v2837
          %v2854 = vadd.f32 %v2777, %v2838
          %v2855 = vadd.f32 %v2778, %v2839
          %v2856 = vadd.f32 %v2779, %v2840
          %v2857 = vadd.f32 %v2780, %v2841
          %v2858 = vadd.f32 %v2781, %v2842
          %v2859 = vadd.f32 %v2782, %v2843
          %v2860 = vadd.f32 %v2783, %v2844
          %v2861 = vadd.f32 %v2784, %v2845
          %v2862 = vadd.f32 %v2785, %v2846
          %v2863 = vrot.slane %v2416, 6
          %v2864 = vrot.slane %v2419, 6
          %v2865 = vrot.slane %v2422, 6
          %v2866 = vrot.slane %v2425, 6
          %v2867 = vrot.slane %v2428, 6
          %v2868 = vrot.slane %v2431, 6
          %v2869 = vrot.slane %v2434, 6
          %v2870 = vrot.slane %v2437, 6
          %v2871 = vrot.slane %v2417, 6
          %v2872 = vrot.slane %v2420, 6
          %v2873 = vrot.slane %v2423, 6
          %v2874 = vrot.slane %v2426, 6
          %v2875 = vrot.slane %v2429, 6
          %v2876 = vrot.slane %v2432, 6
          %v2877 = vrot.slane %v2435, 6
          %v2878 = vrot.slane %v2438, 6
          %v2879 = vrot.slane %v2418, 6
          %v2880 = vrot.slane %v2421, 6
          %v2881 = vrot.slane %v2424, 6
          %v2882 = vrot.slane %v2427, 6
          %v2883 = vrot.slane %v2430, 6
          %v2884 = vrot.slane %v2433, 6
          %v2885 = vrot.slane %v2436, 6
          %v2886 = vrot.slane %v2439, 6
          %v2887 = vsel %vm774, %v2871, %v2879
          %v2888 = vsel %vm774, %v2872, %v2880
          %v2889 = vsel %vm774, %v2873, %v2881
          %v2890 = vsel %vm774, %v2874, %v2882
          %v2891 = vsel %vm774, %v2875, %v2883
          %v2892 = vsel %vm774, %v2876, %v2884
          %v2893 = vsel %vm774, %v2877, %v2885
          %v2894 = vsel %vm774, %v2878, %v2886
          %v2895 = vsel %vm774, %v2863, %v2871
          %v2896 = vsel %vm774, %v2864, %v2872
          %v2897 = vsel %vm774, %v2865, %v2873
          %v2898 = vsel %vm774, %v2866, %v2874
          %v2899 = vsel %vm774, %v2867, %v2875
          %v2900 = vsel %vm774, %v2868, %v2876
          %v2901 = vsel %vm774, %v2869, %v2877
          %v2902 = vsel %vm774, %v2870, %v2878
          %v2903 = vld [vmem:[%s2440 + $0x6] sm:$0x1]
          %v2904 = vlaneseq
          %v2905 = vshrl.u32 %v2904, 7
          %v2906 = vsub.s32 0, %v2905
          %v2907 = vrot.slane %v2903, %v2906
          %v2908 = vmul.f32 %v2895, %v2907
          %v2909 = vmul.f32 %v2887, %v2907
          %v2910 = vmul.f32 %v2896, %v2907
          %v2911 = vmul.f32 %v2888, %v2907
          %v2912 = vmul.f32 %v2897, %v2907
          %v2913 = vmul.f32 %v2889, %v2907
          %v2914 = vmul.f32 %v2898, %v2907
          %v2915 = vmul.f32 %v2890, %v2907
          %v2916 = vmul.f32 %v2899, %v2907
          %v2917 = vmul.f32 %v2891, %v2907
          %v2918 = vmul.f32 %v2900, %v2907
          %v2919 = vmul.f32 %v2892, %v2907
          %v2920 = vmul.f32 %v2901, %v2907
          %v2921 = vmul.f32 %v2893, %v2907
          %v2922 = vmul.f32 %v2902, %v2907
          %v2923 = vmul.f32 %v2894, %v2907
          %v2924 = vadd.f32 %v2847, %v2908
          %v2925 = vadd.f32 %v2848, %v2909
          %v2926 = vadd.f32 %v2849, %v2910
          %v2927 = vadd.f32 %v2850, %v2911
          %v2928 = vadd.f32 %v2851, %v2912
          %v2929 = vadd.f32 %v2852, %v2913
          %v2930 = vadd.f32 %v2853, %v2914
          %v2931 = vadd.f32 %v2854, %v2915
          %v2932 = vadd.f32 %v2855, %v2916
          %v2933 = vadd.f32 %v2856, %v2917
          %v2934 = vadd.f32 %v2857, %v2918
          %v2935 = vadd.f32 %v2858, %v2919
          %v2936 = vadd.f32 %v2859, %v2920
          %v2937 = vadd.f32 %v2860, %v2921
          %v2938 = vadd.f32 %v2861, %v2922
          %v2939 = vadd.f32 %v2862, %v2923
          %s2940 = sadd.s32 %s292, 5
          %s2941 = smul.u32 %s2940, 24
          %s2942 = sadd.s32 %s2941, %s294
          %s2943 = scalar_lea.vmem [#allocation2], %s2942
          %v2944 = vld [vmem:[%s2943] sm:$0xff]
          %v2945 = vld [vmem:[%s2943 + $0x8] sm:$0xff]
          %v2946 = vld [vmem:[%s2943 + $0x10] sm:$0xff]
          %v2947 = vld [vmem:[%s2943 + $0x18] sm:$0xff]
          %v2948 = vld [vmem:[%s2943 + $0x20] sm:$0xff]
          %v2949 = vld [vmem:[%s2943 + $0x28] sm:$0xff]
          %v2950 = vld [vmem:[%s2943 + $0x30] sm:$0xff]
          %v2951 = vld [vmem:[%s2943 + $0x38] sm:$0xff]
          %v2952 = vld [vmem:[%s2943 + $0x40] sm:$0xff]
          %v2953 = vld [vmem:[%s2943 + $0x48] sm:$0xff]
          %v2954 = vld [vmem:[%s2943 + $0x50] sm:$0xff]
          %v2955 = vld [vmem:[%s2943 + $0x58] sm:$0xff]
          %v2956 = vld [vmem:[%s2943 + $0x60] sm:$0xff]
          %v2957 = vld [vmem:[%s2943 + $0x68] sm:$0xff]
          %v2958 = vld [vmem:[%s2943 + $0x70] sm:$0xff]
          %v2959 = vld [vmem:[%s2943 + $0x78] sm:$0xff]
          %v2960 = vld [vmem:[%s2943 + $0x80] sm:$0xff]
          %v2961 = vld [vmem:[%s2943 + $0x88] sm:$0xff]
          %v2962 = vld [vmem:[%s2943 + $0x90] sm:$0xff]
          %v2963 = vld [vmem:[%s2943 + $0x98] sm:$0xff]
          %v2964 = vld [vmem:[%s2943 + $0xa0] sm:$0xff]
          %v2965 = vld [vmem:[%s2943 + $0xa8] sm:$0xff]
          %v2966 = vld [vmem:[%s2943 + $0xb0] sm:$0xff]
          %v2967 = vld [vmem:[%s2943 + $0xb8] sm:$0xff]
          %s2968 = scalar_lea.vmem [#allocation4], 40
          %v2969 = vld [vmem:[%s2968] sm:$0x1]
          %v2970 = vlaneseq
          %v2971 = vshrl.u32 %v2970, 7
          %v2972 = vsub.s32 0, %v2971
          %v2973 = vrot.slane %v2969, %v2972
          %v2974 = vmul.f32 %v2944, %v2973
          %v2975 = vmul.f32 %v2945, %v2973
          %v2976 = vmul.f32 %v2947, %v2973
          %v2977 = vmul.f32 %v2948, %v2973
          %v2978 = vmul.f32 %v2950, %v2973
          %v2979 = vmul.f32 %v2951, %v2973
          %v2980 = vmul.f32 %v2953, %v2973
          %v2981 = vmul.f32 %v2954, %v2973
          %v2982 = vmul.f32 %v2956, %v2973
          %v2983 = vmul.f32 %v2957, %v2973
          %v2984 = vmul.f32 %v2959, %v2973
          %v2985 = vmul.f32 %v2960, %v2973
          %v2986 = vmul.f32 %v2962, %v2973
          %v2987 = vmul.f32 %v2963, %v2973
          %v2988 = vmul.f32 %v2965, %v2973
          %v2989 = vmul.f32 %v2966, %v2973
          %v2990 = vadd.f32 %v2924, %v2974
          %v2991 = vadd.f32 %v2925, %v2975
          %v2992 = vadd.f32 %v2926, %v2976
          %v2993 = vadd.f32 %v2927, %v2977
          %v2994 = vadd.f32 %v2928, %v2978
          %v2995 = vadd.f32 %v2929, %v2979
          %v2996 = vadd.f32 %v2930, %v2980
          %v2997 = vadd.f32 %v2931, %v2981
          %v2998 = vadd.f32 %v2932, %v2982
          %v2999 = vadd.f32 %v2933, %v2983
          %v3000 = vadd.f32 %v2934, %v2984
          %v3001 = vadd.f32 %v2935, %v2985
          %v3002 = vadd.f32 %v2936, %v2986
          %v3003 = vadd.f32 %v2937, %v2987
          %v3004 = vadd.f32 %v2938, %v2988
          %v3005 = vadd.f32 %v2939, %v2989
          %v3006 = vrot.slane %v2944, 1
          %v3007 = vrot.slane %v2947, 1
          %v3008 = vrot.slane %v2950, 1
          %v3009 = vrot.slane %v2953, 1
          %v3010 = vrot.slane %v2956, 1
          %v3011 = vrot.slane %v2959, 1
          %v3012 = vrot.slane %v2962, 1
          %v3013 = vrot.slane %v2965, 1
          %v3014 = vrot.slane %v2945, 1
          %v3015 = vrot.slane %v2948, 1
          %v3016 = vrot.slane %v2951, 1
          %v3017 = vrot.slane %v2954, 1
          %v3018 = vrot.slane %v2957, 1
          %v3019 = vrot.slane %v2960, 1
          %v3020 = vrot.slane %v2963, 1
          %v3021 = vrot.slane %v2966, 1
          %v3022 = vrot.slane %v2946, 1
          %v3023 = vrot.slane %v2949, 1
          %v3024 = vrot.slane %v2952, 1
          %v3025 = vrot.slane %v2955, 1
          %v3026 = vrot.slane %v2958, 1
          %v3027 = vrot.slane %v2961, 1
          %v3028 = vrot.slane %v2964, 1
          %v3029 = vrot.slane %v2967, 1
          %v3030 = vsel %vm384, %v3014, %v3022
          %v3031 = vsel %vm384, %v3015, %v3023
          %v3032 = vsel %vm384, %v3016, %v3024
          %v3033 = vsel %vm384, %v3017, %v3025
          %v3034 = vsel %vm384, %v3018, %v3026
          %v3035 = vsel %vm384, %v3019, %v3027
          %v3036 = vsel %vm384, %v3020, %v3028
          %v3037 = vsel %vm384, %v3021, %v3029
          %v3038 = vsel %vm384, %v3006, %v3014
          %v3039 = vsel %vm384, %v3007, %v3015
          %v3040 = vsel %vm384, %v3008, %v3016
          %v3041 = vsel %vm384, %v3009, %v3017
          %v3042 = vsel %vm384, %v3010, %v3018
          %v3043 = vsel %vm384, %v3011, %v3019
          %v3044 = vsel %vm384, %v3012, %v3020
          %v3045 = vsel %vm384, %v3013, %v3021
          %v3046 = vld [vmem:[%s2968 + $0x1] sm:$0x1]
          %v3047 = vlaneseq
          %v3048 = vshrl.u32 %v3047, 7
          %v3049 = vsub.s32 0, %v3048
          %v3050 = vrot.slane %v3046, %v3049
          %v3051 = vmul.f32 %v3038, %v3050
          %v3052 = vmul.f32 %v3030, %v3050
          %v3053 = vmul.f32 %v3039, %v3050
          %v3054 = vmul.f32 %v3031, %v3050
          %v3055 = vmul.f32 %v3040, %v3050
          %v3056 = vmul.f32 %v3032, %v3050
          %v3057 = vmul.f32 %v3041, %v3050
          %v3058 = vmul.f32 %v3033, %v3050
          %v3059 = vmul.f32 %v3042, %v3050
          %v3060 = vmul.f32 %v3034, %v3050
          %v3061 = vmul.f32 %v3043, %v3050
          %v3062 = vmul.f32 %v3035, %v3050
          %v3063 = vmul.f32 %v3044, %v3050
          %v3064 = vmul.f32 %v3036, %v3050
          %v3065 = vmul.f32 %v3045, %v3050
          %v3066 = vmul.f32 %v3037, %v3050
          %v3067 = vadd.f32 %v2990, %v3051
          %v3068 = vadd.f32 %v2991, %v3052
          %v3069 = vadd.f32 %v2992, %v3053
          %v3070 = vadd.f32 %v2993, %v3054
          %v3071 = vadd.f32 %v2994, %v3055
          %v3072 = vadd.f32 %v2995, %v3056
          %v3073 = vadd.f32 %v2996, %v3057
          %v3074 = vadd.f32 %v2997, %v3058
          %v3075 = vadd.f32 %v2998, %v3059
          %v3076 = vadd.f32 %v2999, %v3060
          %v3077 = vadd.f32 %v3000, %v3061
          %v3078 = vadd.f32 %v3001, %v3062
          %v3079 = vadd.f32 %v3002, %v3063
          %v3080 = vadd.f32 %v3003, %v3064
          %v3081 = vadd.f32 %v3004, %v3065
          %v3082 = vadd.f32 %v3005, %v3066
          %v3083 = vrot.slane %v2944, 2
          %v3084 = vrot.slane %v2947, 2
          %v3085 = vrot.slane %v2950, 2
          %v3086 = vrot.slane %v2953, 2
          %v3087 = vrot.slane %v2956, 2
          %v3088 = vrot.slane %v2959, 2
          %v3089 = vrot.slane %v2962, 2
          %v3090 = vrot.slane %v2965, 2
          %v3091 = vrot.slane %v2945, 2
          %v3092 = vrot.slane %v2948, 2
          %v3093 = vrot.slane %v2951, 2
          %v3094 = vrot.slane %v2954, 2
          %v3095 = vrot.slane %v2957, 2
          %v3096 = vrot.slane %v2960, 2
          %v3097 = vrot.slane %v2963, 2
          %v3098 = vrot.slane %v2966, 2
          %v3099 = vrot.slane %v2946, 2
          %v3100 = vrot.slane %v2949, 2
          %v3101 = vrot.slane %v2952, 2
          %v3102 = vrot.slane %v2955, 2
          %v3103 = vrot.slane %v2958, 2
          %v3104 = vrot.slane %v2961, 2
          %v3105 = vrot.slane %v2964, 2
          %v3106 = vrot.slane %v2967, 2
          %v3107 = vsel %vm462, %v3091, %v3099
          %v3108 = vsel %vm462, %v3092, %v3100
          %v3109 = vsel %vm462, %v3093, %v3101
          %v3110 = vsel %vm462, %v3094, %v3102
          %v3111 = vsel %vm462, %v3095, %v3103
          %v3112 = vsel %vm462, %v3096, %v3104
          %v3113 = vsel %vm462, %v3097, %v3105
          %v3114 = vsel %vm462, %v3098, %v3106
          %v3115 = vsel %vm462, %v3083, %v3091
          %v3116 = vsel %vm462, %v3084, %v3092
          %v3117 = vsel %vm462, %v3085, %v3093
          %v3118 = vsel %vm462, %v3086, %v3094
          %v3119 = vsel %vm462, %v3087, %v3095
          %v3120 = vsel %vm462, %v3088, %v3096
          %v3121 = vsel %vm462, %v3089, %v3097
          %v3122 = vsel %vm462, %v3090, %v3098
          %v3123 = vld [vmem:[%s2968 + $0x2] sm:$0x1]
          %v3124 = vlaneseq
          %v3125 = vshrl.u32 %v3124, 7
          %v3126 = vsub.s32 0, %v3125
          %v3127 = vrot.slane %v3123, %v3126
          %v3128 = vmul.f32 %v3115, %v3127
          %v3129 = vmul.f32 %v3107, %v3127
          %v3130 = vmul.f32 %v3116, %v3127
          %v3131 = vmul.f32 %v3108, %v3127
          %v3132 = vmul.f32 %v3117, %v3127
          %v3133 = vmul.f32 %v3109, %v3127
          %v3134 = vmul.f32 %v3118, %v3127
          %v3135 = vmul.f32 %v3110, %v3127
          %v3136 = vmul.f32 %v3119, %v3127
          %v3137 = vmul.f32 %v3111, %v3127
          %v3138 = vmul.f32 %v3120, %v3127
          %v3139 = vmul.f32 %v3112, %v3127
          %v3140 = vmul.f32 %v3121, %v3127
          %v3141 = vmul.f32 %v3113, %v3127
          %v3142 = vmul.f32 %v3122, %v3127
          %v3143 = vmul.f32 %v3114, %v3127
          %v3144 = vadd.f32 %v3067, %v3128
          %v3145 = vadd.f32 %v3068, %v3129
          %v3146 = vadd.f32 %v3069, %v3130
          %v3147 = vadd.f32 %v3070, %v3131
          %v3148 = vadd.f32 %v3071, %v3132
          %v3149 = vadd.f32 %v3072, %v3133
          %v3150 = vadd.f32 %v3073, %v3134
          %v3151 = vadd.f32 %v3074, %v3135
          %v3152 = vadd.f32 %v3075, %v3136
          %v3153 = vadd.f32 %v3076, %v3137
          %v3154 = vadd.f32 %v3077, %v3138
          %v3155 = vadd.f32 %v3078, %v3139
          %v3156 = vadd.f32 %v3079, %v3140
          %v3157 = vadd.f32 %v3080, %v3141
          %v3158 = vadd.f32 %v3081, %v3142
          %v3159 = vadd.f32 %v3082, %v3143
          %v3160 = vrot.slane %v2944, 3
          %v3161 = vrot.slane %v2947, 3
          %v3162 = vrot.slane %v2950, 3
          %v3163 = vrot.slane %v2953, 3
          %v3164 = vrot.slane %v2956, 3
          %v3165 = vrot.slane %v2959, 3
          %v3166 = vrot.slane %v2962, 3
          %v3167 = vrot.slane %v2965, 3
          %v3168 = vrot.slane %v2945, 3
          %v3169 = vrot.slane %v2948, 3
          %v3170 = vrot.slane %v2951, 3
          %v3171 = vrot.slane %v2954, 3
          %v3172 = vrot.slane %v2957, 3
          %v3173 = vrot.slane %v2960, 3
          %v3174 = vrot.slane %v2963, 3
          %v3175 = vrot.slane %v2966, 3
          %v3176 = vrot.slane %v2946, 3
          %v3177 = vrot.slane %v2949, 3
          %v3178 = vrot.slane %v2952, 3
          %v3179 = vrot.slane %v2955, 3
          %v3180 = vrot.slane %v2958, 3
          %v3181 = vrot.slane %v2961, 3
          %v3182 = vrot.slane %v2964, 3
          %v3183 = vrot.slane %v2967, 3
          %v3184 = vsel %vm540, %v3168, %v3176
          %v3185 = vsel %vm540, %v3169, %v3177
          %v3186 = vsel %vm540, %v3170, %v3178
          %v3187 = vsel %vm540, %v3171, %v3179
          %v3188 = vsel %vm540, %v3172, %v3180
          %v3189 = vsel %vm540, %v3173, %v3181
          %v3190 = vsel %vm540, %v3174, %v3182
          %v3191 = vsel %vm540, %v3175, %v3183
          %v3192 = vsel %vm540, %v3160, %v3168
          %v3193 = vsel %vm540, %v3161, %v3169
          %v3194 = vsel %vm540, %v3162, %v3170
          %v3195 = vsel %vm540, %v3163, %v3171
          %v3196 = vsel %vm540, %v3164, %v3172
          %v3197 = vsel %vm540, %v3165, %v3173
          %v3198 = vsel %vm540, %v3166, %v3174
          %v3199 = vsel %vm540, %v3167, %v3175
          %v3200 = vld [vmem:[%s2968 + $0x3] sm:$0x1]
          %v3201 = vlaneseq
          %v3202 = vshrl.u32 %v3201, 7
          %v3203 = vsub.s32 0, %v3202
          %v3204 = vrot.slane %v3200, %v3203
          %v3205 = vmul.f32 %v3192, %v3204
          %v3206 = vmul.f32 %v3184, %v3204
          %v3207 = vmul.f32 %v3193, %v3204
          %v3208 = vmul.f32 %v3185, %v3204
          %v3209 = vmul.f32 %v3194, %v3204
          %v3210 = vmul.f32 %v3186, %v3204
          %v3211 = vmul.f32 %v3195, %v3204
          %v3212 = vmul.f32 %v3187, %v3204
          %v3213 = vmul.f32 %v3196, %v3204
          %v3214 = vmul.f32 %v3188, %v3204
          %v3215 = vmul.f32 %v3197, %v3204
          %v3216 = vmul.f32 %v3189, %v3204
          %v3217 = vmul.f32 %v3198, %v3204
          %v3218 = vmul.f32 %v3190, %v3204
          %v3219 = vmul.f32 %v3199, %v3204
          %v3220 = vmul.f32 %v3191, %v3204
          %v3221 = vadd.f32 %v3144, %v3205
          %v3222 = vadd.f32 %v3145, %v3206
          %v3223 = vadd.f32 %v3146, %v3207
          %v3224 = vadd.f32 %v3147, %v3208
          %v3225 = vadd.f32 %v3148, %v3209
          %v3226 = vadd.f32 %v3149, %v3210
          %v3227 = vadd.f32 %v3150, %v3211
          %v3228 = vadd.f32 %v3151, %v3212
          %v3229 = vadd.f32 %v3152, %v3213
          %v3230 = vadd.f32 %v3153, %v3214
          %v3231 = vadd.f32 %v3154, %v3215
          %v3232 = vadd.f32 %v3155, %v3216
          %v3233 = vadd.f32 %v3156, %v3217
          %v3234 = vadd.f32 %v3157, %v3218
          %v3235 = vadd.f32 %v3158, %v3219
          %v3236 = vadd.f32 %v3159, %v3220
          %v3237 = vrot.slane %v2944, 4
          %v3238 = vrot.slane %v2947, 4
          %v3239 = vrot.slane %v2950, 4
          %v3240 = vrot.slane %v2953, 4
          %v3241 = vrot.slane %v2956, 4
          %v3242 = vrot.slane %v2959, 4
          %v3243 = vrot.slane %v2962, 4
          %v3244 = vrot.slane %v2965, 4
          %v3245 = vrot.slane %v2945, 4
          %v3246 = vrot.slane %v2948, 4
          %v3247 = vrot.slane %v2951, 4
          %v3248 = vrot.slane %v2954, 4
          %v3249 = vrot.slane %v2957, 4
          %v3250 = vrot.slane %v2960, 4
          %v3251 = vrot.slane %v2963, 4
          %v3252 = vrot.slane %v2966, 4
          %v3253 = vrot.slane %v2946, 4
          %v3254 = vrot.slane %v2949, 4
          %v3255 = vrot.slane %v2952, 4
          %v3256 = vrot.slane %v2955, 4
          %v3257 = vrot.slane %v2958, 4
          %v3258 = vrot.slane %v2961, 4
          %v3259 = vrot.slane %v2964, 4
          %v3260 = vrot.slane %v2967, 4
          %v3261 = vsel %vm618, %v3245, %v3253
          %v3262 = vsel %vm618, %v3246, %v3254
          %v3263 = vsel %vm618, %v3247, %v3255
          %v3264 = vsel %vm618, %v3248, %v3256
          %v3265 = vsel %vm618, %v3249, %v3257
          %v3266 = vsel %vm618, %v3250, %v3258
          %v3267 = vsel %vm618, %v3251, %v3259
          %v3268 = vsel %vm618, %v3252, %v3260
          %v3269 = vsel %vm618, %v3237, %v3245
          %v3270 = vsel %vm618, %v3238, %v3246
          %v3271 = vsel %vm618, %v3239, %v3247
          %v3272 = vsel %vm618, %v3240, %v3248
          %v3273 = vsel %vm618, %v3241, %v3249
          %v3274 = vsel %vm618, %v3242, %v3250
          %v3275 = vsel %vm618, %v3243, %v3251
          %v3276 = vsel %vm618, %v3244, %v3252
          %v3277 = vld [vmem:[%s2968 + $0x4] sm:$0x1]
          %v3278 = vlaneseq
          %v3279 = vshrl.u32 %v3278, 7
          %v3280 = vsub.s32 0, %v3279
          %v3281 = vrot.slane %v3277, %v3280
          %v3282 = vmul.f32 %v3269, %v3281
          %v3283 = vmul.f32 %v3261, %v3281
          %v3284 = vmul.f32 %v3270, %v3281
          %v3285 = vmul.f32 %v3262, %v3281
          %v3286 = vmul.f32 %v3271, %v3281
          %v3287 = vmul.f32 %v3263, %v3281
          %v3288 = vmul.f32 %v3272, %v3281
          %v3289 = vmul.f32 %v3264, %v3281
          %v3290 = vmul.f32 %v3273, %v3281
          %v3291 = vmul.f32 %v3265, %v3281
          %v3292 = vmul.f32 %v3274, %v3281
          %v3293 = vmul.f32 %v3266, %v3281
          %v3294 = vmul.f32 %v3275, %v3281
          %v3295 = vmul.f32 %v3267, %v3281
          %v3296 = vmul.f32 %v3276, %v3281
          %v3297 = vmul.f32 %v3268, %v3281
          %v3298 = vadd.f32 %v3221, %v3282
          %v3299 = vadd.f32 %v3222, %v3283
          %v3300 = vadd.f32 %v3223, %v3284
          %v3301 = vadd.f32 %v3224, %v3285
          %v3302 = vadd.f32 %v3225, %v3286
          %v3303 = vadd.f32 %v3226, %v3287
          %v3304 = vadd.f32 %v3227, %v3288
          %v3305 = vadd.f32 %v3228, %v3289
          %v3306 = vadd.f32 %v3229, %v3290
          %v3307 = vadd.f32 %v3230, %v3291
          %v3308 = vadd.f32 %v3231, %v3292
          %v3309 = vadd.f32 %v3232, %v3293
          %v3310 = vadd.f32 %v3233, %v3294
          %v3311 = vadd.f32 %v3234, %v3295
          %v3312 = vadd.f32 %v3235, %v3296
          %v3313 = vadd.f32 %v3236, %v3297
          %v3314 = vrot.slane %v2944, 5
          %v3315 = vrot.slane %v2947, 5
          %v3316 = vrot.slane %v2950, 5
          %v3317 = vrot.slane %v2953, 5
          %v3318 = vrot.slane %v2956, 5
          %v3319 = vrot.slane %v2959, 5
          %v3320 = vrot.slane %v2962, 5
          %v3321 = vrot.slane %v2965, 5
          %v3322 = vrot.slane %v2945, 5
          %v3323 = vrot.slane %v2948, 5
          %v3324 = vrot.slane %v2951, 5
          %v3325 = vrot.slane %v2954, 5
          %v3326 = vrot.slane %v2957, 5
          %v3327 = vrot.slane %v2960, 5
          %v3328 = vrot.slane %v2963, 5
          %v3329 = vrot.slane %v2966, 5
          %v3330 = vrot.slane %v2946, 5
          %v3331 = vrot.slane %v2949, 5
          %v3332 = vrot.slane %v2952, 5
          %v3333 = vrot.slane %v2955, 5
          %v3334 = vrot.slane %v2958, 5
          %v3335 = vrot.slane %v2961, 5
          %v3336 = vrot.slane %v2964, 5
          %v3337 = vrot.slane %v2967, 5
          %v3338 = vsel %vm696, %v3322, %v3330
          %v3339 = vsel %vm696, %v3323, %v3331
          %v3340 = vsel %vm696, %v3324, %v3332
          %v3341 = vsel %vm696, %v3325, %v3333
          %v3342 = vsel %vm696, %v3326, %v3334
          %v3343 = vsel %vm696, %v3327, %v3335
          %v3344 = vsel %vm696, %v3328, %v3336
          %v3345 = vsel %vm696, %v3329, %v3337
          %v3346 = vsel %vm696, %v3314, %v3322
          %v3347 = vsel %vm696, %v3315, %v3323
          %v3348 = vsel %vm696, %v3316, %v3324
          %v3349 = vsel %vm696, %v3317, %v3325
          %v3350 = vsel %vm696, %v3318, %v3326
          %v3351 = vsel %vm696, %v3319, %v3327
          %v3352 = vsel %vm696, %v3320, %v3328
          %v3353 = vsel %vm696, %v3321, %v3329
          %v3354 = vld [vmem:[%s2968 + $0x5] sm:$0x1]
          %v3355 = vlaneseq
          %v3356 = vshrl.u32 %v3355, 7
          %v3357 = vsub.s32 0, %v3356
          %v3358 = vrot.slane %v3354, %v3357
          %v3359 = vmul.f32 %v3346, %v3358
          %v3360 = vmul.f32 %v3338, %v3358
          %v3361 = vmul.f32 %v3347, %v3358
          %v3362 = vmul.f32 %v3339, %v3358
          %v3363 = vmul.f32 %v3348, %v3358
          %v3364 = vmul.f32 %v3340, %v3358
          %v3365 = vmul.f32 %v3349, %v3358
          %v3366 = vmul.f32 %v3341, %v3358
          %v3367 = vmul.f32 %v3350, %v3358
          %v3368 = vmul.f32 %v3342, %v3358
          %v3369 = vmul.f32 %v3351, %v3358
          %v3370 = vmul.f32 %v3343, %v3358
          %v3371 = vmul.f32 %v3352, %v3358
          %v3372 = vmul.f32 %v3344, %v3358
          %v3373 = vmul.f32 %v3353, %v3358
          %v3374 = vmul.f32 %v3345, %v3358
          %v3375 = vadd.f32 %v3298, %v3359
          %v3376 = vadd.f32 %v3299, %v3360
          %v3377 = vadd.f32 %v3300, %v3361
          %v3378 = vadd.f32 %v3301, %v3362
          %v3379 = vadd.f32 %v3302, %v3363
          %v3380 = vadd.f32 %v3303, %v3364
          %v3381 = vadd.f32 %v3304, %v3365
          %v3382 = vadd.f32 %v3305, %v3366
          %v3383 = vadd.f32 %v3306, %v3367
          %v3384 = vadd.f32 %v3307, %v3368
          %v3385 = vadd.f32 %v3308, %v3369
          %v3386 = vadd.f32 %v3309, %v3370
          %v3387 = vadd.f32 %v3310, %v3371
          %v3388 = vadd.f32 %v3311, %v3372
          %v3389 = vadd.f32 %v3312, %v3373
          %v3390 = vadd.f32 %v3313, %v3374
          %v3391 = vrot.slane %v2944, 6
          %v3392 = vrot.slane %v2947, 6
          %v3393 = vrot.slane %v2950, 6
          %v3394 = vrot.slane %v2953, 6
          %v3395 = vrot.slane %v2956, 6
          %v3396 = vrot.slane %v2959, 6
          %v3397 = vrot.slane %v2962, 6
          %v3398 = vrot.slane %v2965, 6
          %v3399 = vrot.slane %v2945, 6
          %v3400 = vrot.slane %v2948, 6
          %v3401 = vrot.slane %v2951, 6
          %v3402 = vrot.slane %v2954, 6
          %v3403 = vrot.slane %v2957, 6
          %v3404 = vrot.slane %v2960, 6
          %v3405 = vrot.slane %v2963, 6
          %v3406 = vrot.slane %v2966, 6
          %v3407 = vrot.slane %v2946, 6
          %v3408 = vrot.slane %v2949, 6
          %v3409 = vrot.slane %v2952, 6
          %v3410 = vrot.slane %v2955, 6
          %v3411 = vrot.slane %v2958, 6
          %v3412 = vrot.slane %v2961, 6
          %v3413 = vrot.slane %v2964, 6
          %v3414 = vrot.slane %v2967, 6
          %v3415 = vsel %vm774, %v3399, %v3407
          %v3416 = vsel %vm774, %v3400, %v3408
          %v3417 = vsel %vm774, %v3401, %v3409
          %v3418 = vsel %vm774, %v3402, %v3410
          %v3419 = vsel %vm774, %v3403, %v3411
          %v3420 = vsel %vm774, %v3404, %v3412
          %v3421 = vsel %vm774, %v3405, %v3413
          %v3422 = vsel %vm774, %v3406, %v3414
          %v3423 = vsel %vm774, %v3391, %v3399
          %v3424 = vsel %vm774, %v3392, %v3400
          %v3425 = vsel %vm774, %v3393, %v3401
          %v3426 = vsel %vm774, %v3394, %v3402
          %v3427 = vsel %vm774, %v3395, %v3403
          %v3428 = vsel %vm774, %v3396, %v3404
          %v3429 = vsel %vm774, %v3397, %v3405
          %v3430 = vsel %vm774, %v3398, %v3406
          %v3431 = vld [vmem:[%s2968 + $0x6] sm:$0x1]
          %v3432 = vlaneseq
          %v3433 = vshrl.u32 %v3432, 7
          %v3434 = vsub.s32 0, %v3433
          %v3435 = vrot.slane %v3431, %v3434
          %v3436 = vmul.f32 %v3423, %v3435
          %v3437 = vmul.f32 %v3415, %v3435
          %v3438 = vmul.f32 %v3424, %v3435
          %v3439 = vmul.f32 %v3416, %v3435
          %v3440 = vmul.f32 %v3425, %v3435
          %v3441 = vmul.f32 %v3417, %v3435
          %v3442 = vmul.f32 %v3426, %v3435
          %v3443 = vmul.f32 %v3418, %v3435
          %v3444 = vmul.f32 %v3427, %v3435
          %v3445 = vmul.f32 %v3419, %v3435
          %v3446 = vmul.f32 %v3428, %v3435
          %v3447 = vmul.f32 %v3420, %v3435
          %v3448 = vmul.f32 %v3429, %v3435
          %v3449 = vmul.f32 %v3421, %v3435
          %v3450 = vmul.f32 %v3430, %v3435
          %v3451 = vmul.f32 %v3422, %v3435
          %v3452 = vadd.f32 %v3375, %v3436
          %v3453 = vadd.f32 %v3376, %v3437
          %v3454 = vadd.f32 %v3377, %v3438
          %v3455 = vadd.f32 %v3378, %v3439
          %v3456 = vadd.f32 %v3379, %v3440
          %v3457 = vadd.f32 %v3380, %v3441
          %v3458 = vadd.f32 %v3381, %v3442
          %v3459 = vadd.f32 %v3382, %v3443
          %v3460 = vadd.f32 %v3383, %v3444
          %v3461 = vadd.f32 %v3384, %v3445
          %v3462 = vadd.f32 %v3385, %v3446
          %v3463 = vadd.f32 %v3386, %v3447
          %v3464 = vadd.f32 %v3387, %v3448
          %v3465 = vadd.f32 %v3388, %v3449
          %v3466 = vadd.f32 %v3389, %v3450
          %v3467 = vadd.f32 %v3390, %v3451
          %s3468 = sadd.s32 %s292, 6
          %s3469 = smul.u32 %s3468, 24
          %s3470 = sadd.s32 %s3469, %s294
          %s3471 = scalar_lea.vmem [#allocation2], %s3470
          %v3472 = vld [vmem:[%s3471] sm:$0xff]
          %v3473 = vld [vmem:[%s3471 + $0x8] sm:$0xff]
          %v3474 = vld [vmem:[%s3471 + $0x10] sm:$0xff]
          %v3475 = vld [vmem:[%s3471 + $0x18] sm:$0xff]
          %v3476 = vld [vmem:[%s3471 + $0x20] sm:$0xff]
          %v3477 = vld [vmem:[%s3471 + $0x28] sm:$0xff]
          %v3478 = vld [vmem:[%s3471 + $0x30] sm:$0xff]
          %v3479 = vld [vmem:[%s3471 + $0x38] sm:$0xff]
          %v3480 = vld [vmem:[%s3471 + $0x40] sm:$0xff]
          %v3481 = vld [vmem:[%s3471 + $0x48] sm:$0xff]
          %v3482 = vld [vmem:[%s3471 + $0x50] sm:$0xff]
          %v3483 = vld [vmem:[%s3471 + $0x58] sm:$0xff]
          %v3484 = vld [vmem:[%s3471 + $0x60] sm:$0xff]
          %v3485 = vld [vmem:[%s3471 + $0x68] sm:$0xff]
          %v3486 = vld [vmem:[%s3471 + $0x70] sm:$0xff]
          %v3487 = vld [vmem:[%s3471 + $0x78] sm:$0xff]
          %v3488 = vld [vmem:[%s3471 + $0x80] sm:$0xff]
          %v3489 = vld [vmem:[%s3471 + $0x88] sm:$0xff]
          %v3490 = vld [vmem:[%s3471 + $0x90] sm:$0xff]
          %v3491 = vld [vmem:[%s3471 + $0x98] sm:$0xff]
          %v3492 = vld [vmem:[%s3471 + $0xa0] sm:$0xff]
          %v3493 = vld [vmem:[%s3471 + $0xa8] sm:$0xff]
          %v3494 = vld [vmem:[%s3471 + $0xb0] sm:$0xff]
          %v3495 = vld [vmem:[%s3471 + $0xb8] sm:$0xff]
          %s3496 = scalar_lea.vmem [#allocation4], 48
          %v3497 = vld [vmem:[%s3496] sm:$0x1]
          %v3498 = vlaneseq
          %v3499 = vshrl.u32 %v3498, 7
          %v3500 = vsub.s32 0, %v3499
          %v3501 = vrot.slane %v3497, %v3500
          %v3502 = vmul.f32 %v3472, %v3501
          %v3503 = vmul.f32 %v3473, %v3501
          %v3504 = vmul.f32 %v3475, %v3501
          %v3505 = vmul.f32 %v3476, %v3501
          %v3506 = vmul.f32 %v3478, %v3501
          %v3507 = vmul.f32 %v3479, %v3501
          %v3508 = vmul.f32 %v3481, %v3501
          %v3509 = vmul.f32 %v3482, %v3501
          %v3510 = vmul.f32 %v3484, %v3501
          %v3511 = vmul.f32 %v3485, %v3501
          %v3512 = vmul.f32 %v3487, %v3501
          %v3513 = vmul.f32 %v3488, %v3501
          %v3514 = vmul.f32 %v3490, %v3501
          %v3515 = vmul.f32 %v3491, %v3501
          %v3516 = vmul.f32 %v3493, %v3501
          %v3517 = vmul.f32 %v3494, %v3501
          %v3518 = vadd.f32 %v3452, %v3502
          %v3519 = vadd.f32 %v3453, %v3503
          %v3520 = vadd.f32 %v3454, %v3504
          %v3521 = vadd.f32 %v3455, %v3505
          %v3522 = vadd.f32 %v3456, %v3506
          %v3523 = vadd.f32 %v3457, %v3507
          %v3524 = vadd.f32 %v3458, %v3508
          %v3525 = vadd.f32 %v3459, %v3509
          %v3526 = vadd.f32 %v3460, %v3510
          %v3527 = vadd.f32 %v3461, %v3511
          %v3528 = vadd.f32 %v3462, %v3512
          %v3529 = vadd.f32 %v3463, %v3513
          %v3530 = vadd.f32 %v3464, %v3514
          %v3531 = vadd.f32 %v3465, %v3515
          %v3532 = vadd.f32 %v3466, %v3516
          %v3533 = vadd.f32 %v3467, %v3517
          %v3534 = vrot.slane %v3472, 1
          %v3535 = vrot.slane %v3475, 1
          %v3536 = vrot.slane %v3478, 1
          %v3537 = vrot.slane %v3481, 1
          %v3538 = vrot.slane %v3484, 1
          %v3539 = vrot.slane %v3487, 1
          %v3540 = vrot.slane %v3490, 1
          %v3541 = vrot.slane %v3493, 1
          %v3542 = vrot.slane %v3473, 1
          %v3543 = vrot.slane %v3476, 1
          %v3544 = vrot.slane %v3479, 1
          %v3545 = vrot.slane %v3482, 1
          %v3546 = vrot.slane %v3485, 1
          %v3547 = vrot.slane %v3488, 1
          %v3548 = vrot.slane %v3491, 1
          %v3549 = vrot.slane %v3494, 1
          %v3550 = vrot.slane %v3474, 1
          %v3551 = vrot.slane %v3477, 1
          %v3552 = vrot.slane %v3480, 1
          %v3553 = vrot.slane %v3483, 1
          %v3554 = vrot.slane %v3486, 1
          %v3555 = vrot.slane %v3489, 1
          %v3556 = vrot.slane %v3492, 1
          %v3557 = vrot.slane %v3495, 1
          %v3558 = vsel %vm384, %v3542, %v3550
          %v3559 = vsel %vm384, %v3543, %v3551
          %v3560 = vsel %vm384, %v3544, %v3552
          %v3561 = vsel %vm384, %v3545, %v3553
          %v3562 = vsel %vm384, %v3546, %v3554
          %v3563 = vsel %vm384, %v3547, %v3555
          %v3564 = vsel %vm384, %v3548, %v3556
          %v3565 = vsel %vm384, %v3549, %v3557
          %v3566 = vsel %vm384, %v3534, %v3542
          %v3567 = vsel %vm384, %v3535, %v3543
          %v3568 = vsel %vm384, %v3536, %v3544
          %v3569 = vsel %vm384, %v3537, %v3545
          %v3570 = vsel %vm384, %v3538, %v3546
          %v3571 = vsel %vm384, %v3539, %v3547
          %v3572 = vsel %vm384, %v3540, %v3548
          %v3573 = vsel %vm384, %v3541, %v3549
          %v3574 = vld [vmem:[%s3496 + $0x1] sm:$0x1]
          %v3575 = vlaneseq
          %v3576 = vshrl.u32 %v3575, 7
          %v3577 = vsub.s32 0, %v3576
          %v3578 = vrot.slane %v3574, %v3577
          %v3579 = vmul.f32 %v3566, %v3578
          %v3580 = vmul.f32 %v3558, %v3578
          %v3581 = vmul.f32 %v3567, %v3578
          %v3582 = vmul.f32 %v3559, %v3578
          %v3583 = vmul.f32 %v3568, %v3578
          %v3584 = vmul.f32 %v3560, %v3578
          %v3585 = vmul.f32 %v3569, %v3578
          %v3586 = vmul.f32 %v3561, %v3578
          %v3587 = vmul.f32 %v3570, %v3578
          %v3588 = vmul.f32 %v3562, %v3578
          %v3589 = vmul.f32 %v3571, %v3578
          %v3590 = vmul.f32 %v3563, %v3578
          %v3591 = vmul.f32 %v3572, %v3578
          %v3592 = vmul.f32 %v3564, %v3578
          %v3593 = vmul.f32 %v3573, %v3578
          %v3594 = vmul.f32 %v3565, %v3578
          %v3595 = vadd.f32 %v3518, %v3579
          %v3596 = vadd.f32 %v3519, %v3580
          %v3597 = vadd.f32 %v3520, %v3581
          %v3598 = vadd.f32 %v3521, %v3582
          %v3599 = vadd.f32 %v3522, %v3583
          %v3600 = vadd.f32 %v3523, %v3584
          %v3601 = vadd.f32 %v3524, %v3585
          %v3602 = vadd.f32 %v3525, %v3586
          %v3603 = vadd.f32 %v3526, %v3587
          %v3604 = vadd.f32 %v3527, %v3588
          %v3605 = vadd.f32 %v3528, %v3589
          %v3606 = vadd.f32 %v3529, %v3590
          %v3607 = vadd.f32 %v3530, %v3591
          %v3608 = vadd.f32 %v3531, %v3592
          %v3609 = vadd.f32 %v3532, %v3593
          %v3610 = vadd.f32 %v3533, %v3594
          %v3611 = vrot.slane %v3472, 2
          %v3612 = vrot.slane %v3475, 2
          %v3613 = vrot.slane %v3478, 2
          %v3614 = vrot.slane %v3481, 2
          %v3615 = vrot.slane %v3484, 2
          %v3616 = vrot.slane %v3487, 2
          %v3617 = vrot.slane %v3490, 2
          %v3618 = vrot.slane %v3493, 2
          %v3619 = vrot.slane %v3473, 2
          %v3620 = vrot.slane %v3476, 2
          %v3621 = vrot.slane %v3479, 2
          %v3622 = vrot.slane %v3482, 2
          %v3623 = vrot.slane %v3485, 2
          %v3624 = vrot.slane %v3488, 2
          %v3625 = vrot.slane %v3491, 2
          %v3626 = vrot.slane %v3494, 2
          %v3627 = vrot.slane %v3474, 2
          %v3628 = vrot.slane %v3477, 2
          %v3629 = vrot.slane %v3480, 2
          %v3630 = vrot.slane %v3483, 2
          %v3631 = vrot.slane %v3486, 2
          %v3632 = vrot.slane %v3489, 2
          %v3633 = vrot.slane %v3492, 2
          %v3634 = vrot.slane %v3495, 2
          %v3635 = vsel %vm462, %v3619, %v3627
          %v3636 = vsel %vm462, %v3620, %v3628
          %v3637 = vsel %vm462, %v3621, %v3629
          %v3638 = vsel %vm462, %v3622, %v3630
          %v3639 = vsel %vm462, %v3623, %v3631
          %v3640 = vsel %vm462, %v3624, %v3632
          %v3641 = vsel %vm462, %v3625, %v3633
          %v3642 = vsel %vm462, %v3626, %v3634
          %v3643 = vsel %vm462, %v3611, %v3619
          %v3644 = vsel %vm462, %v3612, %v3620
          %v3645 = vsel %vm462, %v3613, %v3621
          %v3646 = vsel %vm462, %v3614, %v3622
          %v3647 = vsel %vm462, %v3615, %v3623
          %v3648 = vsel %vm462, %v3616, %v3624
          %v3649 = vsel %vm462, %v3617, %v3625
          %v3650 = vsel %vm462, %v3618, %v3626
          %v3651 = vld [vmem:[%s3496 + $0x2] sm:$0x1]
          %v3652 = vlaneseq
          %v3653 = vshrl.u32 %v3652, 7
          %v3654 = vsub.s32 0, %v3653
          %v3655 = vrot.slane %v3651, %v3654
          %v3656 = vmul.f32 %v3643, %v3655
          %v3657 = vmul.f32 %v3635, %v3655
          %v3658 = vmul.f32 %v3644, %v3655
          %v3659 = vmul.f32 %v3636, %v3655
          %v3660 = vmul.f32 %v3645, %v3655
          %v3661 = vmul.f32 %v3637, %v3655
          %v3662 = vmul.f32 %v3646, %v3655
          %v3663 = vmul.f32 %v3638, %v3655
          %v3664 = vmul.f32 %v3647, %v3655
          %v3665 = vmul.f32 %v3639, %v3655
          %v3666 = vmul.f32 %v3648, %v3655
          %v3667 = vmul.f32 %v3640, %v3655
          %v3668 = vmul.f32 %v3649, %v3655
          %v3669 = vmul.f32 %v3641, %v3655
          %v3670 = vmul.f32 %v3650, %v3655
          %v3671 = vmul.f32 %v3642, %v3655
          %v3672 = vadd.f32 %v3595, %v3656
          %v3673 = vadd.f32 %v3596, %v3657
          %v3674 = vadd.f32 %v3597, %v3658
          %v3675 = vadd.f32 %v3598, %v3659
          %v3676 = vadd.f32 %v3599, %v3660
          %v3677 = vadd.f32 %v3600, %v3661
          %v3678 = vadd.f32 %v3601, %v3662
          %v3679 = vadd.f32 %v3602, %v3663
          %v3680 = vadd.f32 %v3603, %v3664
          %v3681 = vadd.f32 %v3604, %v3665
          %v3682 = vadd.f32 %v3605, %v3666
          %v3683 = vadd.f32 %v3606, %v3667
          %v3684 = vadd.f32 %v3607, %v3668
          %v3685 = vadd.f32 %v3608, %v3669
          %v3686 = vadd.f32 %v3609, %v3670
          %v3687 = vadd.f32 %v3610, %v3671
          %v3688 = vrot.slane %v3472, 3
          %v3689 = vrot.slane %v3475, 3
          %v3690 = vrot.slane %v3478, 3
          %v3691 = vrot.slane %v3481, 3
          %v3692 = vrot.slane %v3484, 3
          %v3693 = vrot.slane %v3487, 3
          %v3694 = vrot.slane %v3490, 3
          %v3695 = vrot.slane %v3493, 3
          %v3696 = vrot.slane %v3473, 3
          %v3697 = vrot.slane %v3476, 3
          %v3698 = vrot.slane %v3479, 3
          %v3699 = vrot.slane %v3482, 3
          %v3700 = vrot.slane %v3485, 3
          %v3701 = vrot.slane %v3488, 3
          %v3702 = vrot.slane %v3491, 3
          %v3703 = vrot.slane %v3494, 3
          %v3704 = vrot.slane %v3474, 3
          %v3705 = vrot.slane %v3477, 3
          %v3706 = vrot.slane %v3480, 3
          %v3707 = vrot.slane %v3483, 3
          %v3708 = vrot.slane %v3486, 3
          %v3709 = vrot.slane %v3489, 3
          %v3710 = vrot.slane %v3492, 3
          %v3711 = vrot.slane %v3495, 3
          %v3712 = vsel %vm540, %v3696, %v3704
          %v3713 = vsel %vm540, %v3697, %v3705
          %v3714 = vsel %vm540, %v3698, %v3706
          %v3715 = vsel %vm540, %v3699, %v3707
          %v3716 = vsel %vm540, %v3700, %v3708
          %v3717 = vsel %vm540, %v3701, %v3709
          %v3718 = vsel %vm540, %v3702, %v3710
          %v3719 = vsel %vm540, %v3703, %v3711
          %v3720 = vsel %vm540, %v3688, %v3696
          %v3721 = vsel %vm540, %v3689, %v3697
          %v3722 = vsel %vm540, %v3690, %v3698
          %v3723 = vsel %vm540, %v3691, %v3699
          %v3724 = vsel %vm540, %v3692, %v3700
          %v3725 = vsel %vm540, %v3693, %v3701
          %v3726 = vsel %vm540, %v3694, %v3702
          %v3727 = vsel %vm540, %v3695, %v3703
          %v3728 = vld [vmem:[%s3496 + $0x3] sm:$0x1]
          %v3729 = vlaneseq
          %v3730 = vshrl.u32 %v3729, 7
          %v3731 = vsub.s32 0, %v3730
          %v3732 = vrot.slane %v3728, %v3731
          %v3733 = vmul.f32 %v3720, %v3732
          %v3734 = vmul.f32 %v3712, %v3732
          %v3735 = vmul.f32 %v3721, %v3732
          %v3736 = vmul.f32 %v3713, %v3732
          %v3737 = vmul.f32 %v3722, %v3732
          %v3738 = vmul.f32 %v3714, %v3732
          %v3739 = vmul.f32 %v3723, %v3732
          %v3740 = vmul.f32 %v3715, %v3732
          %v3741 = vmul.f32 %v3724, %v3732
          %v3742 = vmul.f32 %v3716, %v3732
          %v3743 = vmul.f32 %v3725, %v3732
          %v3744 = vmul.f32 %v3717, %v3732
          %v3745 = vmul.f32 %v3726, %v3732
          %v3746 = vmul.f32 %v3718, %v3732
          %v3747 = vmul.f32 %v3727, %v3732
          %v3748 = vmul.f32 %v3719, %v3732
          %v3749 = vadd.f32 %v3672, %v3733
          %v3750 = vadd.f32 %v3673, %v3734
          %v3751 = vadd.f32 %v3674, %v3735
          %v3752 = vadd.f32 %v3675, %v3736
          %v3753 = vadd.f32 %v3676, %v3737
          %v3754 = vadd.f32 %v3677, %v3738
          %v3755 = vadd.f32 %v3678, %v3739
          %v3756 = vadd.f32 %v3679, %v3740
          %v3757 = vadd.f32 %v3680, %v3741
          %v3758 = vadd.f32 %v3681, %v3742
          %v3759 = vadd.f32 %v3682, %v3743
          %v3760 = vadd.f32 %v3683, %v3744
          %v3761 = vadd.f32 %v3684, %v3745
          %v3762 = vadd.f32 %v3685, %v3746
          %v3763 = vadd.f32 %v3686, %v3747
          %v3764 = vadd.f32 %v3687, %v3748
          %v3765 = vrot.slane %v3472, 4
          %v3766 = vrot.slane %v3475, 4
          %v3767 = vrot.slane %v3478, 4
          %v3768 = vrot.slane %v3481, 4
          %v3769 = vrot.slane %v3484, 4
          %v3770 = vrot.slane %v3487, 4
          %v3771 = vrot.slane %v3490, 4
          %v3772 = vrot.slane %v3493, 4
          %v3773 = vrot.slane %v3473, 4
          %v3774 = vrot.slane %v3476, 4
          %v3775 = vrot.slane %v3479, 4
          %v3776 = vrot.slane %v3482, 4
          %v3777 = vrot.slane %v3485, 4
          %v3778 = vrot.slane %v3488, 4
          %v3779 = vrot.slane %v3491, 4
          %v3780 = vrot.slane %v3494, 4
          %v3781 = vrot.slane %v3474, 4
          %v3782 = vrot.slane %v3477, 4
          %v3783 = vrot.slane %v3480, 4
          %v3784 = vrot.slane %v3483, 4
          %v3785 = vrot.slane %v3486, 4
          %v3786 = vrot.slane %v3489, 4
          %v3787 = vrot.slane %v3492, 4
          %v3788 = vrot.slane %v3495, 4
          %v3789 = vsel %vm618, %v3773, %v3781
          %v3790 = vsel %vm618, %v3774, %v3782
          %v3791 = vsel %vm618, %v3775, %v3783
          %v3792 = vsel %vm618, %v3776, %v3784
          %v3793 = vsel %vm618, %v3777, %v3785
          %v3794 = vsel %vm618, %v3778, %v3786
          %v3795 = vsel %vm618, %v3779, %v3787
          %v3796 = vsel %vm618, %v3780, %v3788
          %v3797 = vsel %vm618, %v3765, %v3773
          %v3798 = vsel %vm618, %v3766, %v3774
          %v3799 = vsel %vm618, %v3767, %v3775
          %v3800 = vsel %vm618, %v3768, %v3776
          %v3801 = vsel %vm618, %v3769, %v3777
          %v3802 = vsel %vm618, %v3770, %v3778
          %v3803 = vsel %vm618, %v3771, %v3779
          %v3804 = vsel %vm618, %v3772, %v3780
          %v3805 = vld [vmem:[%s3496 + $0x4] sm:$0x1]
          %v3806 = vlaneseq
          %v3807 = vshrl.u32 %v3806, 7
          %v3808 = vsub.s32 0, %v3807
          %v3809 = vrot.slane %v3805, %v3808
          %v3810 = vmul.f32 %v3797, %v3809
          %v3811 = vmul.f32 %v3789, %v3809
          %v3812 = vmul.f32 %v3798, %v3809
          %v3813 = vmul.f32 %v3790, %v3809
          %v3814 = vmul.f32 %v3799, %v3809
          %v3815 = vmul.f32 %v3791, %v3809
          %v3816 = vmul.f32 %v3800, %v3809
          %v3817 = vmul.f32 %v3792, %v3809
          %v3818 = vmul.f32 %v3801, %v3809
          %v3819 = vmul.f32 %v3793, %v3809
          %v3820 = vmul.f32 %v3802, %v3809
          %v3821 = vmul.f32 %v3794, %v3809
          %v3822 = vmul.f32 %v3803, %v3809
          %v3823 = vmul.f32 %v3795, %v3809
          %v3824 = vmul.f32 %v3804, %v3809
          %v3825 = vmul.f32 %v3796, %v3809
          %v3826 = vadd.f32 %v3749, %v3810
          %v3827 = vadd.f32 %v3750, %v3811
          %v3828 = vadd.f32 %v3751, %v3812
          %v3829 = vadd.f32 %v3752, %v3813
          %v3830 = vadd.f32 %v3753, %v3814
          %v3831 = vadd.f32 %v3754, %v3815
          %v3832 = vadd.f32 %v3755, %v3816
          %v3833 = vadd.f32 %v3756, %v3817
          %v3834 = vadd.f32 %v3757, %v3818
          %v3835 = vadd.f32 %v3758, %v3819
          %v3836 = vadd.f32 %v3759, %v3820
          %v3837 = vadd.f32 %v3760, %v3821
          %v3838 = vadd.f32 %v3761, %v3822
          %v3839 = vadd.f32 %v3762, %v3823
          %v3840 = vadd.f32 %v3763, %v3824
          %v3841 = vadd.f32 %v3764, %v3825
          %v3842 = vrot.slane %v3472, 5
          %v3843 = vrot.slane %v3475, 5
          %v3844 = vrot.slane %v3478, 5
          %v3845 = vrot.slane %v3481, 5
          %v3846 = vrot.slane %v3484, 5
          %v3847 = vrot.slane %v3487, 5
          %v3848 = vrot.slane %v3490, 5
          %v3849 = vrot.slane %v3493, 5
          %v3850 = vrot.slane %v3473, 5
          %v3851 = vrot.slane %v3476, 5
          %v3852 = vrot.slane %v3479, 5
          %v3853 = vrot.slane %v3482, 5
          %v3854 = vrot.slane %v3485, 5
          %v3855 = vrot.slane %v3488, 5
          %v3856 = vrot.slane %v3491, 5
          %v3857 = vrot.slane %v3494, 5
          %v3858 = vrot.slane %v3474, 5
          %v3859 = vrot.slane %v3477, 5
          %v3860 = vrot.slane %v3480, 5
          %v3861 = vrot.slane %v3483, 5
          %v3862 = vrot.slane %v3486, 5
          %v3863 = vrot.slane %v3489, 5
          %v3864 = vrot.slane %v3492, 5
          %v3865 = vrot.slane %v3495, 5
          %v3866 = vsel %vm696, %v3850, %v3858
          %v3867 = vsel %vm696, %v3851, %v3859
          %v3868 = vsel %vm696, %v3852, %v3860
          %v3869 = vsel %vm696, %v3853, %v3861
          %v3870 = vsel %vm696, %v3854, %v3862
          %v3871 = vsel %vm696, %v3855, %v3863
          %v3872 = vsel %vm696, %v3856, %v3864
          %v3873 = vsel %vm696, %v3857, %v3865
          %v3874 = vsel %vm696, %v3842, %v3850
          %v3875 = vsel %vm696, %v3843, %v3851
          %v3876 = vsel %vm696, %v3844, %v3852
          %v3877 = vsel %vm696, %v3845, %v3853
          %v3878 = vsel %vm696, %v3846, %v3854
          %v3879 = vsel %vm696, %v3847, %v3855
          %v3880 = vsel %vm696, %v3848, %v3856
          %v3881 = vsel %vm696, %v3849, %v3857
          %v3882 = vld [vmem:[%s3496 + $0x5] sm:$0x1]
          %v3883 = vlaneseq
          %v3884 = vshrl.u32 %v3883, 7
          %v3885 = vsub.s32 0, %v3884
          %v3886 = vrot.slane %v3882, %v3885
          %v3887 = vmul.f32 %v3874, %v3886
          %v3888 = vmul.f32 %v3866, %v3886
          %v3889 = vmul.f32 %v3875, %v3886
          %v3890 = vmul.f32 %v3867, %v3886
          %v3891 = vmul.f32 %v3876, %v3886
          %v3892 = vmul.f32 %v3868, %v3886
          %v3893 = vmul.f32 %v3877, %v3886
          %v3894 = vmul.f32 %v3869, %v3886
          %v3895 = vmul.f32 %v3878, %v3886
          %v3896 = vmul.f32 %v3870, %v3886
          %v3897 = vmul.f32 %v3879, %v3886
          %v3898 = vmul.f32 %v3871, %v3886
          %v3899 = vmul.f32 %v3880, %v3886
          %v3900 = vmul.f32 %v3872, %v3886
          %v3901 = vmul.f32 %v3881, %v3886
          %v3902 = vmul.f32 %v3873, %v3886
          %v3903 = vadd.f32 %v3826, %v3887
          %v3904 = vadd.f32 %v3827, %v3888
          %v3905 = vadd.f32 %v3828, %v3889
          %v3906 = vadd.f32 %v3829, %v3890
          %v3907 = vadd.f32 %v3830, %v3891
          %v3908 = vadd.f32 %v3831, %v3892
          %v3909 = vadd.f32 %v3832, %v3893
          %v3910 = vadd.f32 %v3833, %v3894
          %v3911 = vadd.f32 %v3834, %v3895
          %v3912 = vadd.f32 %v3835, %v3896
          %v3913 = vadd.f32 %v3836, %v3897
          %v3914 = vadd.f32 %v3837, %v3898
          %v3915 = vadd.f32 %v3838, %v3899
          %v3916 = vadd.f32 %v3839, %v3900
          %v3917 = vadd.f32 %v3840, %v3901
          %v3918 = vadd.f32 %v3841, %v3902
          %v3919 = vrot.slane %v3472, 6
          %v3920 = vrot.slane %v3475, 6
          %v3921 = vrot.slane %v3478, 6
          %v3922 = vrot.slane %v3481, 6
          %v3923 = vrot.slane %v3484, 6
          %v3924 = vrot.slane %v3487, 6
          %v3925 = vrot.slane %v3490, 6
          %v3926 = vrot.slane %v3493, 6
          %v3927 = vrot.slane %v3473, 6
          %v3928 = vrot.slane %v3476, 6
          %v3929 = vrot.slane %v3479, 6
          %v3930 = vrot.slane %v3482, 6
          %v3931 = vrot.slane %v3485, 6
          %v3932 = vrot.slane %v3488, 6
          %v3933 = vrot.slane %v3491, 6
          %v3934 = vrot.slane %v3494, 6
          %v3935 = vrot.slane %v3474, 6
          %v3936 = vrot.slane %v3477, 6
          %v3937 = vrot.slane %v3480, 6
          %v3938 = vrot.slane %v3483, 6
          %v3939 = vrot.slane %v3486, 6
          %v3940 = vrot.slane %v3489, 6
          %v3941 = vrot.slane %v3492, 6
          %v3942 = vrot.slane %v3495, 6
          %v3943 = vsel %vm774, %v3927, %v3935
          %v3944 = vsel %vm774, %v3928, %v3936
          %v3945 = vsel %vm774, %v3929, %v3937
          %v3946 = vsel %vm774, %v3930, %v3938
          %v3947 = vsel %vm774, %v3931, %v3939
          %v3948 = vsel %vm774, %v3932, %v3940
          %v3949 = vsel %vm774, %v3933, %v3941
          %v3950 = vsel %vm774, %v3934, %v3942
          %v3951 = vsel %vm774, %v3919, %v3927
          %v3952 = vsel %vm774, %v3920, %v3928
          %v3953 = vsel %vm774, %v3921, %v3929
          %v3954 = vsel %vm774, %v3922, %v3930
          %v3955 = vsel %vm774, %v3923, %v3931
          %v3956 = vsel %vm774, %v3924, %v3932
          %v3957 = vsel %vm774, %v3925, %v3933
          %v3958 = vsel %vm774, %v3926, %v3934
          %v3959 = vld [vmem:[%s3496 + $0x6] sm:$0x1]
          %v3960 = vlaneseq
          %v3961 = vshrl.u32 %v3960, 7
          %v3962 = vsub.s32 0, %v3961
          %v3963 = vrot.slane %v3959, %v3962
          %v3964 = vmul.f32 %v3951, %v3963
          %v3965 = vmul.f32 %v3943, %v3963
          %v3966 = vmul.f32 %v3952, %v3963
          %v3967 = vmul.f32 %v3944, %v3963
          %v3968 = vmul.f32 %v3953, %v3963
          %v3969 = vmul.f32 %v3945, %v3963
          %v3970 = vmul.f32 %v3954, %v3963
          %v3971 = vmul.f32 %v3946, %v3963
          %v3972 = vmul.f32 %v3955, %v3963
          %v3973 = vmul.f32 %v3947, %v3963
          %v3974 = vmul.f32 %v3956, %v3963
          %v3975 = vmul.f32 %v3948, %v3963
          %v3976 = vmul.f32 %v3957, %v3963
          %v3977 = vmul.f32 %v3949, %v3963
          %v3978 = vmul.f32 %v3958, %v3963
          %v3979 = vmul.f32 %v3950, %v3963
          %v3980 = vadd.f32 %v3903, %v3964
          %v3981 = vadd.f32 %v3904, %v3965
          %v3982 = vadd.f32 %v3905, %v3966
          %v3983 = vadd.f32 %v3906, %v3967
          %v3984 = vadd.f32 %v3907, %v3968
          %v3985 = vadd.f32 %v3908, %v3969
          %v3986 = vadd.f32 %v3909, %v3970
          %v3987 = vadd.f32 %v3910, %v3971
          %v3988 = vadd.f32 %v3911, %v3972
          %v3989 = vadd.f32 %v3912, %v3973
          %v3990 = vadd.f32 %v3913, %v3974
          %v3991 = vadd.f32 %v3914, %v3975
          %v3992 = vadd.f32 %v3915, %v3976
          %v3993 = vadd.f32 %v3916, %v3977
          %v3994 = vadd.f32 %v3917, %v3978
          %v3995 = vadd.f32 %v3918, %v3979
          %v3997 = vlaneseq
          %v3998 = vshrl.u32 %v3997, 7
          %v3999 = vsub.s32 0, %v3998
          %v4000 = vrot.slane %v284, %v3999
          %v4002 = vadd.f32 %v3980, %v4000
          %v4003 = vadd.f32 %v3981, %v4000
          %v4004 = vadd.f32 %v3982, %v4000
          %v4005 = vadd.f32 %v3983, %v4000
          %v4006 = vadd.f32 %v3984, %v4000
          %v4007 = vadd.f32 %v3985, %v4000
          %v4008 = vadd.f32 %v3986, %v4000
          %v4009 = vadd.f32 %v3987, %v4000
          %v4010 = vadd.f32 %v3988, %v4000
          %v4011 = vadd.f32 %v3989, %v4000
          %v4012 = vadd.f32 %v3990, %v4000
          %v4013 = vadd.f32 %v3991, %v4000
          %v4014 = vadd.f32 %v3992, %v4000
          %v4015 = vadd.f32 %v3993, %v4000
          %v4016 = vadd.f32 %v3994, %v4000
          %v4017 = vadd.f32 %v3995, %v4000
          %v4018 = vpack.c.bf16 %v4003, %v4002
          %v4019 = vpack.c.bf16 %v4005, %v4004
          %v4020 = vpack.c.bf16 %v4007, %v4006
          %v4021 = vpack.c.bf16 %v4009, %v4008
          %v4022 = vpack.c.bf16 %v4011, %v4010
          %v4023 = vpack.c.bf16 %v4013, %v4012
          %v4024 = vpack.c.bf16 %v4015, %v4014
          %v4025 = vpack.c.bf16 %v4017, %v4016
          %v4026 = vld [vmem:[#allocation7] sm:$0xf]
          %v4027 = vld [vmem:[#allocation7 + $0x4] sm:$0xf]
          %v4028 = vld [vmem:[#allocation7 + $0x8] sm:$0xf]
          %v4029 = vld [vmem:[#allocation7 + $0xc] sm:$0xf]
          %v4030 = vld [vmem:[#allocation7 + $0x10] sm:$0xf]
          %v4031 = vld [vmem:[#allocation7 + $0x14] sm:$0xf]
          %v4032 = vld [vmem:[#allocation7 + $0x18] sm:$0xf]
          %v4033 = vld [vmem:[#allocation7 + $0x1c] sm:$0xf]
          %v4034 = vld [vmem:[#allocation7 + $0x20] sm:$0xf]
          %v4035 = vld [vmem:[#allocation7 + $0x24] sm:$0xf]
          %v4036 = vld [vmem:[#allocation7 + $0x28] sm:$0xf]
          %v4037 = vld [vmem:[#allocation7 + $0x2c] sm:$0xf]
          %v4038 = vld [vmem:[#allocation7 + $0x30] sm:$0xf]
          %v4039 = vld [vmem:[#allocation7 + $0x34] sm:$0xf]
          %v4040 = vld [vmem:[#allocation7 + $0x38] sm:$0xf]
          %v4041 = vld [vmem:[#allocation7 + $0x3c] sm:$0xf]
          %v4058 = vunpack.c.l.b16 %v4026
          %v4059 = vunpack.c.l.b16 %v4027
          %v4060 = vunpack.c.l.b16 %v4028
          %v4061 = vunpack.c.l.b16 %v4029
          %v4062 = vunpack.c.l.b16 %v4030
          %v4063 = vunpack.c.l.b16 %v4031
          %v4064 = vunpack.c.l.b16 %v4032
          %v4065 = vunpack.c.l.b16 %v4033
          %v4066 = vunpack.c.l.b16 %v4034
          %v4067 = vunpack.c.l.b16 %v4035
          %v4068 = vunpack.c.l.b16 %v4036
          %v4069 = vunpack.c.l.b16 %v4037
          %v4070 = vunpack.c.l.b16 %v4038
          %v4071 = vunpack.c.l.b16 %v4039
          %v4072 = vunpack.c.l.b16 %v4040
          %v4073 = vunpack.c.l.b16 %v4041
          %v4074 = vpack.c.b16 %v4059, %v4058
          %v4075 = vpack.c.b16 %v4061, %v4060
          %v4076 = vpack.c.b16 %v4063, %v4062
          %v4077 = vpack.c.b16 %v4065, %v4064
          %v4078 = vpack.c.b16 %v4067, %v4066
          %v4079 = vpack.c.b16 %v4069, %v4068
          %v4080 = vpack.c.b16 %v4071, %v4070
          %v4081 = vpack.c.b16 %v4073, %v4072
          %4090 = vmatprep.subr.bf16.mxu0 0
          %4091 = vmatpush1.bf16.msra.mxu0 %v4081
          %4092 = vmatprep.subr.bf16.mxu0 0
          %4093 = vmatpush1.bf16.msra.mxu0 %v4080
          %4094 = vmatprep.subr.bf16.mxu0 0
          %4095 = vmatpush1.bf16.msra.mxu0 %v4079
          %4096 = vmatprep.subr.bf16.mxu0 0
          %4097 = vmatpush1.bf16.msra.mxu0 %v4078
          %4098 = vmatprep.subr.bf16.mxu0 0
          %4099 = vmatpush1.bf16.msra.mxu0 %v4077
          %4100 = vmatprep.subr.bf16.mxu0 0
          %4101 = vmatpush1.bf16.msra.mxu0 %v4076
          %4102 = vmatprep.subr.bf16.mxu0 0
          %4103 = vmatpush1.bf16.msra.mxu0 %v4075
          %4104 = vmatprep.subr.bf16.mxu0 0
          %4105 = vmatpush1.bf16.msra.mxu0 %v4074
          %4106 = vmatprep.subr.bf16.mxu0 0
          %4107 = vmatpush2.bf16.msra.mxu0 0
          %4108 = vmatprep.subr.bf16.mxu0 0
          %4109 = vmatpush2.bf16.msra.mxu0 0
          %4110 = vmatprep.subr.bf16.mxu0 0
          %4111 = vmatpush2.bf16.msra.mxu0 0
          %4112 = vmatprep.subr.bf16.mxu0 0
          %4113 = vmatpush2.bf16.msra.mxu0 0
          %4114 = vmatprep.subr.bf16.mxu0 0
          %4115 = vmatpush2.bf16.msra.mxu0 0
          %4116 = vmatprep.subr.bf16.mxu0 0
          %4117 = vmatpush2.bf16.msra.mxu0 0
          %4118 = vmatprep.subr.bf16.mxu0 0
          %4119 = vmatpush2.bf16.msra.mxu0 0
          %4120 = vmatprep.subr.bf16.mxu0 0
          %4121 = vmatpush2.bf16.msra.mxu0 0
          %4122 = vmatprep.mubr.bf16.mxu0 0
          %4123 = vmatmul.mubr.bf16.gmra.mxu0 %v4018
          %v4124 = vpop.f32.mrf.mxu0
          %v4125 = vadd.f32 0.0, %v4124
          %v4126 = vpop.f32.mrf.mxu0
          %v4127 = vpop.f32.mrf.mxu0
          %v4128 = vadd.f32 0.0, %v4127
          %v4129 = vpop.f32.mrf.mxu0
          %4130 = vmatprep.mubr.bf16.mxu0 0
          %4131 = vmatmul.mubr.bf16.gmra.mxu0 %v4019
          %v4132 = vpop.f32.mrf.mxu0
          %v4133 = vadd.f32 0.0, %v4132
          %v4134 = vpop.f32.mrf.mxu0
          %v4135 = vpop.f32.mrf.mxu0
          %v4136 = vadd.f32 0.0, %v4135
          %v4137 = vpop.f32.mrf.mxu0
          %4138 = vmatprep.mubr.bf16.mxu0 0
          %4139 = vmatmul.mubr.bf16.gmra.mxu0 %v4020
          %v4140 = vpop.f32.mrf.mxu0
          %v4141 = vadd.f32 0.0, %v4140
          %v4142 = vpop.f32.mrf.mxu0
          %v4143 = vpop.f32.mrf.mxu0
          %v4144 = vadd.f32 0.0, %v4143
          %v4145 = vpop.f32.mrf.mxu0
          %4146 = vmatprep.mubr.bf16.mxu0 0
          %4147 = vmatmul.mubr.bf16.gmra.mxu0 %v4021
          %v4148 = vpop.f32.mrf.mxu0
          %v4149 = vadd.f32 0.0, %v4148
          %v4150 = vpop.f32.mrf.mxu0
          %v4151 = vpop.f32.mrf.mxu0
          %v4152 = vadd.f32 0.0, %v4151
          %v4153 = vpop.f32.mrf.mxu0
          %4154 = vmatprep.mubr.bf16.mxu0 0
          %4155 = vmatmul.mubr.bf16.gmra.mxu0 %v4022
          %v4156 = vpop.f32.mrf.mxu0
          %v4157 = vadd.f32 0.0, %v4156
          %v4158 = vpop.f32.mrf.mxu0
          %v4159 = vpop.f32.mrf.mxu0
          %v4160 = vadd.f32 0.0, %v4159
          %v4161 = vpop.f32.mrf.mxu0
          %4162 = vmatprep.mubr.bf16.mxu0 0
          %4163 = vmatmul.mubr.bf16.gmra.mxu0 %v4023
          %v4164 = vpop.f32.mrf.mxu0
          %v4165 = vadd.f32 0.0, %v4164
          %v4166 = vpop.f32.mrf.mxu0
          %v4167 = vpop.f32.mrf.mxu0
          %v4168 = vadd.f32 0.0, %v4167
          %v4169 = vpop.f32.mrf.mxu0
          %4170 = vmatprep.mubr.bf16.mxu0 0
          %4171 = vmatmul.mubr.bf16.gmra.mxu0 %v4024
          %v4172 = vpop.f32.mrf.mxu0
          %v4173 = vadd.f32 0.0, %v4172
          %v4174 = vpop.f32.mrf.mxu0
          %v4175 = vpop.f32.mrf.mxu0
          %v4176 = vadd.f32 0.0, %v4175
          %v4177 = vpop.f32.mrf.mxu0
          %4178 = vmatprep.mubr.bf16.mxu0 0
          %4179 = vmatmul.mubr.bf16.gmra.mxu0 %v4025
          %v4180 = vpop.f32.mrf.mxu0
          %v4181 = vadd.f32 0.0, %v4180
          %v4182 = vpop.f32.mrf.mxu0
          %v4183 = vpop.f32.mrf.mxu0
          %v4184 = vadd.f32 0.0, %v4183
          %v4185 = vpop.f32.mrf.mxu0
          %4186 = vdwg.mxu0
          %v4187 = vadd.f32 %v4002, %v4125
          %v4188 = vadd.f32 %v4003, %v4128
          %v4189 = vadd.f32 %v4004, %v4133
          %v4190 = vadd.f32 %v4005, %v4136
          %v4191 = vadd.f32 %v4006, %v4141
          %v4192 = vadd.f32 %v4007, %v4144
          %v4193 = vadd.f32 %v4008, %v4149
          %v4194 = vadd.f32 %v4009, %v4152
          %v4195 = vadd.f32 %v4010, %v4157
          %v4196 = vadd.f32 %v4011, %v4160
          %v4197 = vadd.f32 %v4012, %v4165
          %v4198 = vadd.f32 %v4013, %v4168
          %v4199 = vadd.f32 %v4014, %v4173
          %v4200 = vadd.f32 %v4015, %v4176
          %v4201 = vadd.f32 %v4016, %v4181
          %v4202 = vadd.f32 %v4017, %v4184
          %v4204 = vlaneseq
          %v4205 = vshrl.u32 %v4204, 7
          %v4206 = vsub.s32 0, %v4205
          %v4207 = vrot.slane %v285, %v4206
          %v4209 = vadd.f32 %v4187, %v4207
          %v4210 = vadd.f32 %v4188, %v4207
          %v4211 = vadd.f32 %v4189, %v4207
          %v4212 = vadd.f32 %v4190, %v4207
          %v4213 = vadd.f32 %v4191, %v4207
          %v4214 = vadd.f32 %v4192, %v4207
          %v4215 = vadd.f32 %v4193, %v4207
          %v4216 = vadd.f32 %v4194, %v4207
          %v4217 = vadd.f32 %v4195, %v4207
          %v4218 = vadd.f32 %v4196, %v4207
          %v4219 = vadd.f32 %v4197, %v4207
          %v4220 = vadd.f32 %v4198, %v4207
          %v4221 = vadd.f32 %v4199, %v4207
          %v4222 = vadd.f32 %v4200, %v4207
          %v4223 = vadd.f32 %v4201, %v4207
          %v4224 = vadd.f32 %v4202, %v4207
          %s4225 = smul.u32 %s292, 16
          %s4226 = scalar_lea.vmem %s220, %s4225 [#allocation9]
          %4227 = vst [vmem:[%s4226] sm:$0xff] %v4209
          %4228 = vst [vmem:[%s4226 + $0x8] sm:$0xff] %v4210
          %4229 = vst [vmem:[%s4226 + $0x10] sm:$0xff] %v4211
          %4230 = vst [vmem:[%s4226 + $0x18] sm:$0xff] %v4212
          %4231 = vst [vmem:[%s4226 + $0x20] sm:$0xff] %v4213
          %4232 = vst [vmem:[%s4226 + $0x28] sm:$0xff] %v4214
          %4233 = vst [vmem:[%s4226 + $0x30] sm:$0xff] %v4215
          %4234 = vst [vmem:[%s4226 + $0x38] sm:$0xff] %v4216
          %4235 = vst [vmem:[%s4226 + $0x40] sm:$0xff] %v4217
          %4236 = vst [vmem:[%s4226 + $0x48] sm:$0xff] %v4218
          %4237 = vst [vmem:[%s4226 + $0x50] sm:$0xff] %v4219
          %4238 = vst [vmem:[%s4226 + $0x58] sm:$0xff] %v4220
          %4239 = vst [vmem:[%s4226 + $0x60] sm:$0xff] %v4221
          %4240 = vst [vmem:[%s4226 + $0x68] sm:$0xff] %v4222
          %4241 = vst [vmem:[%s4226 + $0x70] sm:$0xff] %v4223
          %4242 = vst [vmem:[%s4226 + $0x78] sm:$0xff] %v4224
        $region65: #{tpu_custom_call.1} parent=35 // loop_footer
          %s291 = sadd.s32 1, %s287
        $region66: #{tpu_custom_call.1} parent=35 // loop_footer_branch
          %286 = sbr.rel target = $region62
        $region67: #{tpu_custom_call.1} parent=35 // loop_exit
          _
        %s4243 = sand.u32 %s127, 1
        %s4244 = scalar_lea.sflag [#allocation6], %s4243
        %s4245 = sand.u32 %s127, 1
        %s4246 = smul.addr %s4245, 256
        %s4247 = scalar_lea.vmem [#allocation9], %s4246
        // Predicated region
        $region68: #{tpu_custom_call.1} parent=35 // pred_check
          %p4248 = pneg %p137
        $region69: #{tpu_custom_call.1} parent=35 // pred_check_branch
          %4250 = sbr.rel (%p4248) target = $region71
        $region70: #{tpu_custom_call.1} parent=35 // pred_region
          %s4251 = smul.u32 16, %s26
          %s4253 = ssub.s32 4096, 4096
          %4254 = vsyncadd %s4244, %s4253
          %s4255 = smul.addr %s4251, 2
          %s4256 = smul.addr %s25, 32
          %s4257 = sadd.s32 %s4255, %s4256
          %s4258 = smul.addr %s4257, 128
          %s4259 = scalar_lea.hbm %s5, %s4258
          %s4260 = sshll.u32 %s4247, 4
          %s4261 = int_to_ptr.vmem [resolvable:$true] %s4260
          %4266 = dma.vmem_to_hbm [thread:$0]  %s4261, 4096, %s4259, %s4244, 128, 128, 8
        $region71: #{tpu_custom_call.1} parent=35 // pred_fallthru
          _
      $region36: #{tpu_custom_call.1} parent=5 // pred_fallthru
        _
      %p4267 = scmp.le.s32.totalorder 2, %s16
      // Predicated region
      $region72: #{tpu_custom_call.1} parent=5 // pred_check
        %p4268 = pneg %p4267
      $region73: #{tpu_custom_call.1} parent=5 // pred_check_branch
        %4270 = sbr.rel (%p4268) target = $region75
      $region74: #{tpu_custom_call.1} parent=5 // pred_region
        %s4271 = ssub.s32 %s16, 2
        // Predicated region
        $region76: #{tpu_custom_call.1} parent=74 // pred_check
          %p4272 = pneg %p143
        $region77: #{tpu_custom_call.1} parent=74 // pred_check_branch
          %4274 = sbr.rel (%p4272) target = $region79
        $region78: #{tpu_custom_call.1} parent=74 // pred_region
          %s4275 = sand.u32 %s128, 1
          %s4276 = scalar_lea.sflag [#allocation6], %s4275
          %s4277 = sand.u32 %s128, 1
          %s4278 = smul.addr %s4277, 256
          %s4279 = scalar_lea.vmem [#allocation9], %s4278
          %4280 = dma.done %s4276, 4096
        $region79: #{tpu_custom_call.1} parent=74 // pred_fallthru
          _
      $region75: #{tpu_custom_call.1} parent=5 // pred_fallthru
        _
    $region6: #{tpu_custom_call.1} parent=1 // loop_footer
      %s20 = sadd.s32 1, %s16
    $region7: #{tpu_custom_call.1} parent=1 // loop_footer_branch
      %15 = sbr.rel target = $region3
    $region8: #{tpu_custom_call.1} parent=1 // loop_exit
      _
    %4281 = vsyncpa [#allocation5], 1
    %s4282 = scalar_lea.sflag [#allocation5], 1
    %4283 = vsyncpa %s4282, 1
    %4284 = vsyncpa [#allocation8], 1
    %4285 = vsyncpa [#allocation6], 1
    %s4286 = scalar_lea.sflag [#allocation6], 1
    %4287 = vsyncpa %s4286, 1
  %4288 = vsyncmov [#allocation3]
  %s4289 = vpop.sfrf %4288
  %p4290 = scmp.eq.s32.totalorder %s4289, 0
  %p4291 = pneg %p4290
  %4293 = shalt.err (%p4291)
  %s4294 = scalar_lea.sflag [#allocation3], 1
  %4295 = vsyncmov %s4294
  %s4296 = vpop.sfrf %4295
  %p4297 = scmp.eq.s32.totalorder %s4296, 0
  %p4298 = pneg %p4297
  %4300 = shalt.err (%p4298)

</llo_original>
